<compile_context>
chip_gen: v5e
topology: v5e:2x2
jax: 0.10.0
libtpu: 0.0.40
codegen_flags: <defaults>
</compile_context>

<pallas_src>
import functools

import jax
import jax.numpy as jnp
from jax.experimental import pallas as pl
from jax.experimental.pallas import tpu as pltpu


def fused_denoise_kernel(x_ref, w1_ref, b1_ref, w2_ref, b2_ref, w3_ref, b3_ref,
                         out_ref, xpad_ref, hpad_ref, *, H, W, C, hidden):
    """Whole 3-layer residual denoiser for one batch element, fully in VMEM.

    x_ref   : (1, H, W, C)  f32   input image tile (NHWC)
    w*_ref  : (9*Cin, Cout) bf16  im2col-flattened 3x3 conv weights
    b*_ref  : (1, Cout)     f32   biases
    out_ref : (1, C, H*W)   f32   denoised output, channels-major (lane-dense)
    xpad_ref: (H+2, W+2, C)      VMEM scratch, zero-padded layer-0 input
    hpad_ref: (H+2, W+2, hidden) VMEM scratch, zero-padded hidden activations
    """
    P = H * W

    def im2col(pad_ref, cin):
        # Build the (P, 9*cin) im2col operand once -> ONE MXU matmul per conv
        # (K = 9*cin) instead of 9 tiny per-tap matmuls.
        taps = []
        for dy in range(3):
            for dx in range(3):
                taps.append(pad_ref[dy:dy + H, dx:dx + W, :].reshape(P, cin))
        return jnp.concatenate(taps, axis=-1)

    def conv(pad_ref, cin, w_ref, b_ref, relu):
        lhs = im2col(pad_ref, cin).astype(jnp.bfloat16)          # bf16 MXU input
        acc = jnp.dot(lhs, w_ref[...], preferred_element_type=jnp.float32)
        acc = acc + b_ref[...]                                   # (P, Cout) f32
        return jnp.maximum(acc, 0.0) if relu else acc

    # In-kernel zero ('same') padding: no HBM pad copies, halo stays zero.
    xpad_ref[...] = jnp.zeros(xpad_ref.shape, xpad_ref.dtype)
    hpad_ref[...] = jnp.zeros(hpad_ref.shape, hpad_ref.dtype)
    xpad_ref[1:H + 1, 1:W + 1, :] = x_ref[0]

    # Layer 1: conv3x3(C -> hidden) + ReLU
    h1 = conv(xpad_ref, C, w1_ref, b1_ref, relu=True)
    hpad_ref[1:H + 1, 1:W + 1, :] = h1.reshape(H, W, hidden)

    # Layer 2: conv3x3(hidden -> hidden) + ReLU   (halo already zero)
    h2 = conv(hpad_ref, hidden, w2_ref, b2_ref, relu=True)
    hpad_ref[1:H + 1, 1:W + 1, :] = h2.reshape(H, W, hidden)

    # Layer 3: conv3x3(hidden -> C) predicts noise; residual denoising.
    noise = conv(hpad_ref, hidden, w3_ref, b3_ref, relu=False)   # (P, C)
    y = x_ref[0].reshape(P, C) - noise                           # denoised = x - noise
    # Channels-major store: lane (minor) dim is H*W = multiple of 128.
    out_ref[0] = jnp.transpose(y)                                # (C, P)


def init_params(key, c_in=4, hidden=32):
    """Deterministic synthetic weights (He-style scaling)."""
    k1, k2, k3 = jax.random.split(key, 3)

    def conv_w(k, cin, cout):
        scale = (2.0 / (9 * cin)) ** 0.5
        return scale * jax.random.normal(k, (3, 3, cin, cout), jnp.float32)

    return (conv_w(k1, c_in, hidden), jnp.zeros((hidden,), jnp.float32),
            conv_w(k2, hidden, hidden), jnp.zeros((hidden,), jnp.float32),
            conv_w(k3, hidden, c_in), jnp.zeros((c_in,), jnp.float32))


@jax.jit
def denoising_network(x_nchw, params):
    """PyTorch-compatible entry point: NCHW f32 in, NCHW f32 out (inference)."""
    w1, b1, w2, b2, w3, b3 = params
    N, C, H, W = x_nchw.shape
    hidden = w1.shape[-1]

    x_nhwc = jnp.transpose(x_nchw, (0, 2, 3, 1))                 # NCHW -> NHWC
    # im2col-flatten 3x3 weights to (9*Cin, Cout); bf16 MXU operands.
    w1f = w1.reshape(9 * C, hidden).astype(jnp.bfloat16)
    w2f = w2.reshape(9 * hidden, hidden).astype(jnp.bfloat16)
    w3f = w3.reshape(9 * hidden, C).astype(jnp.bfloat16)
    b1r, b2r, b3r = b1.reshape(1, hidden), b2.reshape(1, hidden), b3.reshape(1, C)

    kern = functools.partial(fused_denoise_kernel, H=H, W=W, C=C, hidden=hidden)
    out_flat = pl.pallas_call(
        kern,
        out_shape=jax.ShapeDtypeStruct((N, C, H * W), jnp.float32),
        grid_spec=pltpu.PrefetchScalarGridSpec(
            num_scalar_prefetch=0,
            grid=(N,),
            in_specs=[
                pl.BlockSpec((1, H, W, C), lambda n: (n, 0, 0, 0)),
                pl.BlockSpec((9 * C, hidden), lambda n: (0, 0)),
                pl.BlockSpec((1, hidden), lambda n: (0, 0)),
                pl.BlockSpec((9 * hidden, hidden), lambda n: (0, 0)),
                pl.BlockSpec((1, hidden), lambda n: (0, 0)),
                pl.BlockSpec((9 * hidden, C), lambda n: (0, 0)),
                pl.BlockSpec((1, C), lambda n: (0, 0)),
            ],
            out_specs=pl.BlockSpec((1, C, H * W), lambda n: (n, 0, 0)),
            scratch_shapes=[
                pltpu.VMEM((H + 2, W + 2, C), jnp.float32),
                pltpu.VMEM((H + 2, W + 2, hidden), jnp.float32),
            ],
        ),
        compiler_params=pltpu.CompilerParams(
            dimension_semantics=("parallel",),
        ),
    )(x_nhwc, w1f, b1r, w2f, b2r, w3f, b3r)

    return out_flat.reshape(N, C, H, W)                          # NCHW, contiguous


if __name__ == "__main__":
    # TODO(synk): the original module torch.load()s a pretrained .pth checkpoint;
    # weights here are deterministic synthetic stand-ins with the same residual
    # denoiser forward semantics (out = x - predicted_noise).
    key = jax.random.PRNGKey(0)
    k_x, k_p = jax.random.split(key)

    N, C, H, W = 2, 4, 16, 16
    x = jax.random.normal(k_x, (N, C, H, W), jnp.float32)
    params = init_params(k_p, c_in=C, hidden=32)

    out = denoising_network(x, params)
    out = jax.block_until_ready(out)
    assert out.shape == (N, C, H, W) and out.dtype == jnp.float32
    assert bool(jnp.all(jnp.isfinite(out)))
    print("KERNEL_OK")
</pallas_src>

<mosaic_0001>
module attributes {stable_mosaic.version = 11 : i64} {
  func.func @fused_denoise_kernel(%arg0: i32, %arg1: memref<1x16x16x4xf32, #tpu.memory_space<vmem>>, %arg2: memref<36x32xbf16, #tpu.memory_space<vmem>>, %arg3: memref<1x32xf32, #tpu.memory_space<vmem>>, %arg4: memref<288x32xbf16, #tpu.memory_space<vmem>>, %arg5: memref<1x32xf32, #tpu.memory_space<vmem>>, %arg6: memref<288x4xbf16, #tpu.memory_space<vmem>>, %arg7: memref<1x4xf32, #tpu.memory_space<vmem>>, %arg8: memref<1x4x256xf32, #tpu.memory_space<vmem>>, %arg9: memref<18x18x4xf32, #tpu.memory_space<vmem>>, %arg10: memref<18x18x32xf32, #tpu.memory_space<vmem>>) attributes {dimension_semantics = [#tpu.dimension_semantics<parallel>], iteration_bounds = array<i64: 2>, scalar_prefetch = 0 : i64, scratch_operands = 2 : i64, tpu.core_type = #tpu.core_type<tc>, window_params = [{transform_indices = @transform_0, window_bounds = array<i64: 1, 16, 16, 4>}, {pipeline_mode = #tpu.pipeline_mode<synchronous>, transform_indices = @transform_1, window_bounds = array<i64: 36, 32>}, {pipeline_mode = #tpu.pipeline_mode<synchronous>, transform_indices = @transform_2, window_bounds = array<i64: 1, 32>}, {pipeline_mode = #tpu.pipeline_mode<synchronous>, transform_indices = @transform_3, window_bounds = array<i64: 288, 32>}, {pipeline_mode = #tpu.pipeline_mode<synchronous>, transform_indices = @transform_4, window_bounds = array<i64: 1, 32>}, {pipeline_mode = #tpu.pipeline_mode<synchronous>, transform_indices = @transform_5, window_bounds = array<i64: 288, 4>}, {pipeline_mode = #tpu.pipeline_mode<synchronous>, transform_indices = @transform_6, window_bounds = array<i64: 1, 4>}, {transform_indices = @transform_7, window_bounds = array<i64: 1, 4, 256>}]} {
    %cst = arith.constant 0.000000e+00 : f32
    %0 = vector.broadcast %cst : f32 to vector<18x18x4xf32>
    %c0 = arith.constant 0 : index
    %c0_0 = arith.constant 0 : index
    %c0_1 = arith.constant 0 : index
    %1 = vector.load %arg9[%c0, %c0_0, %c0_1] : memref<18x18x4xf32, #tpu.memory_space<vmem>>, vector<18x18x4xf32>
    tpu.vector_store %arg9[%c0, %c0_0, %c0_1], %0 {strides = array<i32>} : memref<18x18x4xf32, #tpu.memory_space<vmem>>, vector<18x18x4xf32>,
    %cst_2 = arith.constant 0.000000e+00 : f32
    %2 = vector.broadcast %cst_2 : f32 to vector<18x18x32xf32>
    %c0_3 = arith.constant 0 : index
    %c0_4 = arith.constant 0 : index
    %c0_5 = arith.constant 0 : index
    %3 = vector.load %arg10[%c0_3, %c0_4, %c0_5] : memref<18x18x32xf32, #tpu.memory_space<vmem>>, vector<18x18x32xf32>
    tpu.vector_store %arg10[%c0_3, %c0_4, %c0_5], %2 {strides = array<i32>} : memref<18x18x32xf32, #tpu.memory_space<vmem>>, vector<18x18x32xf32>,
    %c0_6 = arith.constant 0 : index
    %c0_7 = arith.constant 0 : index
    %c0_8 = arith.constant 0 : index
    %c0_9 = arith.constant 0 : index
    %4 = vector.load %arg1[%c0_6, %c0_7, %c0_8, %c0_9] : memref<1x16x16x4xf32, #tpu.memory_space<vmem>>, vector<1x16x16x4xf32>
    %5 = vector.shape_cast %4 : vector<1x16x16x4xf32> to vector<16x16x4xf32>
    %c1 = arith.constant 1 : index
    %c1_10 = arith.constant 1 : index
    %c0_11 = arith.constant 0 : index
    %6 = vector.load %arg9[%c1, %c1_10, %c0_11] : memref<18x18x4xf32, #tpu.memory_space<vmem>>, vector<16x16x4xf32>
    tpu.vector_store %arg9[%c1, %c1_10, %c0_11], %5 {strides = array<i32>} : memref<18x18x4xf32, #tpu.memory_space<vmem>>, vector<16x16x4xf32>,
    %c0_12 = arith.constant 0 : index
    %c0_13 = arith.constant 0 : index
    %c0_14 = arith.constant 0 : index
    %7 = vector.load %arg9[%c0_12, %c0_13, %c0_14] : memref<18x18x4xf32, #tpu.memory_space<vmem>>, vector<16x16x4xf32>
    %8 = vector.shape_cast %7 : vector<16x16x4xf32> to vector<256x4xf32>
    %c0_15 = arith.constant 0 : index
    %c1_16 = arith.constant 1 : index
    %c0_17 = arith.constant 0 : index
    %9 = vector.load %arg9[%c0_15, %c1_16, %c0_17] : memref<18x18x4xf32, #tpu.memory_space<vmem>>, vector<16x16x4xf32>
    %10 = vector.shape_cast %9 : vector<16x16x4xf32> to vector<256x4xf32>
    %c0_18 = arith.constant 0 : index
    %c2 = arith.constant 2 : index
    %c0_19 = arith.constant 0 : index
    %11 = vector.load %arg9[%c0_18, %c2, %c0_19] : memref<18x18x4xf32, #tpu.memory_space<vmem>>, vector<16x16x4xf32>
    %12 = vector.shape_cast %11 : vector<16x16x4xf32> to vector<256x4xf32>
    %c1_20 = arith.constant 1 : index
    %c0_21 = arith.constant 0 : index
    %c0_22 = arith.constant 0 : index
    %13 = vector.load %arg9[%c1_20, %c0_21, %c0_22] : memref<18x18x4xf32, #tpu.memory_space<vmem>>, vector<16x16x4xf32>
    %14 = vector.shape_cast %13 : vector<16x16x4xf32> to vector<256x4xf32>
    %c1_23 = arith.constant 1 : index
    %c1_24 = arith.constant 1 : index
    %c0_25 = arith.constant 0 : index
    %15 = vector.load %arg9[%c1_23, %c1_24, %c0_25] : memref<18x18x4xf32, #tpu.memory_space<vmem>>, vector<16x16x4xf32>
    %16 = vector.shape_cast %15 : vector<16x16x4xf32> to vector<256x4xf32>
    %c1_26 = arith.constant 1 : index
    %c2_27 = arith.constant 2 : index
    %c0_28 = arith.constant 0 : index
    %17 = vector.load %arg9[%c1_26, %c2_27, %c0_28] : memref<18x18x4xf32, #tpu.memory_space<vmem>>, vector<16x16x4xf32>
    %18 = vector.shape_cast %17 : vector<16x16x4xf32> to vector<256x4xf32>
    %c2_29 = arith.constant 2 : index
    %c0_30 = arith.constant 0 : index
    %c0_31 = arith.constant 0 : index
    %19 = vector.load %arg9[%c2_29, %c0_30, %c0_31] : memref<18x18x4xf32, #tpu.memory_space<vmem>>, vector<16x16x4xf32>
    %20 = vector.shape_cast %19 : vector<16x16x4xf32> to vector<256x4xf32>
    %c2_32 = arith.constant 2 : index
    %c1_33 = arith.constant 1 : index
    %c0_34 = arith.constant 0 : index
    %21 = vector.load %arg9[%c2_32, %c1_33, %c0_34] : memref<18x18x4xf32, #tpu.memory_space<vmem>>, vector<16x16x4xf32>
    %22 = vector.shape_cast %21 : vector<16x16x4xf32> to vector<256x4xf32>
    %c2_35 = arith.constant 2 : index
    %c2_36 = arith.constant 2 : index
    %c0_37 = arith.constant 0 : index
    %23 = vector.load %arg9[%c2_35, %c2_36, %c0_37] : memref<18x18x4xf32, #tpu.memory_space<vmem>>, vector<16x16x4xf32>
    %24 = vector.shape_cast %23 : vector<16x16x4xf32> to vector<256x4xf32>
    %25 = tpu.concatenate %8, %10, %12, %14, %16, %18, %20, %22, %24 in 1 : vector<256x4xf32>, vector<256x4xf32>, vector<256x4xf32>, vector<256x4xf32>, vector<256x4xf32>, vector<256x4xf32>, vector<256x4xf32>, vector<256x4xf32>, vector<256x4xf32> -> vector<256x36xf32>
    %26 = arith.truncf %25 : vector<256x36xf32> to vector<256x36xbf16>
    %c0_38 = arith.constant 0 : index
    %c0_39 = arith.constant 0 : index
    %27 = vector.load %arg2[%c0_38, %c0_39] : memref<36x32xbf16, #tpu.memory_space<vmem>>, vector<36x32xbf16>
    %cst_40 = arith.constant dense<0.000000e+00> : vector<256x32xf32>
    %28 = tpu.matmul %26, %27, %cst_40 {dimension_numbers = #tpu.dot_dimension_numbers<[1], [0], [0], [1], [0, 0, 1, 1], [], []>} : vector<256x36xbf16>, vector<36x32xbf16>, vector<256x32xf32> -> vector<256x32xf32>
    %c0_41 = arith.constant 0 : index
    %c0_42 = arith.constant 0 : index
    %29 = vector.load %arg3[%c0_41, %c0_42] : memref<1x32xf32, #tpu.memory_space<vmem>>, vector<1x32xf32>
    %30 = vector.broadcast %29 : vector<1x32xf32> to vector<256x32xf32>
    %31 = arith.addf %28, %30 : vector<256x32xf32>
    %cst_43 = arith.constant 0.000000e+00 : f32
    %32 = vector.broadcast %cst_43 : f32 to vector<256x32xf32>
    %33 = arith.maximumf %31, %32 : vector<256x32xf32>
    %34 = vector.shape_cast %33 : vector<256x32xf32> to vector<16x16x32xf32>
    %c1_44 = arith.constant 1 : index
    %c1_45 = arith.constant 1 : index
    %c0_46 = arith.constant 0 : index
    %35 = vector.load %arg10[%c1_44, %c1_45, %c0_46] : memref<18x18x32xf32, #tpu.memory_space<vmem>>, vector<16x16x32xf32>
    tpu.vector_store %arg10[%c1_44, %c1_45, %c0_46], %34 {strides = array<i32>} : memref<18x18x32xf32, #tpu.memory_space<vmem>>, vector<16x16x32xf32>,
    %c0_47 = arith.constant 0 : index
    %c0_48 = arith.constant 0 : index
    %c0_49 = arith.constant 0 : index
    %36 = vector.load %arg10[%c0_47, %c0_48, %c0_49] : memref<18x18x32xf32, #tpu.memory_space<vmem>>, vector<16x16x32xf32>
    %37 = vector.shape_cast %36 : vector<16x16x32xf32> to vector<256x32xf32>
    %c0_50 = arith.constant 0 : index
    %c1_51 = arith.constant 1 : index
    %c0_52 = arith.constant 0 : index
    %38 = vector.load %arg10[%c0_50, %c1_51, %c0_52] : memref<18x18x32xf32, #tpu.memory_space<vmem>>, vector<16x16x32xf32>
    %39 = vector.shape_cast %38 : vector<16x16x32xf32> to vector<256x32xf32>
    %c0_53 = arith.constant 0 : index
    %c2_54 = arith.constant 2 : index
    %c0_55 = arith.constant 0 : index
    %40 = vector.load %arg10[%c0_53, %c2_54, %c0_55] : memref<18x18x32xf32, #tpu.memory_space<vmem>>, vector<16x16x32xf32>
    %41 = vector.shape_cast %40 : vector<16x16x32xf32> to vector<256x32xf32>
    %c1_56 = arith.constant 1 : index
    %c0_57 = arith.constant 0 : index
    %c0_58 = arith.constant 0 : index
    %42 = vector.load %arg10[%c1_56, %c0_57, %c0_58] : memref<18x18x32xf32, #tpu.memory_space<vmem>>, vector<16x16x32xf32>
    %43 = vector.shape_cast %42 : vector<16x16x32xf32> to vector<256x32xf32>
    %c1_59 = arith.constant 1 : index
    %c1_60 = arith.constant 1 : index
    %c0_61 = arith.constant 0 : index
    %44 = vector.load %arg10[%c1_59, %c1_60, %c0_61] : memref<18x18x32xf32, #tpu.memory_space<vmem>>, vector<16x16x32xf32>
    %45 = vector.shape_cast %44 : vector<16x16x32xf32> to vector<256x32xf32>
    %c1_62 = arith.constant 1 : index
    %c2_63 = arith.constant 2 : index
    %c0_64 = arith.constant 0 : index
    %46 = vector.load %arg10[%c1_62, %c2_63, %c0_64] : memref<18x18x32xf32, #tpu.memory_space<vmem>>, vector<16x16x32xf32>
    %47 = vector.shape_cast %46 : vector<16x16x32xf32> to vector<256x32xf32>
    %c2_65 = arith.constant 2 : index
    %c0_66 = arith.constant 0 : index
    %c0_67 = arith.constant 0 : index
    %48 = vector.load %arg10[%c2_65, %c0_66, %c0_67] : memref<18x18x32xf32, #tpu.memory_space<vmem>>, vector<16x16x32xf32>
    %49 = vector.shape_cast %48 : vector<16x16x32xf32> to vector<256x32xf32>
    %c2_68 = arith.constant 2 : index
    %c1_69 = arith.constant 1 : index
    %c0_70 = arith.constant 0 : index
    %50 = vector.load %arg10[%c2_68, %c1_69, %c0_70] : memref<18x18x32xf32, #tpu.memory_space<vmem>>, vector<16x16x32xf32>
    %51 = vector.shape_cast %50 : vector<16x16x32xf32> to vector<256x32xf32>
    %c2_71 = arith.constant 2 : index
    %c2_72 = arith.constant 2 : index
    %c0_73 = arith.constant 0 : index
    %52 = vector.load %arg10[%c2_71, %c2_72, %c0_73] : memref<18x18x32xf32, #tpu.memory_space<vmem>>, vector<16x16x32xf32>
    %53 = vector.shape_cast %52 : vector<16x16x32xf32> to vector<256x32xf32>
    %54 = tpu.concatenate %37, %39, %41, %43, %45, %47, %49, %51, %53 in 1 : vector<256x32xf32>, vector<256x32xf32>, vector<256x32xf32>, vector<256x32xf32>, vector<256x32xf32>, vector<256x32xf32>, vector<256x32xf32>, vector<256x32xf32>, vector<256x32xf32> -> vector<256x288xf32>
    %55 = arith.truncf %54 : vector<256x288xf32> to vector<256x288xbf16>
    %c0_74 = arith.constant 0 : index
    %c0_75 = arith.constant 0 : index
    %56 = vector.load %arg4[%c0_74, %c0_75] : memref<288x32xbf16, #tpu.memory_space<vmem>>, vector<288x32xbf16>
    %cst_76 = arith.constant dense<0.000000e+00> : vector<256x32xf32>
    %57 = tpu.matmul %55, %56, %cst_76 {dimension_numbers = #tpu.dot_dimension_numbers<[1], [0], [0], [1], [0, 0, 1, 1], [], []>} : vector<256x288xbf16>, vector<288x32xbf16>, vector<256x32xf32> -> vector<256x32xf32>
    %c0_77 = arith.constant 0 : index
    %c0_78 = arith.constant 0 : index
    %58 = vector.load %arg5[%c0_77, %c0_78] : memref<1x32xf32, #tpu.memory_space<vmem>>, vector<1x32xf32>
    %59 = vector.broadcast %58 : vector<1x32xf32> to vector<256x32xf32>
    %60 = arith.addf %57, %59 : vector<256x32xf32>
    %cst_79 = arith.constant 0.000000e+00 : f32
    %61 = vector.broadcast %cst_79 : f32 to vector<256x32xf32>
    %62 = arith.maximumf %60, %61 : vector<256x32xf32>
    %63 = vector.shape_cast %62 : vector<256x32xf32> to vector<16x16x32xf32>
    %c1_80 = arith.constant 1 : index
    %c1_81 = arith.constant 1 : index
    %c0_82 = arith.constant 0 : index
    %64 = vector.load %arg10[%c1_80, %c1_81, %c0_82] : memref<18x18x32xf32, #tpu.memory_space<vmem>>, vector<16x16x32xf32>
    tpu.vector_store %arg10[%c1_80, %c1_81, %c0_82], %63 {strides = array<i32>} : memref<18x18x32xf32, #tpu.memory_space<vmem>>, vector<16x16x32xf32>,
    %c0_83 = arith.constant 0 : index
    %c0_84 = arith.constant 0 : index
    %c0_85 = arith.constant 0 : index
    %65 = vector.load %arg10[%c0_83, %c0_84, %c0_85] : memref<18x18x32xf32, #tpu.memory_space<vmem>>, vector<16x16x32xf32>
    %66 = vector.shape_cast %65 : vector<16x16x32xf32> to vector<256x32xf32>
    %c0_86 = arith.constant 0 : index
    %c1_87 = arith.constant 1 : index
    %c0_88 = arith.constant 0 : index
    %67 = vector.load %arg10[%c0_86, %c1_87, %c0_88] : memref<18x18x32xf32, #tpu.memory_space<vmem>>, vector<16x16x32xf32>
    %68 = vector.shape_cast %67 : vector<16x16x32xf32> to vector<256x32xf32>
    %c0_89 = arith.constant 0 : index
    %c2_90 = arith.constant 2 : index
    %c0_91 = arith.constant 0 : index
    %69 = vector.load %arg10[%c0_89, %c2_90, %c0_91] : memref<18x18x32xf32, #tpu.memory_space<vmem>>, vector<16x16x32xf32>
    %70 = vector.shape_cast %69 : vector<16x16x32xf32> to vector<256x32xf32>
    %c1_92 = arith.constant 1 : index
    %c0_93 = arith.constant 0 : index
    %c0_94 = arith.constant 0 : index
    %71 = vector.load %arg10[%c1_92, %c0_93, %c0_94] : memref<18x18x32xf32, #tpu.memory_space<vmem>>, vector<16x16x32xf32>
    %72 = vector.shape_cast %71 : vector<16x16x32xf32> to vector<256x32xf32>
    %c1_95 = arith.constant 1 : index
    %c1_96 = arith.constant 1 : index
    %c0_97 = arith.constant 0 : index
    %73 = vector.load %arg10[%c1_95, %c1_96, %c0_97] : memref<18x18x32xf32, #tpu.memory_space<vmem>>, vector<16x16x32xf32>
    %74 = vector.shape_cast %73 : vector<16x16x32xf32> to vector<256x32xf32>
    %c1_98 = arith.constant 1 : index
    %c2_99 = arith.constant 2 : index
    %c0_100 = arith.constant 0 : index
    %75 = vector.load %arg10[%c1_98, %c2_99, %c0_100] : memref<18x18x32xf32, #tpu.memory_space<vmem>>, vector<16x16x32xf32>
    %76 = vector.shape_cast %75 : vector<16x16x32xf32> to vector<256x32xf32>
    %c2_101 = arith.constant 2 : index
    %c0_102 = arith.constant 0 : index
    %c0_103 = arith.constant 0 : index
    %77 = vector.load %arg10[%c2_101, %c0_102, %c0_103] : memref<18x18x32xf32, #tpu.memory_space<vmem>>, vector<16x16x32xf32>
    %78 = vector.shape_cast %77 : vector<16x16x32xf32> to vector<256x32xf32>
    %c2_104 = arith.constant 2 : index
    %c1_105 = arith.constant 1 : index
    %c0_106 = arith.constant 0 : index
    %79 = vector.load %arg10[%c2_104, %c1_105, %c0_106] : memref<18x18x32xf32, #tpu.memory_space<vmem>>, vector<16x16x32xf32>
    %80 = vector.shape_cast %79 : vector<16x16x32xf32> to vector<256x32xf32>
    %c2_107 = arith.constant 2 : index
    %c2_108 = arith.constant 2 : index
    %c0_109 = arith.constant 0 : index
    %81 = vector.load %arg10[%c2_107, %c2_108, %c0_109] : memref<18x18x32xf32, #tpu.memory_space<vmem>>, vector<16x16x32xf32>
    %82 = vector.shape_cast %81 : vector<16x16x32xf32> to vector<256x32xf32>
    %83 = tpu.concatenate %66, %68, %70, %72, %74, %76, %78, %80, %82 in 1 : vector<256x32xf32>, vector<256x32xf32>, vector<256x32xf32>, vector<256x32xf32>, vector<256x32xf32>, vector<256x32xf32>, vector<256x32xf32>, vector<256x32xf32>, vector<256x32xf32> -> vector<256x288xf32>
    %84 = arith.truncf %83 : vector<256x288xf32> to vector<256x288xbf16>
    %c0_110 = arith.constant 0 : index
    %c0_111 = arith.constant 0 : index
    %85 = vector.load %arg6[%c0_110, %c0_111] : memref<288x4xbf16, #tpu.memory_space<vmem>>, vector<288x4xbf16>
    %cst_112 = arith.constant dense<0.000000e+00> : vector<256x4xf32>
    %86 = tpu.matmul %84, %85, %cst_112 {dimension_numbers = #tpu.dot_dimension_numbers<[1], [0], [0], [1], [0, 0, 1, 1], [], []>} : vector<256x288xbf16>, vector<288x4xbf16>, vector<256x4xf32> -> vector<256x4xf32>
    %c0_113 = arith.constant 0 : index
    %c0_114 = arith.constant 0 : index
    %87 = vector.load %arg7[%c0_113, %c0_114] : memref<1x4xf32, #tpu.memory_space<vmem>>, vector<1x4xf32>
    %88 = vector.broadcast %87 : vector<1x4xf32> to vector<256x4xf32>
    %89 = arith.addf %86, %88 : vector<256x4xf32>
    %c0_115 = arith.constant 0 : index
    %c0_116 = arith.constant 0 : index
    %c0_117 = arith.constant 0 : index
    %c0_118 = arith.constant 0 : index
    %90 = vector.load %arg1[%c0_115, %c0_116, %c0_117, %c0_118] : memref<1x16x16x4xf32, #tpu.memory_space<vmem>>, vector<1x16x16x4xf32>
    %91 = vector.shape_cast %90 : vector<1x16x16x4xf32> to vector<16x16x4xf32>
    %92 = vector.shape_cast %91 : vector<16x16x4xf32> to vector<256x4xf32>
    %93 = arith.subf %92, %89 : vector<256x4xf32>
    %94 = tpu.transpose %93, [1, 0] : vector<256x4xf32> -> vector<4x256xf32>
    %c0_119 = arith.constant 0 : index
    %c0_120 = arith.constant 0 : index
    %c0_121 = arith.constant 0 : index
    %95 = vector.load %arg8[%c0_119, %c0_120, %c0_121] : memref<1x4x256xf32, #tpu.memory_space<vmem>>, vector<1x4x256xf32>
    %96 = vector.shape_cast %95 : vector<1x4x256xf32> to vector<4x256xf32>
    %97 = vector.shape_cast %94 : vector<4x256xf32> to vector<1x4x256xf32>
    tpu.vector_store %arg8[%c0_119, %c0_120, %c0_121], %97 {strides = array<i32>} : memref<1x4x256xf32, #tpu.memory_space<vmem>>, vector<1x4x256xf32>,
    return
  }
  func.func @transform_0(%arg0: i32) -> (i32, i32, i32, i32) {
    %c0_i32 = arith.constant 0 : i32
    %c0_i32_0 = arith.constant 0 : i32
    %c0_i32_1 = arith.constant 0 : i32
    %c0_i32_2 = arith.constant 0 : i32
    return %arg0, %c0_i32, %c0_i32_0, %c0_i32_1 : i32, i32, i32, i32
  }
  func.func @transform_1(%arg0: i32) -> (i32, i32) {
    %c0_i32 = arith.constant 0 : i32
    %c0_i32_0 = arith.constant 0 : i32
    %c0_i32_1 = arith.constant 0 : i32
    return %c0_i32, %c0_i32_0 : i32, i32
  }
  func.func @transform_2(%arg0: i32) -> (i32, i32) {
    %c0_i32 = arith.constant 0 : i32
    %c0_i32_0 = arith.constant 0 : i32
    %c0_i32_1 = arith.constant 0 : i32
    return %c0_i32, %c0_i32_0 : i32, i32
  }
  func.func @transform_3(%arg0: i32) -> (i32, i32) {
    %c0_i32 = arith.constant 0 : i32
    %c0_i32_0 = arith.constant 0 : i32
    %c0_i32_1 = arith.constant 0 : i32
    return %c0_i32, %c0_i32_0 : i32, i32
  }
  func.func @transform_4(%arg0: i32) -> (i32, i32) {
    %c0_i32 = arith.constant 0 : i32
    %c0_i32_0 = arith.constant 0 : i32
    %c0_i32_1 = arith.constant 0 : i32
    return %c0_i32, %c0_i32_0 : i32, i32
  }
  func.func @transform_5(%arg0: i32) -> (i32, i32) {
    %c0_i32 = arith.constant 0 : i32
    %c0_i32_0 = arith.constant 0 : i32
    %c0_i32_1 = arith.constant 0 : i32
    return %c0_i32, %c0_i32_0 : i32, i32
  }
  func.func @transform_6(%arg0: i32) -> (i32, i32) {
    %c0_i32 = arith.constant 0 : i32
    %c0_i32_0 = arith.constant 0 : i32
    %c0_i32_1 = arith.constant 0 : i32
    return %c0_i32, %c0_i32_0 : i32, i32
  }
  func.func @transform_7(%arg0: i32) -> (i32, i32, i32) {
    %c0_i32 = arith.constant 0 : i32
    %c0_i32_0 = arith.constant 0 : i32
    %c0_i32_1 = arith.constant 0 : i32
    return %arg0, %c0_i32, %c0_i32_0 : i32, i32, i32
  }
}

</mosaic_0001>

<llo_original>
// kernel: denoising_network.1
$region0: #{denoising_network.1}
  #allocation0 [shape = 'u32[]', space=smem, size = 0x4, offset = 0x4, fixed_abs, tag = 'smem constant byte address 0x4 - core index']
  #allocation1 [shape = 'u32[72,128]{1,0:T(1,128)}', space=vmem, size = 0x9000, scoped, tag = 'internal scratch']
  #allocation2 [shape = 'f32[18,18,4]{2,1,0:T(8,128)}', space=vmem, size = 0x36000, scoped, tag = 'scratch operand']
  #allocation3 [shape = 'f32[18,18,32]{2,1,0:T(8,128)}', space=vmem, size = 0x36000, scoped, tag = 'scratch operand']
  %s0 = inlined_call_operand.vmem [shape: f32[2,16,16,4], index: 0, kind: input, shape index: {}]
  %s1 = inlined_call_operand.vmem [shape: bf16[36,32], index: 1, kind: input, shape index: {}]
  %s2 = inlined_call_operand.vmem [shape: f32[1,32], index: 2, kind: input, shape index: {}]
  %s3 = inlined_call_operand.vmem [shape: bf16[288,32], index: 3, kind: input, shape index: {}]
  %s4 = inlined_call_operand.vmem [shape: f32[1,32], index: 4, kind: input, shape index: {}]
  %s5 = inlined_call_operand.vmem [shape: bf16[288,4], index: 5, kind: input, shape index: {}]
  %s6 = inlined_call_operand.vmem [shape: f32[1,4], index: 6, kind: input, shape index: {}]
  %s7 = inlined_call_operand.vmem [shape: f32[2,4,256], index: 7, kind: output, shape index: {}]
  %s8 = sld [smem:[#allocation0]]
  $region61: #{denoising_network.1} parent=0
    _
  %s10 = ssub.s32 1, %s8
  %s11 = scalar_select 0, %s10, %s8
  loop: start=0, step=1, limit=4
  $region2: #{denoising_network.1} parent=0 // loop_pre_header
    _
  $region3: #{denoising_network.1} parent=0 // loop_header
    %s13 = sphi 0, %s17
    %p14 = scmp.ge.s32.totalorder %s13, 4
    %s23 = sphi 0, %s25
    %s26 = sphi 0, %s23
    %s27 = sphi 0, %s26
    %s43 = sphi 0, %s27
    %s47 = sphi 0, %s47
    %s49 = sphi 0, %s47
    %s50 = sphi 0, %s49
    %s64 = sphi 0, %s50
    %s68 = sphi 0, %s68
    %s70 = sphi 0, %s68
    %s71 = sphi 0, %s70
    %s85 = sphi 0, %s71
    %s89 = sphi 0, %s89
    %s91 = sphi 0, %s89
    %s92 = sphi 0, %s91
    %s106 = sphi 0, %s92
    %s110 = sphi 0, %s110
    %s112 = sphi 0, %s110
    %s113 = sphi 0, %s112
    %s127 = sphi 0, %s113
    %s131 = sphi 0, %s131
    %s133 = sphi 0, %s131
    %s134 = sphi 0, %s133
    %s148 = sphi 0, %s134
    %s152 = sphi 0, %s152
    %s154 = sphi 0, %s152
    %s155 = sphi 0, %s154
    %s169 = sphi 0, %s155
    %s175 = sphi 0, %s177
    %s178 = sphi 0, %s175
    %s179 = sphi 0, %s178
    %s195 = sphi 0, %s179
  $region4: #{denoising_network.1} parent=0 // loop_header_branch
    %16 = sbr.rel (%p14) target = $region8
  $region5: #{denoising_network.1} parent=0 // loop_body
    %s18 = ssub.s32 %s13, 1
    %s19 = ssub.s32 %s13, 2
    %s20 = sadd.s32 %s13, 1
    %s21 = ssub.s32 %s13, %s20
    %p22 = scmp.eq.s32.totalorder %s21, 0
    %s24 = sadd.s32 %s23, 1
    %s25 = scalar_select %p22, %s23, %s24
    %p28 = pneg %p22
    %p29 = scmp.eq.s32.totalorder %s13, 1
    %p30 = por %p28, %p29
    %p31 = scmp.ne.s32.totalorder %s23, %s26
    %p32 = scmp.eq.s32.totalorder %s13, 0
    %p33 = por %p31, %p32
    %p34 = scmp.ne.s32.totalorder %s23, %s26
    %p35 = scmp.eq.s32.totalorder %s18, 1
    %p36 = por %p34, %p35
    %p37 = scmp.ne.s32.totalorder %s26, %s27
    %p38 = scmp.eq.s32.totalorder %s18, 0
    %p39 = por %p37, %p38
    %p40 = scmp.ne.s32.totalorder %s26, %s27
    %p41 = scmp.eq.s32.totalorder %s19, 1
    %p42 = por %p40, %p41
    %p44 = scmp.ne.s32.totalorder %s27, %s43
    %p45 = scmp.eq.s32.totalorder %s19, 0
    %p46 = por %p44, %p45
    %s48 = sadd.s32 %s47, 1
    %p51 = scmp.eq.s32.totalorder %s13, 1
    %p52 = scmp.ne.s32.totalorder %s47, %s49
    %p53 = scmp.eq.s32.totalorder %s13, 0
    %p54 = por %p52, %p53
    %p55 = scmp.ne.s32.totalorder %s47, %s49
    %p56 = scmp.eq.s32.totalorder %s18, 1
    %p57 = por %p55, %p56
    %p58 = scmp.ne.s32.totalorder %s49, %s50
    %p59 = scmp.eq.s32.totalorder %s18, 0
    %p60 = por %p58, %p59
    %p61 = scmp.ne.s32.totalorder %s49, %s50
    %p62 = scmp.eq.s32.totalorder %s19, 1
    %p63 = por %p61, %p62
    %p65 = scmp.ne.s32.totalorder %s50, %s64
    %p66 = scmp.eq.s32.totalorder %s19, 0
    %p67 = por %p65, %p66
    %s69 = sadd.s32 %s68, 1
    %p72 = scmp.eq.s32.totalorder %s13, 1
    %p73 = scmp.ne.s32.totalorder %s68, %s70
    %p74 = scmp.eq.s32.totalorder %s13, 0
    %p75 = por %p73, %p74
    %p76 = scmp.ne.s32.totalorder %s68, %s70
    %p77 = scmp.eq.s32.totalorder %s18, 1
    %p78 = por %p76, %p77
    %p79 = scmp.ne.s32.totalorder %s70, %s71
    %p80 = scmp.eq.s32.totalorder %s18, 0
    %p81 = por %p79, %p80
    %p82 = scmp.ne.s32.totalorder %s70, %s71
    %p83 = scmp.eq.s32.totalorder %s19, 1
    %p84 = por %p82, %p83
    %p86 = scmp.ne.s32.totalorder %s71, %s85
    %p87 = scmp.eq.s32.totalorder %s19, 0
    %p88 = por %p86, %p87
    %s90 = sadd.s32 %s89, 1
    %p93 = scmp.eq.s32.totalorder %s13, 1
    %p94 = scmp.ne.s32.totalorder %s89, %s91
    %p95 = scmp.eq.s32.totalorder %s13, 0
    %p96 = por %p94, %p95
    %p97 = scmp.ne.s32.totalorder %s89, %s91
    %p98 = scmp.eq.s32.totalorder %s18, 1
    %p99 = por %p97, %p98
    %p100 = scmp.ne.s32.totalorder %s91, %s92
    %p101 = scmp.eq.s32.totalorder %s18, 0
    %p102 = por %p100, %p101
    %p103 = scmp.ne.s32.totalorder %s91, %s92
    %p104 = scmp.eq.s32.totalorder %s19, 1
    %p105 = por %p103, %p104
    %p107 = scmp.ne.s32.totalorder %s92, %s106
    %p108 = scmp.eq.s32.totalorder %s19, 0
    %p109 = por %p107, %p108
    %s111 = sadd.s32 %s110, 1
    %p114 = scmp.eq.s32.totalorder %s13, 1
    %p115 = scmp.ne.s32.totalorder %s110, %s112
    %p116 = scmp.eq.s32.totalorder %s13, 0
    %p117 = por %p115, %p116
    %p118 = scmp.ne.s32.totalorder %s110, %s112
    %p119 = scmp.eq.s32.totalorder %s18, 1
    %p120 = por %p118, %p119
    %p121 = scmp.ne.s32.totalorder %s112, %s113
    %p122 = scmp.eq.s32.totalorder %s18, 0
    %p123 = por %p121, %p122
    %p124 = scmp.ne.s32.totalorder %s112, %s113
    %p125 = scmp.eq.s32.totalorder %s19, 1
    %p126 = por %p124, %p125
    %p128 = scmp.ne.s32.totalorder %s113, %s127
    %p129 = scmp.eq.s32.totalorder %s19, 0
    %p130 = por %p128, %p129
    %s132 = sadd.s32 %s131, 1
    %p135 = scmp.eq.s32.totalorder %s13, 1
    %p136 = scmp.ne.s32.totalorder %s131, %s133
    %p137 = scmp.eq.s32.totalorder %s13, 0
    %p138 = por %p136, %p137
    %p139 = scmp.ne.s32.totalorder %s131, %s133
    %p140 = scmp.eq.s32.totalorder %s18, 1
    %p141 = por %p139, %p140
    %p142 = scmp.ne.s32.totalorder %s133, %s134
    %p143 = scmp.eq.s32.totalorder %s18, 0
    %p144 = por %p142, %p143
    %p145 = scmp.ne.s32.totalorder %s133, %s134
    %p146 = scmp.eq.s32.totalorder %s19, 1
    %p147 = por %p145, %p146
    %p149 = scmp.ne.s32.totalorder %s134, %s148
    %p150 = scmp.eq.s32.totalorder %s19, 0
    %p151 = por %p149, %p150
    %s153 = sadd.s32 %s152, 1
    %p156 = scmp.eq.s32.totalorder %s13, 1
    %p157 = scmp.ne.s32.totalorder %s152, %s154
    %p158 = scmp.eq.s32.totalorder %s13, 0
    %p159 = por %p157, %p158
    %p160 = scmp.ne.s32.totalorder %s152, %s154
    %p161 = scmp.eq.s32.totalorder %s18, 1
    %p162 = por %p160, %p161
    %p163 = scmp.ne.s32.totalorder %s154, %s155
    %p164 = scmp.eq.s32.totalorder %s18, 0
    %p165 = por %p163, %p164
    %p166 = scmp.ne.s32.totalorder %s154, %s155
    %p167 = scmp.eq.s32.totalorder %s19, 1
    %p168 = por %p166, %p167
    %p170 = scmp.ne.s32.totalorder %s155, %s169
    %p171 = scmp.eq.s32.totalorder %s19, 0
    %p172 = por %p170, %p171
    %s173 = ssub.s32 %s13, %s20
    %p174 = scmp.eq.s32.totalorder %s173, 0
    %s176 = sadd.s32 %s175, 1
    %s177 = scalar_select %p174, %s175, %s176
    %p180 = pneg %p174
    %p181 = scmp.eq.s32.totalorder %s13, 1
    %p182 = por %p180, %p181
    %p183 = scmp.ne.s32.totalorder %s175, %s178
    %p184 = scmp.eq.s32.totalorder %s13, 0
    %p185 = por %p183, %p184
    %p186 = scmp.ne.s32.totalorder %s175, %s178
    %p187 = scmp.eq.s32.totalorder %s18, 1
    %p188 = por %p186, %p187
    %p189 = scmp.ne.s32.totalorder %s178, %s179
    %p190 = scmp.eq.s32.totalorder %s18, 0
    %p191 = por %p189, %p190
    %p192 = scmp.ne.s32.totalorder %s178, %s179
    %p193 = scmp.eq.s32.totalorder %s19, 1
    %p194 = por %p192, %p193
    %p196 = scmp.ne.s32.totalorder %s179, %s195
    %p197 = scmp.eq.s32.totalorder %s19, 0
    %p198 = por %p196, %p197
    %p199 = scmp.le.s32.totalorder 1, %s13
    %p200 = scmp.lt.s32.totalorder %s13, 3
    %p201 = pnand %p199, %p200
    %p202 = pneg %p201
    // Predicated region
    $region9: #{denoising_network.1} parent=5 // pred_check
      _
    $region10: #{denoising_network.1} parent=5 // pred_check_branch
      %204 = sbr.rel (%p201) target = $region12
    $region11: #{denoising_network.1} parent=5 // pred_region
      %s205 = ssub.s32 %s13, 1
      // Predicated region
      $region13: #{denoising_network.1} parent=11 // pred_check
        %p206 = pneg %p60
      $region14: #{denoising_network.1} parent=11 // pred_check_branch
        %208 = sbr.rel (%p206) target = $region16
      $region15: #{denoising_network.1} parent=11 // pred_region
        _
      $region16: #{denoising_network.1} parent=11 // pred_fallthru
        _
      // Predicated region
      $region17: #{denoising_network.1} parent=11 // pred_check
        %p209 = pneg %p81
      $region18: #{denoising_network.1} parent=11 // pred_check_branch
        %211 = sbr.rel (%p209) target = $region20
      $region19: #{denoising_network.1} parent=11 // pred_region
        _
      $region20: #{denoising_network.1} parent=11 // pred_fallthru
        _
      // Predicated region
      $region21: #{denoising_network.1} parent=11 // pred_check
        %p212 = pneg %p102
      $region22: #{denoising_network.1} parent=11 // pred_check_branch
        %214 = sbr.rel (%p212) target = $region24
      $region23: #{denoising_network.1} parent=11 // pred_region
        _
      $region24: #{denoising_network.1} parent=11 // pred_fallthru
        _
      // Predicated region
      $region25: #{denoising_network.1} parent=11 // pred_check
        %p215 = pneg %p123
      $region26: #{denoising_network.1} parent=11 // pred_check_branch
        %217 = sbr.rel (%p215) target = $region28
      $region27: #{denoising_network.1} parent=11 // pred_region
        _
      $region28: #{denoising_network.1} parent=11 // pred_fallthru
        _
      // Predicated region
      $region29: #{denoising_network.1} parent=11 // pred_check
        %p218 = pneg %p144
      $region30: #{denoising_network.1} parent=11 // pred_check_branch
        %220 = sbr.rel (%p218) target = $region32
      $region31: #{denoising_network.1} parent=11 // pred_region
        _
      $region32: #{denoising_network.1} parent=11 // pred_fallthru
        _
      // Predicated region
      $region33: #{denoising_network.1} parent=11 // pred_check
        %p221 = pneg %p165
      $region34: #{denoising_network.1} parent=11 // pred_check_branch
        %223 = sbr.rel (%p221) target = $region36
      $region35: #{denoising_network.1} parent=11 // pred_region
        _
      $region36: #{denoising_network.1} parent=11 // pred_fallthru
        _
    $region12: #{denoising_network.1} parent=5 // pred_fallthru
      _
    %p224 = scmp.lt.s32.totalorder %s13, 2
    // Predicated region
    $region37: #{denoising_network.1} parent=5 // pred_check
      %p225 = pneg %p224
    $region38: #{denoising_network.1} parent=5 // pred_check_branch
      %227 = sbr.rel (%p225) target = $region40
    $region39: #{denoising_network.1} parent=5 // pred_region
      // Predicated region
      $region41: #{denoising_network.1} parent=39 // pred_check
        %p228 = pneg %p33
      $region42: #{denoising_network.1} parent=39 // pred_check_branch
        %230 = sbr.rel (%p228) target = $region44
      $region43: #{denoising_network.1} parent=39 // pred_region
        %p231 = scmp.lt.s32.totalorder %s13, 1
        %s232 = scalar_select %p231, %s13, 1
        %s233 = smul.addr %s232, 32
        %s234 = smul.addr %s233, 8
        %s235 = scalar_lea.vmem %s0, %s234
      $region44: #{denoising_network.1} parent=39 // pred_fallthru
        _
    $region40: #{denoising_network.1} parent=5 // pred_fallthru
      _
    %p236 = scmp.le.s32.totalorder 1, %s13
    %p237 = scmp.lt.s32.totalorder %s13, 3
    %p238 = pnand %p236, %p237
    %p239 = pneg %p238
    // Predicated region
    $region45: #{denoising_network.1} parent=5 // pred_check
      _
    $region46: #{denoising_network.1} parent=5 // pred_check_branch
      %241 = sbr.rel (%p238) target = $region48
    $region47: #{denoising_network.1} parent=5 // pred_region
      %s242 = ssub.s32 %s13, 1
      %p243 = scmp.lt.s32.totalorder %s18, 1
      %s244 = scalar_select %p243, %s18, 1
      %s245 = smul.addr %s244, 32
      %s246 = smul.addr %s245, 8
      %s247 = scalar_lea.vmem %s0, %s246
      %p248 = pneg %p39
      %p249 = pneg %p36
      %p250 = pneg %p60
      %p251 = pneg %p57
      %p252 = pneg %p81
      %p253 = pneg %p78
      %p254 = pneg %p102
      %p255 = pneg %p99
      %p256 = pneg %p123
      %p257 = pneg %p120
      %p258 = pneg %p144
      %p259 = pneg %p141
      %p260 = pneg %p165
      %p261 = pneg %p162
      %p262 = pneg %p191
      %p263 = pneg %p188
      %p264 = scmp.lt.s32.totalorder %s18, 1
      %s265 = scalar_select %p264, %s18, 1
      %s266 = smul.addr %s265, 2
      %s267 = smul.addr %s266, 4
      %s268 = scalar_lea.vmem %s7, %s267
      %p269 = scmp.lt.s32.totalorder %s18, 1
      %s270 = scalar_select %p269, %s18, 1
      %s271 = smul.addr %s270, 32
      %s272 = smul.addr %s271, 8
      %s273 = scalar_lea.vmem %s0, %s272
      %p274 = scmp.lt.s32.totalorder %s18, 1
      %s275 = scalar_select %p274, %s18, 1
      %s276 = smul.addr %s275, 2
      %s277 = smul.addr %s276, 4
      %s278 = scalar_lea.vmem %s7, %s277
      %vm280 = vcmask 31744
      %281 = vst.msk [vmem:[#allocation2] sm:$0xff] %vm280, 0.0
      %282 = vst.msk [vmem:[#allocation2 + $0x8] sm:$0xff] %vm280, 0.0
      %vm283 = vcmask 25600
      %284 = vst.msk [vmem:[#allocation2 + $0x10] sm:$0x3] %vm283, 0.0
      %285 = vst.msk [vmem:[#allocation2 + $0x18] sm:$0xff] %vm280, 0.0
      %286 = vst.msk [vmem:[#allocation2 + $0x20] sm:$0xff] %vm280, 0.0
      %287 = vst.msk [vmem:[#allocation2 + $0x28] sm:$0x3] %vm283, 0.0
      %288 = vst.msk [vmem:[#allocation2 + $0x30] sm:$0xff] %vm280, 0.0
      %289 = vst.msk [vmem:[#allocation2 + $0x38] sm:$0xff] %vm280, 0.0
      %290 = vst.msk [vmem:[#allocation2 + $0x40] sm:$0x3] %vm283, 0.0
      %291 = vst.msk [vmem:[#allocation2 + $0x48] sm:$0xff] %vm280, 0.0
      %292 = vst.msk [vmem:[#allocation2 + $0x50] sm:$0xff] %vm280, 0.0
      %293 = vst.msk [vmem:[#allocation2 + $0x58] sm:$0x3] %vm283, 0.0
      %294 = vst.msk [vmem:[#allocation2 + $0x60] sm:$0xff] %vm280, 0.0
      %295 = vst.msk [vmem:[#allocation2 + $0x68] sm:$0xff] %vm280, 0.0
      %296 = vst.msk [vmem:[#allocation2 + $0x70] sm:$0x3] %vm283, 0.0
      %297 = vst.msk [vmem:[#allocation2 + $0x78] sm:$0xff] %vm280, 0.0
      %298 = vst.msk [vmem:[#allocation2 + $0x80] sm:$0xff] %vm280, 0.0
      %299 = vst.msk [vmem:[#allocation2 + $0x88] sm:$0x3] %vm283, 0.0
      %300 = vst.msk [vmem:[#allocation2 + $0x90] sm:$0xff] %vm280, 0.0
      %301 = vst.msk [vmem:[#allocation2 + $0x98] sm:$0xff] %vm280, 0.0
      %302 = vst.msk [vmem:[#allocation2 + $0xa0] sm:$0x3] %vm283, 0.0
      %303 = vst.msk [vmem:[#allocation2 + $0xa8] sm:$0xff] %vm280, 0.0
      %304 = vst.msk [vmem:[#allocation2 + $0xb0] sm:$0xff] %vm280, 0.0
      %305 = vst.msk [vmem:[#allocation2 + $0xb8] sm:$0x3] %vm283, 0.0
      %306 = vst.msk [vmem:[#allocation2 + $0xc0] sm:$0xff] %vm280, 0.0
      %307 = vst.msk [vmem:[#allocation2 + $0xc8] sm:$0xff] %vm280, 0.0
      %308 = vst.msk [vmem:[#allocation2 + $0xd0] sm:$0x3] %vm283, 0.0
      %309 = vst.msk [vmem:[#allocation2 + $0xd8] sm:$0xff] %vm280, 0.0
      %310 = vst.msk [vmem:[#allocation2 + $0xe0] sm:$0xff] %vm280, 0.0
      %311 = vst.msk [vmem:[#allocation2 + $0xe8] sm:$0x3] %vm283, 0.0
      %312 = vst.msk [vmem:[#allocation2 + $0xf0] sm:$0xff] %vm280, 0.0
      %313 = vst.msk [vmem:[#allocation2 + $0xf8] sm:$0xff] %vm280, 0.0
      %314 = vst.msk [vmem:[#allocation2 + $0x100] sm:$0x3] %vm283, 0.0
      %315 = vst.msk [vmem:[#allocation2 + $0x108] sm:$0xff] %vm280, 0.0
      %316 = vst.msk [vmem:[#allocation2 + $0x110] sm:$0xff] %vm280, 0.0
      %317 = vst.msk [vmem:[#allocation2 + $0x118] sm:$0x3] %vm283, 0.0
      %318 = vst.msk [vmem:[#allocation2 + $0x120] sm:$0xff] %vm280, 0.0
      %319 = vst.msk [vmem:[#allocation2 + $0x128] sm:$0xff] %vm280, 0.0
      %320 = vst.msk [vmem:[#allocation2 + $0x130] sm:$0x3] %vm283, 0.0
      %321 = vst.msk [vmem:[#allocation2 + $0x138] sm:$0xff] %vm280, 0.0
      %322 = vst.msk [vmem:[#allocation2 + $0x140] sm:$0xff] %vm280, 0.0
      %323 = vst.msk [vmem:[#allocation2 + $0x148] sm:$0x3] %vm283, 0.0
      %324 = vst.msk [vmem:[#allocation2 + $0x150] sm:$0xff] %vm280, 0.0
      %325 = vst.msk [vmem:[#allocation2 + $0x158] sm:$0xff] %vm280, 0.0
      %326 = vst.msk [vmem:[#allocation2 + $0x160] sm:$0x3] %vm283, 0.0
      %327 = vst.msk [vmem:[#allocation2 + $0x168] sm:$0xff] %vm280, 0.0
      %328 = vst.msk [vmem:[#allocation2 + $0x170] sm:$0xff] %vm280, 0.0
      %329 = vst.msk [vmem:[#allocation2 + $0x178] sm:$0x3] %vm283, 0.0
      %330 = vst.msk [vmem:[#allocation2 + $0x180] sm:$0xff] %vm280, 0.0
      %331 = vst.msk [vmem:[#allocation2 + $0x188] sm:$0xff] %vm280, 0.0
      %332 = vst.msk [vmem:[#allocation2 + $0x190] sm:$0x3] %vm283, 0.0
      %333 = vst.msk [vmem:[#allocation2 + $0x198] sm:$0xff] %vm280, 0.0
      %334 = vst.msk [vmem:[#allocation2 + $0x1a0] sm:$0xff] %vm280, 0.0
      %335 = vst.msk [vmem:[#allocation2 + $0x1a8] sm:$0x3] %vm283, 0.0
      %vm336 = vcmask 261120
      %337 = vst.msk [vmem:[#allocation3] sm:$0xff] %vm336, 0.0
      %338 = vst.msk [vmem:[#allocation3 + $0x8] sm:$0xff] %vm336, 0.0
      %vm339 = vcmask 254976
      %340 = vst.msk [vmem:[#allocation3 + $0x10] sm:$0x3] %vm339, 0.0
      %341 = vst.msk [vmem:[#allocation3 + $0x18] sm:$0xff] %vm336, 0.0
      %342 = vst.msk [vmem:[#allocation3 + $0x20] sm:$0xff] %vm336, 0.0
      %343 = vst.msk [vmem:[#allocation3 + $0x28] sm:$0x3] %vm339, 0.0
      %344 = vst.msk [vmem:[#allocation3 + $0x30] sm:$0xff] %vm336, 0.0
      %345 = vst.msk [vmem:[#allocation3 + $0x38] sm:$0xff] %vm336, 0.0
      %346 = vst.msk [vmem:[#allocation3 + $0x40] sm:$0x3] %vm339, 0.0
      %347 = vst.msk [vmem:[#allocation3 + $0x48] sm:$0xff] %vm336, 0.0
      %348 = vst.msk [vmem:[#allocation3 + $0x50] sm:$0xff] %vm336, 0.0
      %349 = vst.msk [vmem:[#allocation3 + $0x58] sm:$0x3] %vm339, 0.0
      %350 = vst.msk [vmem:[#allocation3 + $0x60] sm:$0xff] %vm336, 0.0
      %351 = vst.msk [vmem:[#allocation3 + $0x68] sm:$0xff] %vm336, 0.0
      %352 = vst.msk [vmem:[#allocation3 + $0x70] sm:$0x3] %vm339, 0.0
      %353 = vst.msk [vmem:[#allocation3 + $0x78] sm:$0xff] %vm336, 0.0
      %354 = vst.msk [vmem:[#allocation3 + $0x80] sm:$0xff] %vm336, 0.0
      %355 = vst.msk [vmem:[#allocation3 + $0x88] sm:$0x3] %vm339, 0.0
      %356 = vst.msk [vmem:[#allocation3 + $0x90] sm:$0xff] %vm336, 0.0
      %357 = vst.msk [vmem:[#allocation3 + $0x98] sm:$0xff] %vm336, 0.0
      %358 = vst.msk [vmem:[#allocation3 + $0xa0] sm:$0x3] %vm339, 0.0
      %359 = vst.msk [vmem:[#allocation3 + $0xa8] sm:$0xff] %vm336, 0.0
      %360 = vst.msk [vmem:[#allocation3 + $0xb0] sm:$0xff] %vm336, 0.0
      %361 = vst.msk [vmem:[#allocation3 + $0xb8] sm:$0x3] %vm339, 0.0
      %362 = vst.msk [vmem:[#allocation3 + $0xc0] sm:$0xff] %vm336, 0.0
      %363 = vst.msk [vmem:[#allocation3 + $0xc8] sm:$0xff] %vm336, 0.0
      %364 = vst.msk [vmem:[#allocation3 + $0xd0] sm:$0x3] %vm339, 0.0
      %365 = vst.msk [vmem:[#allocation3 + $0xd8] sm:$0xff] %vm336, 0.0
      %366 = vst.msk [vmem:[#allocation3 + $0xe0] sm:$0xff] %vm336, 0.0
      %367 = vst.msk [vmem:[#allocation3 + $0xe8] sm:$0x3] %vm339, 0.0
      %368 = vst.msk [vmem:[#allocation3 + $0xf0] sm:$0xff] %vm336, 0.0
      %369 = vst.msk [vmem:[#allocation3 + $0xf8] sm:$0xff] %vm336, 0.0
      %370 = vst.msk [vmem:[#allocation3 + $0x100] sm:$0x3] %vm339, 0.0
      %371 = vst.msk [vmem:[#allocation3 + $0x108] sm:$0xff] %vm336, 0.0
      %372 = vst.msk [vmem:[#allocation3 + $0x110] sm:$0xff] %vm336, 0.0
      %373 = vst.msk [vmem:[#allocation3 + $0x118] sm:$0x3] %vm339, 0.0
      %374 = vst.msk [vmem:[#allocation3 + $0x120] sm:$0xff] %vm336, 0.0
      %375 = vst.msk [vmem:[#allocation3 + $0x128] sm:$0xff] %vm336, 0.0
      %376 = vst.msk [vmem:[#allocation3 + $0x130] sm:$0x3] %vm339, 0.0
      %377 = vst.msk [vmem:[#allocation3 + $0x138] sm:$0xff] %vm336, 0.0
      %378 = vst.msk [vmem:[#allocation3 + $0x140] sm:$0xff] %vm336, 0.0
      %379 = vst.msk [vmem:[#allocation3 + $0x148] sm:$0x3] %vm339, 0.0
      %380 = vst.msk [vmem:[#allocation3 + $0x150] sm:$0xff] %vm336, 0.0
      %381 = vst.msk [vmem:[#allocation3 + $0x158] sm:$0xff] %vm336, 0.0
      %382 = vst.msk [vmem:[#allocation3 + $0x160] sm:$0x3] %vm339, 0.0
      %383 = vst.msk [vmem:[#allocation3 + $0x168] sm:$0xff] %vm336, 0.0
      %384 = vst.msk [vmem:[#allocation3 + $0x170] sm:$0xff] %vm336, 0.0
      %385 = vst.msk [vmem:[#allocation3 + $0x178] sm:$0x3] %vm339, 0.0
      %386 = vst.msk [vmem:[#allocation3 + $0x180] sm:$0xff] %vm336, 0.0
      %387 = vst.msk [vmem:[#allocation3 + $0x188] sm:$0xff] %vm336, 0.0
      %388 = vst.msk [vmem:[#allocation3 + $0x190] sm:$0x3] %vm339, 0.0
      %389 = vst.msk [vmem:[#allocation3 + $0x198] sm:$0xff] %vm336, 0.0
      %390 = vst.msk [vmem:[#allocation3 + $0x1a0] sm:$0xff] %vm336, 0.0
      %391 = vst.msk [vmem:[#allocation3 + $0x1a8] sm:$0x3] %vm339, 0.0
      %v392 = vld [vmem:[%s273] sm:$0xff]
      %v393 = vld [vmem:[%s273 + $0x8] sm:$0xff]
      %v394 = vld [vmem:[%s273 + $0x10] sm:$0xff]
      %v395 = vld [vmem:[%s273 + $0x18] sm:$0xff]
      %v396 = vld [vmem:[%s273 + $0x20] sm:$0xff]
      %v397 = vld [vmem:[%s273 + $0x28] sm:$0xff]
      %v398 = vld [vmem:[%s273 + $0x30] sm:$0xff]
      %v399 = vld [vmem:[%s273 + $0x38] sm:$0xff]
      %v400 = vld [vmem:[%s273 + $0x40] sm:$0xff]
      %v401 = vld [vmem:[%s273 + $0x48] sm:$0xff]
      %v402 = vld [vmem:[%s273 + $0x50] sm:$0xff]
      %v403 = vld [vmem:[%s273 + $0x58] sm:$0xff]
      %v404 = vld [vmem:[%s273 + $0x60] sm:$0xff]
      %v405 = vld [vmem:[%s273 + $0x68] sm:$0xff]
      %v406 = vld [vmem:[%s273 + $0x70] sm:$0xff]
      %v407 = vld [vmem:[%s273 + $0x78] sm:$0xff]
      %v408 = vld [vmem:[%s273 + $0x80] sm:$0xff]
      %v409 = vld [vmem:[%s273 + $0x88] sm:$0xff]
      %v410 = vld [vmem:[%s273 + $0x90] sm:$0xff]
      %v411 = vld [vmem:[%s273 + $0x98] sm:$0xff]
      %v412 = vld [vmem:[%s273 + $0xa0] sm:$0xff]
      %v413 = vld [vmem:[%s273 + $0xa8] sm:$0xff]
      %v414 = vld [vmem:[%s273 + $0xb0] sm:$0xff]
      %v415 = vld [vmem:[%s273 + $0xb8] sm:$0xff]
      %v416 = vld [vmem:[%s273 + $0xc0] sm:$0xff]
      %v417 = vld [vmem:[%s273 + $0xc8] sm:$0xff]
      %v418 = vld [vmem:[%s273 + $0xd0] sm:$0xff]
      %v419 = vld [vmem:[%s273 + $0xd8] sm:$0xff]
      %v420 = vld [vmem:[%s273 + $0xe0] sm:$0xff]
      %v421 = vld [vmem:[%s273 + $0xe8] sm:$0xff]
      %v422 = vld [vmem:[%s273 + $0xf0] sm:$0xff]
      %v423 = vld [vmem:[%s273 + $0xf8] sm:$0xff]
      %s424 = scalar_lea.vmem [#allocation2], 24
      %425 = vst.msk [vmem:[%s424 + $0x1] sm:$0xff] %vm280, %v392
      %426 = vst.msk [vmem:[%s424 + $0x9] sm:$0xff] %vm280, %v393
      %427 = vst.msk [vmem:[%s424 + $0x19] sm:$0xff] %vm280, %v394
      %428 = vst.msk [vmem:[%s424 + $0x21] sm:$0xff] %vm280, %v395
      %429 = vst.msk [vmem:[%s424 + $0x31] sm:$0xff] %vm280, %v396
      %430 = vst.msk [vmem:[%s424 + $0x39] sm:$0xff] %vm280, %v397
      %431 = vst.msk [vmem:[%s424 + $0x49] sm:$0xff] %vm280, %v398
      %432 = vst.msk [vmem:[%s424 + $0x51] sm:$0xff] %vm280, %v399
      %433 = vst.msk [vmem:[%s424 + $0x61] sm:$0xff] %vm280, %v400
      %434 = vst.msk [vmem:[%s424 + $0x69] sm:$0xff] %vm280, %v401
      %435 = vst.msk [vmem:[%s424 + $0x79] sm:$0xff] %vm280, %v402
      %436 = vst.msk [vmem:[%s424 + $0x81] sm:$0xff] %vm280, %v403
      %437 = vst.msk [vmem:[%s424 + $0x91] sm:$0xff] %vm280, %v404
      %438 = vst.msk [vmem:[%s424 + $0x99] sm:$0xff] %vm280, %v405
      %439 = vst.msk [vmem:[%s424 + $0xa9] sm:$0xff] %vm280, %v406
      %440 = vst.msk [vmem:[%s424 + $0xb1] sm:$0xff] %vm280, %v407
      %441 = vst.msk [vmem:[%s424 + $0xc1] sm:$0xff] %vm280, %v408
      %442 = vst.msk [vmem:[%s424 + $0xc9] sm:$0xff] %vm280, %v409
      %443 = vst.msk [vmem:[%s424 + $0xd9] sm:$0xff] %vm280, %v410
      %444 = vst.msk [vmem:[%s424 + $0xe1] sm:$0xff] %vm280, %v411
      %445 = vst.msk [vmem:[%s424 + $0xf1] sm:$0xff] %vm280, %v412
      %446 = vst.msk [vmem:[%s424 + $0xf9] sm:$0xff] %vm280, %v413
      %447 = vst.msk [vmem:[%s424 + $0x109] sm:$0xff] %vm280, %v414
      %448 = vst.msk [vmem:[%s424 + $0x111] sm:$0xff] %vm280, %v415
      %449 = vst.msk [vmem:[%s424 + $0x121] sm:$0xff] %vm280, %v416
      %450 = vst.msk [vmem:[%s424 + $0x129] sm:$0xff] %vm280, %v417
      %451 = vst.msk [vmem:[%s424 + $0x139] sm:$0xff] %vm280, %v418
      %452 = vst.msk [vmem:[%s424 + $0x141] sm:$0xff] %vm280, %v419
      %453 = vst.msk [vmem:[%s424 + $0x151] sm:$0xff] %vm280, %v420
      %454 = vst.msk [vmem:[%s424 + $0x159] sm:$0xff] %vm280, %v421
      %455 = vst.msk [vmem:[%s424 + $0x169] sm:$0xff] %vm280, %v422
      %456 = vst.msk [vmem:[%s424 + $0x171] sm:$0xff] %vm280, %v423
      %v457 = vld [vmem:[#allocation2] sm:$0xff]
      %v458 = vld [vmem:[#allocation2 + $0x8] sm:$0xff]
      %v459 = vld [vmem:[#allocation2 + $0x18] sm:$0xff]
      %v460 = vld [vmem:[#allocation2 + $0x20] sm:$0xff]
      %v461 = vld [vmem:[#allocation2 + $0x30] sm:$0xff]
      %v462 = vld [vmem:[#allocation2 + $0x38] sm:$0xff]
      %v463 = vld [vmem:[#allocation2 + $0x48] sm:$0xff]
      %v464 = vld [vmem:[#allocation2 + $0x50] sm:$0xff]
      %v465 = vld [vmem:[#allocation2 + $0x60] sm:$0xff]
      %v466 = vld [vmem:[#allocation2 + $0x68] sm:$0xff]
      %v467 = vld [vmem:[#allocation2 + $0x78] sm:$0xff]
      %v468 = vld [vmem:[#allocation2 + $0x80] sm:$0xff]
      %v469 = vld [vmem:[#allocation2 + $0x90] sm:$0xff]
      %v470 = vld [vmem:[#allocation2 + $0x98] sm:$0xff]
      %v471 = vld [vmem:[#allocation2 + $0xa8] sm:$0xff]
      %v472 = vld [vmem:[#allocation2 + $0xb0] sm:$0xff]
      %v473 = vld [vmem:[#allocation2 + $0xc0] sm:$0xff]
      %v474 = vld [vmem:[#allocation2 + $0xc8] sm:$0xff]
      %v475 = vld [vmem:[#allocation2 + $0xd8] sm:$0xff]
      %v476 = vld [vmem:[#allocation2 + $0xe0] sm:$0xff]
      %v477 = vld [vmem:[#allocation2 + $0xf0] sm:$0xff]
      %v478 = vld [vmem:[#allocation2 + $0xf8] sm:$0xff]
      %v479 = vld [vmem:[#allocation2 + $0x108] sm:$0xff]
      %v480 = vld [vmem:[#allocation2 + $0x110] sm:$0xff]
      %v481 = vld [vmem:[#allocation2 + $0x120] sm:$0xff]
      %v482 = vld [vmem:[#allocation2 + $0x128] sm:$0xff]
      %v483 = vld [vmem:[#allocation2 + $0x138] sm:$0xff]
      %v484 = vld [vmem:[#allocation2 + $0x140] sm:$0xff]
      %v485 = vld [vmem:[#allocation2 + $0x150] sm:$0xff]
      %v486 = vld [vmem:[#allocation2 + $0x158] sm:$0xff]
      %v487 = vld [vmem:[#allocation2 + $0x168] sm:$0xff]
      %v488 = vld [vmem:[#allocation2 + $0x170] sm:$0xff]
      %v489 = vld [vmem:[#allocation2 + $0x1] sm:$0xff]
      %v490 = vld [vmem:[#allocation2 + $0x9] sm:$0xff]
      %v491 = vld [vmem:[#allocation2 + $0x19] sm:$0xff]
      %v492 = vld [vmem:[#allocation2 + $0x21] sm:$0xff]
      %v493 = vld [vmem:[#allocation2 + $0x31] sm:$0xff]
      %v494 = vld [vmem:[#allocation2 + $0x39] sm:$0xff]
      %v495 = vld [vmem:[#allocation2 + $0x49] sm:$0xff]
      %v496 = vld [vmem:[#allocation2 + $0x51] sm:$0xff]
      %v497 = vld [vmem:[#allocation2 + $0x61] sm:$0xff]
      %v498 = vld [vmem:[#allocation2 + $0x69] sm:$0xff]
      %v499 = vld [vmem:[#allocation2 + $0x79] sm:$0xff]
      %v500 = vld [vmem:[#allocation2 + $0x81] sm:$0xff]
      %v501 = vld [vmem:[#allocation2 + $0x91] sm:$0xff]
      %v502 = vld [vmem:[#allocation2 + $0x99] sm:$0xff]
      %v503 = vld [vmem:[#allocation2 + $0xa9] sm:$0xff]
      %v504 = vld [vmem:[#allocation2 + $0xb1] sm:$0xff]
      %v505 = vld [vmem:[#allocation2 + $0xc1] sm:$0xff]
      %v506 = vld [vmem:[#allocation2 + $0xc9] sm:$0xff]
      %v507 = vld [vmem:[#allocation2 + $0xd9] sm:$0xff]
      %v508 = vld [vmem:[#allocation2 + $0xe1] sm:$0xff]
      %v509 = vld [vmem:[#allocation2 + $0xf1] sm:$0xff]
      %v510 = vld [vmem:[#allocation2 + $0xf9] sm:$0xff]
      %v511 = vld [vmem:[#allocation2 + $0x109] sm:$0xff]
      %v512 = vld [vmem:[#allocation2 + $0x111] sm:$0xff]
      %v513 = vld [vmem:[#allocation2 + $0x121] sm:$0xff]
      %v514 = vld [vmem:[#allocation2 + $0x129] sm:$0xff]
      %v515 = vld [vmem:[#allocation2 + $0x139] sm:$0xff]
      %v516 = vld [vmem:[#allocation2 + $0x141] sm:$0xff]
      %v517 = vld [vmem:[#allocation2 + $0x151] sm:$0xff]
      %v518 = vld [vmem:[#allocation2 + $0x159] sm:$0xff]
      %v519 = vld [vmem:[#allocation2 + $0x169] sm:$0xff]
      %v520 = vld [vmem:[#allocation2 + $0x171] sm:$0xff]
      %v521 = vld [vmem:[#allocation2 + $0x2] sm:$0xff]
      %v522 = vld [vmem:[#allocation2 + $0xa] sm:$0xff]
      %v523 = vld [vmem:[#allocation2 + $0x1a] sm:$0xff]
      %v524 = vld [vmem:[#allocation2 + $0x22] sm:$0xff]
      %v525 = vld [vmem:[#allocation2 + $0x32] sm:$0xff]
      %v526 = vld [vmem:[#allocation2 + $0x3a] sm:$0xff]
      %v527 = vld [vmem:[#allocation2 + $0x4a] sm:$0xff]
      %v528 = vld [vmem:[#allocation2 + $0x52] sm:$0xff]
      %v529 = vld [vmem:[#allocation2 + $0x62] sm:$0xff]
      %v530 = vld [vmem:[#allocation2 + $0x6a] sm:$0xff]
      %v531 = vld [vmem:[#allocation2 + $0x7a] sm:$0xff]
      %v532 = vld [vmem:[#allocation2 + $0x82] sm:$0xff]
      %v533 = vld [vmem:[#allocation2 + $0x92] sm:$0xff]
      %v534 = vld [vmem:[#allocation2 + $0x9a] sm:$0xff]
      %v535 = vld [vmem:[#allocation2 + $0xaa] sm:$0xff]
      %v536 = vld [vmem:[#allocation2 + $0xb2] sm:$0xff]
      %v537 = vld [vmem:[#allocation2 + $0xc2] sm:$0xff]
      %v538 = vld [vmem:[#allocation2 + $0xca] sm:$0xff]
      %v539 = vld [vmem:[#allocation2 + $0xda] sm:$0xff]
      %v540 = vld [vmem:[#allocation2 + $0xe2] sm:$0xff]
      %v541 = vld [vmem:[#allocation2 + $0xf2] sm:$0xff]
      %v542 = vld [vmem:[#allocation2 + $0xfa] sm:$0xff]
      %v543 = vld [vmem:[#allocation2 + $0x10a] sm:$0xff]
      %v544 = vld [vmem:[#allocation2 + $0x112] sm:$0xff]
      %v545 = vld [vmem:[#allocation2 + $0x122] sm:$0xff]
      %v546 = vld [vmem:[#allocation2 + $0x12a] sm:$0xff]
      %v547 = vld [vmem:[#allocation2 + $0x13a] sm:$0xff]
      %v548 = vld [vmem:[#allocation2 + $0x142] sm:$0xff]
      %v549 = vld [vmem:[#allocation2 + $0x152] sm:$0xff]
      %v550 = vld [vmem:[#allocation2 + $0x15a] sm:$0xff]
      %v551 = vld [vmem:[#allocation2 + $0x16a] sm:$0xff]
      %v552 = vld [vmem:[#allocation2 + $0x172] sm:$0xff]
      %v553 = vld [vmem:[%s424] sm:$0xff]
      %v554 = vld [vmem:[%s424 + $0x8] sm:$0xff]
      %v555 = vld [vmem:[%s424 + $0x18] sm:$0xff]
      %v556 = vld [vmem:[%s424 + $0x20] sm:$0xff]
      %v557 = vld [vmem:[%s424 + $0x30] sm:$0xff]
      %v558 = vld [vmem:[%s424 + $0x38] sm:$0xff]
      %v559 = vld [vmem:[%s424 + $0x48] sm:$0xff]
      %v560 = vld [vmem:[%s424 + $0x50] sm:$0xff]
      %v561 = vld [vmem:[%s424 + $0x60] sm:$0xff]
      %v562 = vld [vmem:[%s424 + $0x68] sm:$0xff]
      %v563 = vld [vmem:[%s424 + $0x78] sm:$0xff]
      %v564 = vld [vmem:[%s424 + $0x80] sm:$0xff]
      %v565 = vld [vmem:[%s424 + $0x90] sm:$0xff]
      %v566 = vld [vmem:[%s424 + $0x98] sm:$0xff]
      %v567 = vld [vmem:[%s424 + $0xa8] sm:$0xff]
      %v568 = vld [vmem:[%s424 + $0xb0] sm:$0xff]
      %v569 = vld [vmem:[%s424 + $0xc0] sm:$0xff]
      %v570 = vld [vmem:[%s424 + $0xc8] sm:$0xff]
      %v571 = vld [vmem:[%s424 + $0xd8] sm:$0xff]
      %v572 = vld [vmem:[%s424 + $0xe0] sm:$0xff]
      %v573 = vld [vmem:[%s424 + $0xf0] sm:$0xff]
      %v574 = vld [vmem:[%s424 + $0xf8] sm:$0xff]
      %v575 = vld [vmem:[%s424 + $0x108] sm:$0xff]
      %v576 = vld [vmem:[%s424 + $0x110] sm:$0xff]
      %v577 = vld [vmem:[%s424 + $0x120] sm:$0xff]
      %v578 = vld [vmem:[%s424 + $0x128] sm:$0xff]
      %v579 = vld [vmem:[%s424 + $0x138] sm:$0xff]
      %v580 = vld [vmem:[%s424 + $0x140] sm:$0xff]
      %v581 = vld [vmem:[%s424 + $0x150] sm:$0xff]
      %v582 = vld [vmem:[%s424 + $0x158] sm:$0xff]
      %v583 = vld [vmem:[%s424 + $0x168] sm:$0xff]
      %v584 = vld [vmem:[%s424 + $0x170] sm:$0xff]
      %v585 = vld [vmem:[%s424 + $0x1] sm:$0xff]
      %v586 = vld [vmem:[%s424 + $0x9] sm:$0xff]
      %v587 = vld [vmem:[%s424 + $0x19] sm:$0xff]
      %v588 = vld [vmem:[%s424 + $0x21] sm:$0xff]
      %v589 = vld [vmem:[%s424 + $0x31] sm:$0xff]
      %v590 = vld [vmem:[%s424 + $0x39] sm:$0xff]
      %v591 = vld [vmem:[%s424 + $0x49] sm:$0xff]
      %v592 = vld [vmem:[%s424 + $0x51] sm:$0xff]
      %v593 = vld [vmem:[%s424 + $0x61] sm:$0xff]
      %v594 = vld [vmem:[%s424 + $0x69] sm:$0xff]
      %v595 = vld [vmem:[%s424 + $0x79] sm:$0xff]
      %v596 = vld [vmem:[%s424 + $0x81] sm:$0xff]
      %v597 = vld [vmem:[%s424 + $0x91] sm:$0xff]
      %v598 = vld [vmem:[%s424 + $0x99] sm:$0xff]
      %v599 = vld [vmem:[%s424 + $0xa9] sm:$0xff]
      %v600 = vld [vmem:[%s424 + $0xb1] sm:$0xff]
      %v601 = vld [vmem:[%s424 + $0xc1] sm:$0xff]
      %v602 = vld [vmem:[%s424 + $0xc9] sm:$0xff]
      %v603 = vld [vmem:[%s424 + $0xd9] sm:$0xff]
      %v604 = vld [vmem:[%s424 + $0xe1] sm:$0xff]
      %v605 = vld [vmem:[%s424 + $0xf1] sm:$0xff]
      %v606 = vld [vmem:[%s424 + $0xf9] sm:$0xff]
      %v607 = vld [vmem:[%s424 + $0x109] sm:$0xff]
      %v608 = vld [vmem:[%s424 + $0x111] sm:$0xff]
      %v609 = vld [vmem:[%s424 + $0x121] sm:$0xff]
      %v610 = vld [vmem:[%s424 + $0x129] sm:$0xff]
      %v611 = vld [vmem:[%s424 + $0x139] sm:$0xff]
      %v612 = vld [vmem:[%s424 + $0x141] sm:$0xff]
      %v613 = vld [vmem:[%s424 + $0x151] sm:$0xff]
      %v614 = vld [vmem:[%s424 + $0x159] sm:$0xff]
      %v615 = vld [vmem:[%s424 + $0x169] sm:$0xff]
      %v616 = vld [vmem:[%s424 + $0x171] sm:$0xff]
      %v617 = vld [vmem:[%s424 + $0x2] sm:$0xff]
      %v618 = vld [vmem:[%s424 + $0xa] sm:$0xff]
      %v619 = vld [vmem:[%s424 + $0x1a] sm:$0xff]
      %v620 = vld [vmem:[%s424 + $0x22] sm:$0xff]
      %v621 = vld [vmem:[%s424 + $0x32] sm:$0xff]
      %v622 = vld [vmem:[%s424 + $0x3a] sm:$0xff]
      %v623 = vld [vmem:[%s424 + $0x4a] sm:$0xff]
      %v624 = vld [vmem:[%s424 + $0x52] sm:$0xff]
      %v625 = vld [vmem:[%s424 + $0x62] sm:$0xff]
      %v626 = vld [vmem:[%s424 + $0x6a] sm:$0xff]
      %v627 = vld [vmem:[%s424 + $0x7a] sm:$0xff]
      %v628 = vld [vmem:[%s424 + $0x82] sm:$0xff]
      %v629 = vld [vmem:[%s424 + $0x92] sm:$0xff]
      %v630 = vld [vmem:[%s424 + $0x9a] sm:$0xff]
      %v631 = vld [vmem:[%s424 + $0xaa] sm:$0xff]
      %v632 = vld [vmem:[%s424 + $0xb2] sm:$0xff]
      %v633 = vld [vmem:[%s424 + $0xc2] sm:$0xff]
      %v634 = vld [vmem:[%s424 + $0xca] sm:$0xff]
      %v635 = vld [vmem:[%s424 + $0xda] sm:$0xff]
      %v636 = vld [vmem:[%s424 + $0xe2] sm:$0xff]
      %v637 = vld [vmem:[%s424 + $0xf2] sm:$0xff]
      %v638 = vld [vmem:[%s424 + $0xfa] sm:$0xff]
      %v639 = vld [vmem:[%s424 + $0x10a] sm:$0xff]
      %v640 = vld [vmem:[%s424 + $0x112] sm:$0xff]
      %v641 = vld [vmem:[%s424 + $0x122] sm:$0xff]
      %v642 = vld [vmem:[%s424 + $0x12a] sm:$0xff]
      %v643 = vld [vmem:[%s424 + $0x13a] sm:$0xff]
      %v644 = vld [vmem:[%s424 + $0x142] sm:$0xff]
      %v645 = vld [vmem:[%s424 + $0x152] sm:$0xff]
      %v646 = vld [vmem:[%s424 + $0x15a] sm:$0xff]
      %v647 = vld [vmem:[%s424 + $0x16a] sm:$0xff]
      %v648 = vld [vmem:[%s424 + $0x172] sm:$0xff]
      %s649 = scalar_lea.vmem [#allocation2], 48
      %v650 = vld [vmem:[%s649] sm:$0xff]
      %v651 = vld [vmem:[%s649 + $0x8] sm:$0xff]
      %v652 = vld [vmem:[%s649 + $0x18] sm:$0xff]
      %v653 = vld [vmem:[%s649 + $0x20] sm:$0xff]
      %v654 = vld [vmem:[%s649 + $0x30] sm:$0xff]
      %v655 = vld [vmem:[%s649 + $0x38] sm:$0xff]
      %v656 = vld [vmem:[%s649 + $0x48] sm:$0xff]
      %v657 = vld [vmem:[%s649 + $0x50] sm:$0xff]
      %v658 = vld [vmem:[%s649 + $0x60] sm:$0xff]
      %v659 = vld [vmem:[%s649 + $0x68] sm:$0xff]
      %v660 = vld [vmem:[%s649 + $0x78] sm:$0xff]
      %v661 = vld [vmem:[%s649 + $0x80] sm:$0xff]
      %v662 = vld [vmem:[%s649 + $0x90] sm:$0xff]
      %v663 = vld [vmem:[%s649 + $0x98] sm:$0xff]
      %v664 = vld [vmem:[%s649 + $0xa8] sm:$0xff]
      %v665 = vld [vmem:[%s649 + $0xb0] sm:$0xff]
      %v666 = vld [vmem:[%s649 + $0xc0] sm:$0xff]
      %v667 = vld [vmem:[%s649 + $0xc8] sm:$0xff]
      %v668 = vld [vmem:[%s649 + $0xd8] sm:$0xff]
      %v669 = vld [vmem:[%s649 + $0xe0] sm:$0xff]
      %v670 = vld [vmem:[%s649 + $0xf0] sm:$0xff]
      %v671 = vld [vmem:[%s649 + $0xf8] sm:$0xff]
      %v672 = vld [vmem:[%s649 + $0x108] sm:$0xff]
      %v673 = vld [vmem:[%s649 + $0x110] sm:$0xff]
      %v674 = vld [vmem:[%s649 + $0x120] sm:$0xff]
      %v675 = vld [vmem:[%s649 + $0x128] sm:$0xff]
      %v676 = vld [vmem:[%s649 + $0x138] sm:$0xff]
      %v677 = vld [vmem:[%s649 + $0x140] sm:$0xff]
      %v678 = vld [vmem:[%s649 + $0x150] sm:$0xff]
      %v679 = vld [vmem:[%s649 + $0x158] sm:$0xff]
      %v680 = vld [vmem:[%s649 + $0x168] sm:$0xff]
      %v681 = vld [vmem:[%s649 + $0x170] sm:$0xff]
      %v682 = vld [vmem:[%s649 + $0x1] sm:$0xff]
      %v683 = vld [vmem:[%s649 + $0x9] sm:$0xff]
      %v684 = vld [vmem:[%s649 + $0x19] sm:$0xff]
      %v685 = vld [vmem:[%s649 + $0x21] sm:$0xff]
      %v686 = vld [vmem:[%s649 + $0x31] sm:$0xff]
      %v687 = vld [vmem:[%s649 + $0x39] sm:$0xff]
      %v688 = vld [vmem:[%s649 + $0x49] sm:$0xff]
      %v689 = vld [vmem:[%s649 + $0x51] sm:$0xff]
      %v690 = vld [vmem:[%s649 + $0x61] sm:$0xff]
      %v691 = vld [vmem:[%s649 + $0x69] sm:$0xff]
      %v692 = vld [vmem:[%s649 + $0x79] sm:$0xff]
      %v693 = vld [vmem:[%s649 + $0x81] sm:$0xff]
      %v694 = vld [vmem:[%s649 + $0x91] sm:$0xff]
      %v695 = vld [vmem:[%s649 + $0x99] sm:$0xff]
      %v696 = vld [vmem:[%s649 + $0xa9] sm:$0xff]
      %v697 = vld [vmem:[%s649 + $0xb1] sm:$0xff]
      %v698 = vld [vmem:[%s649 + $0xc1] sm:$0xff]
      %v699 = vld [vmem:[%s649 + $0xc9] sm:$0xff]
      %v700 = vld [vmem:[%s649 + $0xd9] sm:$0xff]
      %v701 = vld [vmem:[%s649 + $0xe1] sm:$0xff]
      %v702 = vld [vmem:[%s649 + $0xf1] sm:$0xff]
      %v703 = vld [vmem:[%s649 + $0xf9] sm:$0xff]
      %v704 = vld [vmem:[%s649 + $0x109] sm:$0xff]
      %v705 = vld [vmem:[%s649 + $0x111] sm:$0xff]
      %v706 = vld [vmem:[%s649 + $0x121] sm:$0xff]
      %v707 = vld [vmem:[%s649 + $0x129] sm:$0xff]
      %v708 = vld [vmem:[%s649 + $0x139] sm:$0xff]
      %v709 = vld [vmem:[%s649 + $0x141] sm:$0xff]
      %v710 = vld [vmem:[%s649 + $0x151] sm:$0xff]
      %v711 = vld [vmem:[%s649 + $0x159] sm:$0xff]
      %v712 = vld [vmem:[%s649 + $0x169] sm:$0xff]
      %v713 = vld [vmem:[%s649 + $0x171] sm:$0xff]
      %v714 = vld [vmem:[%s649 + $0x2] sm:$0xff]
      %v715 = vld [vmem:[%s649 + $0xa] sm:$0xff]
      %v716 = vld [vmem:[%s649 + $0x1a] sm:$0xff]
      %v717 = vld [vmem:[%s649 + $0x22] sm:$0xff]
      %v718 = vld [vmem:[%s649 + $0x32] sm:$0xff]
      %v719 = vld [vmem:[%s649 + $0x3a] sm:$0xff]
      %v720 = vld [vmem:[%s649 + $0x4a] sm:$0xff]
      %v721 = vld [vmem:[%s649 + $0x52] sm:$0xff]
      %v722 = vld [vmem:[%s649 + $0x62] sm:$0xff]
      %v723 = vld [vmem:[%s649 + $0x6a] sm:$0xff]
      %v724 = vld [vmem:[%s649 + $0x7a] sm:$0xff]
      %v725 = vld [vmem:[%s649 + $0x82] sm:$0xff]
      %v726 = vld [vmem:[%s649 + $0x92] sm:$0xff]
      %v727 = vld [vmem:[%s649 + $0x9a] sm:$0xff]
      %v728 = vld [vmem:[%s649 + $0xaa] sm:$0xff]
      %v729 = vld [vmem:[%s649 + $0xb2] sm:$0xff]
      %v730 = vld [vmem:[%s649 + $0xc2] sm:$0xff]
      %v731 = vld [vmem:[%s649 + $0xca] sm:$0xff]
      %v732 = vld [vmem:[%s649 + $0xda] sm:$0xff]
      %v733 = vld [vmem:[%s649 + $0xe2] sm:$0xff]
      %v734 = vld [vmem:[%s649 + $0xf2] sm:$0xff]
      %v735 = vld [vmem:[%s649 + $0xfa] sm:$0xff]
      %v736 = vld [vmem:[%s649 + $0x10a] sm:$0xff]
      %v737 = vld [vmem:[%s649 + $0x112] sm:$0xff]
      %v738 = vld [vmem:[%s649 + $0x122] sm:$0xff]
      %v739 = vld [vmem:[%s649 + $0x12a] sm:$0xff]
      %v740 = vld [vmem:[%s649 + $0x13a] sm:$0xff]
      %v741 = vld [vmem:[%s649 + $0x142] sm:$0xff]
      %v742 = vld [vmem:[%s649 + $0x152] sm:$0xff]
      %v743 = vld [vmem:[%s649 + $0x15a] sm:$0xff]
      %v744 = vld [vmem:[%s649 + $0x16a] sm:$0xff]
      %v745 = vld [vmem:[%s649 + $0x172] sm:$0xff]
      %778 = vrot.lane.b32.xlu0 %v489, 4
      %v779 = vpop.permute.xlu0 %778
      %780 = vrot.lane.b32.xlu0 %v490, 4
      %v781 = vpop.permute.xlu0 %780
      %782 = vrot.lane.b32.xlu0 %v491, 4
      %v783 = vpop.permute.xlu0 %782
      %784 = vrot.lane.b32.xlu0 %v492, 4
      %v785 = vpop.permute.xlu0 %784
      %786 = vrot.lane.b32.xlu0 %v493, 4
      %v787 = vpop.permute.xlu0 %786
      %788 = vrot.lane.b32.xlu0 %v494, 4
      %v789 = vpop.permute.xlu0 %788
      %790 = vrot.lane.b32.xlu0 %v495, 4
      %v791 = vpop.permute.xlu0 %790
      %792 = vrot.lane.b32.xlu0 %v496, 4
      %v793 = vpop.permute.xlu0 %792
      %794 = vrot.lane.b32.xlu0 %v497, 4
      %v795 = vpop.permute.xlu0 %794
      %796 = vrot.lane.b32.xlu0 %v498, 4
      %v797 = vpop.permute.xlu0 %796
      %798 = vrot.lane.b32.xlu0 %v499, 4
      %v799 = vpop.permute.xlu0 %798
      %800 = vrot.lane.b32.xlu0 %v500, 4
      %v801 = vpop.permute.xlu0 %800
      %802 = vrot.lane.b32.xlu0 %v501, 4
      %v803 = vpop.permute.xlu0 %802
      %804 = vrot.lane.b32.xlu0 %v502, 4
      %v805 = vpop.permute.xlu0 %804
      %806 = vrot.lane.b32.xlu0 %v503, 4
      %v807 = vpop.permute.xlu0 %806
      %808 = vrot.lane.b32.xlu0 %v504, 4
      %v809 = vpop.permute.xlu0 %808
      %810 = vrot.lane.b32.xlu0 %v505, 4
      %v811 = vpop.permute.xlu0 %810
      %812 = vrot.lane.b32.xlu0 %v506, 4
      %v813 = vpop.permute.xlu0 %812
      %814 = vrot.lane.b32.xlu0 %v507, 4
      %v815 = vpop.permute.xlu0 %814
      %816 = vrot.lane.b32.xlu0 %v508, 4
      %v817 = vpop.permute.xlu0 %816
      %818 = vrot.lane.b32.xlu0 %v509, 4
      %v819 = vpop.permute.xlu0 %818
      %820 = vrot.lane.b32.xlu0 %v510, 4
      %v821 = vpop.permute.xlu0 %820
      %822 = vrot.lane.b32.xlu0 %v511, 4
      %v823 = vpop.permute.xlu0 %822
      %824 = vrot.lane.b32.xlu0 %v512, 4
      %v825 = vpop.permute.xlu0 %824
      %826 = vrot.lane.b32.xlu0 %v513, 4
      %v827 = vpop.permute.xlu0 %826
      %828 = vrot.lane.b32.xlu0 %v514, 4
      %v829 = vpop.permute.xlu0 %828
      %830 = vrot.lane.b32.xlu0 %v515, 4
      %v831 = vpop.permute.xlu0 %830
      %832 = vrot.lane.b32.xlu0 %v516, 4
      %v833 = vpop.permute.xlu0 %832
      %834 = vrot.lane.b32.xlu0 %v517, 4
      %v835 = vpop.permute.xlu0 %834
      %836 = vrot.lane.b32.xlu0 %v518, 4
      %v837 = vpop.permute.xlu0 %836
      %838 = vrot.lane.b32.xlu0 %v519, 4
      %v839 = vpop.permute.xlu0 %838
      %840 = vrot.lane.b32.xlu0 %v520, 4
      %v841 = vpop.permute.xlu0 %840
      %906 = vrot.lane.b32.xlu0 %v521, 8
      %v907 = vpop.permute.xlu0 %906
      %908 = vrot.lane.b32.xlu0 %v522, 8
      %v909 = vpop.permute.xlu0 %908
      %910 = vrot.lane.b32.xlu0 %v523, 8
      %v911 = vpop.permute.xlu0 %910
      %912 = vrot.lane.b32.xlu0 %v524, 8
      %v913 = vpop.permute.xlu0 %912
      %914 = vrot.lane.b32.xlu0 %v525, 8
      %v915 = vpop.permute.xlu0 %914
      %916 = vrot.lane.b32.xlu0 %v526, 8
      %v917 = vpop.permute.xlu0 %916
      %918 = vrot.lane.b32.xlu0 %v527, 8
      %v919 = vpop.permute.xlu0 %918
      %920 = vrot.lane.b32.xlu0 %v528, 8
      %v921 = vpop.permute.xlu0 %920
      %922 = vrot.lane.b32.xlu0 %v529, 8
      %v923 = vpop.permute.xlu0 %922
      %924 = vrot.lane.b32.xlu0 %v530, 8
      %v925 = vpop.permute.xlu0 %924
      %926 = vrot.lane.b32.xlu0 %v531, 8
      %v927 = vpop.permute.xlu0 %926
      %928 = vrot.lane.b32.xlu0 %v532, 8
      %v929 = vpop.permute.xlu0 %928
      %930 = vrot.lane.b32.xlu0 %v533, 8
      %v931 = vpop.permute.xlu0 %930
      %932 = vrot.lane.b32.xlu0 %v534, 8
      %v933 = vpop.permute.xlu0 %932
      %934 = vrot.lane.b32.xlu0 %v535, 8
      %v935 = vpop.permute.xlu0 %934
      %936 = vrot.lane.b32.xlu0 %v536, 8
      %v937 = vpop.permute.xlu0 %936
      %938 = vrot.lane.b32.xlu0 %v537, 8
      %v939 = vpop.permute.xlu0 %938
      %940 = vrot.lane.b32.xlu0 %v538, 8
      %v941 = vpop.permute.xlu0 %940
      %942 = vrot.lane.b32.xlu0 %v539, 8
      %v943 = vpop.permute.xlu0 %942
      %944 = vrot.lane.b32.xlu0 %v540, 8
      %v945 = vpop.permute.xlu0 %944
      %946 = vrot.lane.b32.xlu0 %v541, 8
      %v947 = vpop.permute.xlu0 %946
      %948 = vrot.lane.b32.xlu0 %v542, 8
      %v949 = vpop.permute.xlu0 %948
      %950 = vrot.lane.b32.xlu0 %v543, 8
      %v951 = vpop.permute.xlu0 %950
      %952 = vrot.lane.b32.xlu0 %v544, 8
      %v953 = vpop.permute.xlu0 %952
      %954 = vrot.lane.b32.xlu0 %v545, 8
      %v955 = vpop.permute.xlu0 %954
      %956 = vrot.lane.b32.xlu0 %v546, 8
      %v957 = vpop.permute.xlu0 %956
      %958 = vrot.lane.b32.xlu0 %v547, 8
      %v959 = vpop.permute.xlu0 %958
      %960 = vrot.lane.b32.xlu0 %v548, 8
      %v961 = vpop.permute.xlu0 %960
      %962 = vrot.lane.b32.xlu0 %v549, 8
      %v963 = vpop.permute.xlu0 %962
      %964 = vrot.lane.b32.xlu0 %v550, 8
      %v965 = vpop.permute.xlu0 %964
      %966 = vrot.lane.b32.xlu0 %v551, 8
      %v967 = vpop.permute.xlu0 %966
      %968 = vrot.lane.b32.xlu0 %v552, 8
      %v969 = vpop.permute.xlu0 %968
      %1034 = vrot.lane.b32.xlu0 %v553, 12
      %v1035 = vpop.permute.xlu0 %1034
      %1036 = vrot.lane.b32.xlu0 %v554, 12
      %v1037 = vpop.permute.xlu0 %1036
      %1038 = vrot.lane.b32.xlu0 %v555, 12
      %v1039 = vpop.permute.xlu0 %1038
      %1040 = vrot.lane.b32.xlu0 %v556, 12
      %v1041 = vpop.permute.xlu0 %1040
      %1042 = vrot.lane.b32.xlu0 %v557, 12
      %v1043 = vpop.permute.xlu0 %1042
      %1044 = vrot.lane.b32.xlu0 %v558, 12
      %v1045 = vpop.permute.xlu0 %1044
      %1046 = vrot.lane.b32.xlu0 %v559, 12
      %v1047 = vpop.permute.xlu0 %1046
      %1048 = vrot.lane.b32.xlu0 %v560, 12
      %v1049 = vpop.permute.xlu0 %1048
      %1050 = vrot.lane.b32.xlu0 %v561, 12
      %v1051 = vpop.permute.xlu0 %1050
      %1052 = vrot.lane.b32.xlu0 %v562, 12
      %v1053 = vpop.permute.xlu0 %1052
      %1054 = vrot.lane.b32.xlu0 %v563, 12
      %v1055 = vpop.permute.xlu0 %1054
      %1056 = vrot.lane.b32.xlu0 %v564, 12
      %v1057 = vpop.permute.xlu0 %1056
      %1058 = vrot.lane.b32.xlu0 %v565, 12
      %v1059 = vpop.permute.xlu0 %1058
      %1060 = vrot.lane.b32.xlu0 %v566, 12
      %v1061 = vpop.permute.xlu0 %1060
      %1062 = vrot.lane.b32.xlu0 %v567, 12
      %v1063 = vpop.permute.xlu0 %1062
      %1064 = vrot.lane.b32.xlu0 %v568, 12
      %v1065 = vpop.permute.xlu0 %1064
      %1066 = vrot.lane.b32.xlu0 %v569, 12
      %v1067 = vpop.permute.xlu0 %1066
      %1068 = vrot.lane.b32.xlu0 %v570, 12
      %v1069 = vpop.permute.xlu0 %1068
      %1070 = vrot.lane.b32.xlu0 %v571, 12
      %v1071 = vpop.permute.xlu0 %1070
      %1072 = vrot.lane.b32.xlu0 %v572, 12
      %v1073 = vpop.permute.xlu0 %1072
      %1074 = vrot.lane.b32.xlu0 %v573, 12
      %v1075 = vpop.permute.xlu0 %1074
      %1076 = vrot.lane.b32.xlu0 %v574, 12
      %v1077 = vpop.permute.xlu0 %1076
      %1078 = vrot.lane.b32.xlu0 %v575, 12
      %v1079 = vpop.permute.xlu0 %1078
      %1080 = vrot.lane.b32.xlu0 %v576, 12
      %v1081 = vpop.permute.xlu0 %1080
      %1082 = vrot.lane.b32.xlu0 %v577, 12
      %v1083 = vpop.permute.xlu0 %1082
      %1084 = vrot.lane.b32.xlu0 %v578, 12
      %v1085 = vpop.permute.xlu0 %1084
      %1086 = vrot.lane.b32.xlu0 %v579, 12
      %v1087 = vpop.permute.xlu0 %1086
      %1088 = vrot.lane.b32.xlu0 %v580, 12
      %v1089 = vpop.permute.xlu0 %1088
      %1090 = vrot.lane.b32.xlu0 %v581, 12
      %v1091 = vpop.permute.xlu0 %1090
      %1092 = vrot.lane.b32.xlu0 %v582, 12
      %v1093 = vpop.permute.xlu0 %1092
      %1094 = vrot.lane.b32.xlu0 %v583, 12
      %v1095 = vpop.permute.xlu0 %1094
      %1096 = vrot.lane.b32.xlu0 %v584, 12
      %v1097 = vpop.permute.xlu0 %1096
      %1162 = vrot.lane.b32.xlu0 %v585, 16
      %v1163 = vpop.permute.xlu0 %1162
      %1164 = vrot.lane.b32.xlu0 %v586, 16
      %v1165 = vpop.permute.xlu0 %1164
      %1166 = vrot.lane.b32.xlu0 %v587, 16
      %v1167 = vpop.permute.xlu0 %1166
      %1168 = vrot.lane.b32.xlu0 %v588, 16
      %v1169 = vpop.permute.xlu0 %1168
      %1170 = vrot.lane.b32.xlu0 %v589, 16
      %v1171 = vpop.permute.xlu0 %1170
      %1172 = vrot.lane.b32.xlu0 %v590, 16
      %v1173 = vpop.permute.xlu0 %1172
      %1174 = vrot.lane.b32.xlu0 %v591, 16
      %v1175 = vpop.permute.xlu0 %1174
      %1176 = vrot.lane.b32.xlu0 %v592, 16
      %v1177 = vpop.permute.xlu0 %1176
      %1178 = vrot.lane.b32.xlu0 %v593, 16
      %v1179 = vpop.permute.xlu0 %1178
      %1180 = vrot.lane.b32.xlu0 %v594, 16
      %v1181 = vpop.permute.xlu0 %1180
      %1182 = vrot.lane.b32.xlu0 %v595, 16
      %v1183 = vpop.permute.xlu0 %1182
      %1184 = vrot.lane.b32.xlu0 %v596, 16
      %v1185 = vpop.permute.xlu0 %1184
      %1186 = vrot.lane.b32.xlu0 %v597, 16
      %v1187 = vpop.permute.xlu0 %1186
      %1188 = vrot.lane.b32.xlu0 %v598, 16
      %v1189 = vpop.permute.xlu0 %1188
      %1190 = vrot.lane.b32.xlu0 %v599, 16
      %v1191 = vpop.permute.xlu0 %1190
      %1192 = vrot.lane.b32.xlu0 %v600, 16
      %v1193 = vpop.permute.xlu0 %1192
      %1194 = vrot.lane.b32.xlu0 %v601, 16
      %v1195 = vpop.permute.xlu0 %1194
      %1196 = vrot.lane.b32.xlu0 %v602, 16
      %v1197 = vpop.permute.xlu0 %1196
      %1198 = vrot.lane.b32.xlu0 %v603, 16
      %v1199 = vpop.permute.xlu0 %1198
      %1200 = vrot.lane.b32.xlu0 %v604, 16
      %v1201 = vpop.permute.xlu0 %1200
      %1202 = vrot.lane.b32.xlu0 %v605, 16
      %v1203 = vpop.permute.xlu0 %1202
      %1204 = vrot.lane.b32.xlu0 %v606, 16
      %v1205 = vpop.permute.xlu0 %1204
      %1206 = vrot.lane.b32.xlu0 %v607, 16
      %v1207 = vpop.permute.xlu0 %1206
      %1208 = vrot.lane.b32.xlu0 %v608, 16
      %v1209 = vpop.permute.xlu0 %1208
      %1210 = vrot.lane.b32.xlu0 %v609, 16
      %v1211 = vpop.permute.xlu0 %1210
      %1212 = vrot.lane.b32.xlu0 %v610, 16
      %v1213 = vpop.permute.xlu0 %1212
      %1214 = vrot.lane.b32.xlu0 %v611, 16
      %v1215 = vpop.permute.xlu0 %1214
      %1216 = vrot.lane.b32.xlu0 %v612, 16
      %v1217 = vpop.permute.xlu0 %1216
      %1218 = vrot.lane.b32.xlu0 %v613, 16
      %v1219 = vpop.permute.xlu0 %1218
      %1220 = vrot.lane.b32.xlu0 %v614, 16
      %v1221 = vpop.permute.xlu0 %1220
      %1222 = vrot.lane.b32.xlu0 %v615, 16
      %v1223 = vpop.permute.xlu0 %1222
      %1224 = vrot.lane.b32.xlu0 %v616, 16
      %v1225 = vpop.permute.xlu0 %1224
      %1290 = vrot.lane.b32.xlu0 %v617, 20
      %v1291 = vpop.permute.xlu0 %1290
      %1292 = vrot.lane.b32.xlu0 %v618, 20
      %v1293 = vpop.permute.xlu0 %1292
      %1294 = vrot.lane.b32.xlu0 %v619, 20
      %v1295 = vpop.permute.xlu0 %1294
      %1296 = vrot.lane.b32.xlu0 %v620, 20
      %v1297 = vpop.permute.xlu0 %1296
      %1298 = vrot.lane.b32.xlu0 %v621, 20
      %v1299 = vpop.permute.xlu0 %1298
      %1300 = vrot.lane.b32.xlu0 %v622, 20
      %v1301 = vpop.permute.xlu0 %1300
      %1302 = vrot.lane.b32.xlu0 %v623, 20
      %v1303 = vpop.permute.xlu0 %1302
      %1304 = vrot.lane.b32.xlu0 %v624, 20
      %v1305 = vpop.permute.xlu0 %1304
      %1306 = vrot.lane.b32.xlu0 %v625, 20
      %v1307 = vpop.permute.xlu0 %1306
      %1308 = vrot.lane.b32.xlu0 %v626, 20
      %v1309 = vpop.permute.xlu0 %1308
      %1310 = vrot.lane.b32.xlu0 %v627, 20
      %v1311 = vpop.permute.xlu0 %1310
      %1312 = vrot.lane.b32.xlu0 %v628, 20
      %v1313 = vpop.permute.xlu0 %1312
      %1314 = vrot.lane.b32.xlu0 %v629, 20
      %v1315 = vpop.permute.xlu0 %1314
      %1316 = vrot.lane.b32.xlu0 %v630, 20
      %v1317 = vpop.permute.xlu0 %1316
      %1318 = vrot.lane.b32.xlu0 %v631, 20
      %v1319 = vpop.permute.xlu0 %1318
      %1320 = vrot.lane.b32.xlu0 %v632, 20
      %v1321 = vpop.permute.xlu0 %1320
      %1322 = vrot.lane.b32.xlu0 %v633, 20
      %v1323 = vpop.permute.xlu0 %1322
      %1324 = vrot.lane.b32.xlu0 %v634, 20
      %v1325 = vpop.permute.xlu0 %1324
      %1326 = vrot.lane.b32.xlu0 %v635, 20
      %v1327 = vpop.permute.xlu0 %1326
      %1328 = vrot.lane.b32.xlu0 %v636, 20
      %v1329 = vpop.permute.xlu0 %1328
      %1330 = vrot.lane.b32.xlu0 %v637, 20
      %v1331 = vpop.permute.xlu0 %1330
      %1332 = vrot.lane.b32.xlu0 %v638, 20
      %v1333 = vpop.permute.xlu0 %1332
      %1334 = vrot.lane.b32.xlu0 %v639, 20
      %v1335 = vpop.permute.xlu0 %1334
      %1336 = vrot.lane.b32.xlu0 %v640, 20
      %v1337 = vpop.permute.xlu0 %1336
      %1338 = vrot.lane.b32.xlu0 %v641, 20
      %v1339 = vpop.permute.xlu0 %1338
      %1340 = vrot.lane.b32.xlu0 %v642, 20
      %v1341 = vpop.permute.xlu0 %1340
      %1342 = vrot.lane.b32.xlu0 %v643, 20
      %v1343 = vpop.permute.xlu0 %1342
      %1344 = vrot.lane.b32.xlu0 %v644, 20
      %v1345 = vpop.permute.xlu0 %1344
      %1346 = vrot.lane.b32.xlu0 %v645, 20
      %v1347 = vpop.permute.xlu0 %1346
      %1348 = vrot.lane.b32.xlu0 %v646, 20
      %v1349 = vpop.permute.xlu0 %1348
      %1350 = vrot.lane.b32.xlu0 %v647, 20
      %v1351 = vpop.permute.xlu0 %1350
      %1352 = vrot.lane.b32.xlu0 %v648, 20
      %v1353 = vpop.permute.xlu0 %1352
      %1418 = vrot.lane.b32.xlu0 %v650, 24
      %v1419 = vpop.permute.xlu0 %1418
      %1420 = vrot.lane.b32.xlu0 %v651, 24
      %v1421 = vpop.permute.xlu0 %1420
      %1422 = vrot.lane.b32.xlu0 %v652, 24
      %v1423 = vpop.permute.xlu0 %1422
      %1424 = vrot.lane.b32.xlu0 %v653, 24
      %v1425 = vpop.permute.xlu0 %1424
      %1426 = vrot.lane.b32.xlu0 %v654, 24
      %v1427 = vpop.permute.xlu0 %1426
      %1428 = vrot.lane.b32.xlu0 %v655, 24
      %v1429 = vpop.permute.xlu0 %1428
      %1430 = vrot.lane.b32.xlu0 %v656, 24
      %v1431 = vpop.permute.xlu0 %1430
      %1432 = vrot.lane.b32.xlu0 %v657, 24
      %v1433 = vpop.permute.xlu0 %1432
      %1434 = vrot.lane.b32.xlu0 %v658, 24
      %v1435 = vpop.permute.xlu0 %1434
      %1436 = vrot.lane.b32.xlu0 %v659, 24
      %v1437 = vpop.permute.xlu0 %1436
      %1438 = vrot.lane.b32.xlu0 %v660, 24
      %v1439 = vpop.permute.xlu0 %1438
      %1440 = vrot.lane.b32.xlu0 %v661, 24
      %v1441 = vpop.permute.xlu0 %1440
      %1442 = vrot.lane.b32.xlu0 %v662, 24
      %v1443 = vpop.permute.xlu0 %1442
      %1444 = vrot.lane.b32.xlu0 %v663, 24
      %v1445 = vpop.permute.xlu0 %1444
      %1446 = vrot.lane.b32.xlu0 %v664, 24
      %v1447 = vpop.permute.xlu0 %1446
      %1448 = vrot.lane.b32.xlu0 %v665, 24
      %v1449 = vpop.permute.xlu0 %1448
      %1450 = vrot.lane.b32.xlu0 %v666, 24
      %v1451 = vpop.permute.xlu0 %1450
      %1452 = vrot.lane.b32.xlu0 %v667, 24
      %v1453 = vpop.permute.xlu0 %1452
      %1454 = vrot.lane.b32.xlu0 %v668, 24
      %v1455 = vpop.permute.xlu0 %1454
      %1456 = vrot.lane.b32.xlu0 %v669, 24
      %v1457 = vpop.permute.xlu0 %1456
      %1458 = vrot.lane.b32.xlu0 %v670, 24
      %v1459 = vpop.permute.xlu0 %1458
      %1460 = vrot.lane.b32.xlu0 %v671, 24
      %v1461 = vpop.permute.xlu0 %1460
      %1462 = vrot.lane.b32.xlu0 %v672, 24
      %v1463 = vpop.permute.xlu0 %1462
      %1464 = vrot.lane.b32.xlu0 %v673, 24
      %v1465 = vpop.permute.xlu0 %1464
      %1466 = vrot.lane.b32.xlu0 %v674, 24
      %v1467 = vpop.permute.xlu0 %1466
      %1468 = vrot.lane.b32.xlu0 %v675, 24
      %v1469 = vpop.permute.xlu0 %1468
      %1470 = vrot.lane.b32.xlu0 %v676, 24
      %v1471 = vpop.permute.xlu0 %1470
      %1472 = vrot.lane.b32.xlu0 %v677, 24
      %v1473 = vpop.permute.xlu0 %1472
      %1474 = vrot.lane.b32.xlu0 %v678, 24
      %v1475 = vpop.permute.xlu0 %1474
      %1476 = vrot.lane.b32.xlu0 %v679, 24
      %v1477 = vpop.permute.xlu0 %1476
      %1478 = vrot.lane.b32.xlu0 %v680, 24
      %v1479 = vpop.permute.xlu0 %1478
      %1480 = vrot.lane.b32.xlu0 %v681, 24
      %v1481 = vpop.permute.xlu0 %1480
      %1546 = vrot.lane.b32.xlu0 %v682, 28
      %v1547 = vpop.permute.xlu0 %1546
      %1548 = vrot.lane.b32.xlu0 %v683, 28
      %v1549 = vpop.permute.xlu0 %1548
      %1550 = vrot.lane.b32.xlu0 %v684, 28
      %v1551 = vpop.permute.xlu0 %1550
      %1552 = vrot.lane.b32.xlu0 %v685, 28
      %v1553 = vpop.permute.xlu0 %1552
      %1554 = vrot.lane.b32.xlu0 %v686, 28
      %v1555 = vpop.permute.xlu0 %1554
      %1556 = vrot.lane.b32.xlu0 %v687, 28
      %v1557 = vpop.permute.xlu0 %1556
      %1558 = vrot.lane.b32.xlu0 %v688, 28
      %v1559 = vpop.permute.xlu0 %1558
      %1560 = vrot.lane.b32.xlu0 %v689, 28
      %v1561 = vpop.permute.xlu0 %1560
      %1562 = vrot.lane.b32.xlu0 %v690, 28
      %v1563 = vpop.permute.xlu0 %1562
      %1564 = vrot.lane.b32.xlu0 %v691, 28
      %v1565 = vpop.permute.xlu0 %1564
      %1566 = vrot.lane.b32.xlu0 %v692, 28
      %v1567 = vpop.permute.xlu0 %1566
      %1568 = vrot.lane.b32.xlu0 %v693, 28
      %v1569 = vpop.permute.xlu0 %1568
      %1570 = vrot.lane.b32.xlu0 %v694, 28
      %v1571 = vpop.permute.xlu0 %1570
      %1572 = vrot.lane.b32.xlu0 %v695, 28
      %v1573 = vpop.permute.xlu0 %1572
      %1574 = vrot.lane.b32.xlu0 %v696, 28
      %v1575 = vpop.permute.xlu0 %1574
      %1576 = vrot.lane.b32.xlu0 %v697, 28
      %v1577 = vpop.permute.xlu0 %1576
      %1578 = vrot.lane.b32.xlu0 %v698, 28
      %v1579 = vpop.permute.xlu0 %1578
      %1580 = vrot.lane.b32.xlu0 %v699, 28
      %v1581 = vpop.permute.xlu0 %1580
      %1582 = vrot.lane.b32.xlu0 %v700, 28
      %v1583 = vpop.permute.xlu0 %1582
      %1584 = vrot.lane.b32.xlu0 %v701, 28
      %v1585 = vpop.permute.xlu0 %1584
      %1586 = vrot.lane.b32.xlu0 %v702, 28
      %v1587 = vpop.permute.xlu0 %1586
      %1588 = vrot.lane.b32.xlu0 %v703, 28
      %v1589 = vpop.permute.xlu0 %1588
      %1590 = vrot.lane.b32.xlu0 %v704, 28
      %v1591 = vpop.permute.xlu0 %1590
      %1592 = vrot.lane.b32.xlu0 %v705, 28
      %v1593 = vpop.permute.xlu0 %1592
      %1594 = vrot.lane.b32.xlu0 %v706, 28
      %v1595 = vpop.permute.xlu0 %1594
      %1596 = vrot.lane.b32.xlu0 %v707, 28
      %v1597 = vpop.permute.xlu0 %1596
      %1598 = vrot.lane.b32.xlu0 %v708, 28
      %v1599 = vpop.permute.xlu0 %1598
      %1600 = vrot.lane.b32.xlu0 %v709, 28
      %v1601 = vpop.permute.xlu0 %1600
      %1602 = vrot.lane.b32.xlu0 %v710, 28
      %v1603 = vpop.permute.xlu0 %1602
      %1604 = vrot.lane.b32.xlu0 %v711, 28
      %v1605 = vpop.permute.xlu0 %1604
      %1606 = vrot.lane.b32.xlu0 %v712, 28
      %v1607 = vpop.permute.xlu0 %1606
      %1608 = vrot.lane.b32.xlu0 %v713, 28
      %v1609 = vpop.permute.xlu0 %1608
      %1674 = vrot.lane.b32.xlu0 %v714, 32
      %v1675 = vpop.permute.xlu0 %1674
      %1676 = vrot.lane.b32.xlu0 %v715, 32
      %v1677 = vpop.permute.xlu0 %1676
      %1678 = vrot.lane.b32.xlu0 %v716, 32
      %v1679 = vpop.permute.xlu0 %1678
      %1680 = vrot.lane.b32.xlu0 %v717, 32
      %v1681 = vpop.permute.xlu0 %1680
      %1682 = vrot.lane.b32.xlu0 %v718, 32
      %v1683 = vpop.permute.xlu0 %1682
      %1684 = vrot.lane.b32.xlu0 %v719, 32
      %v1685 = vpop.permute.xlu0 %1684
      %1686 = vrot.lane.b32.xlu0 %v720, 32
      %v1687 = vpop.permute.xlu0 %1686
      %1688 = vrot.lane.b32.xlu0 %v721, 32
      %v1689 = vpop.permute.xlu0 %1688
      %1690 = vrot.lane.b32.xlu0 %v722, 32
      %v1691 = vpop.permute.xlu0 %1690
      %1692 = vrot.lane.b32.xlu0 %v723, 32
      %v1693 = vpop.permute.xlu0 %1692
      %1694 = vrot.lane.b32.xlu0 %v724, 32
      %v1695 = vpop.permute.xlu0 %1694
      %1696 = vrot.lane.b32.xlu0 %v725, 32
      %v1697 = vpop.permute.xlu0 %1696
      %1698 = vrot.lane.b32.xlu0 %v726, 32
      %v1699 = vpop.permute.xlu0 %1698
      %1700 = vrot.lane.b32.xlu0 %v727, 32
      %v1701 = vpop.permute.xlu0 %1700
      %1702 = vrot.lane.b32.xlu0 %v728, 32
      %v1703 = vpop.permute.xlu0 %1702
      %1704 = vrot.lane.b32.xlu0 %v729, 32
      %v1705 = vpop.permute.xlu0 %1704
      %1706 = vrot.lane.b32.xlu0 %v730, 32
      %v1707 = vpop.permute.xlu0 %1706
      %1708 = vrot.lane.b32.xlu0 %v731, 32
      %v1709 = vpop.permute.xlu0 %1708
      %1710 = vrot.lane.b32.xlu0 %v732, 32
      %v1711 = vpop.permute.xlu0 %1710
      %1712 = vrot.lane.b32.xlu0 %v733, 32
      %v1713 = vpop.permute.xlu0 %1712
      %1714 = vrot.lane.b32.xlu0 %v734, 32
      %v1715 = vpop.permute.xlu0 %1714
      %1716 = vrot.lane.b32.xlu0 %v735, 32
      %v1717 = vpop.permute.xlu0 %1716
      %1718 = vrot.lane.b32.xlu0 %v736, 32
      %v1719 = vpop.permute.xlu0 %1718
      %1720 = vrot.lane.b32.xlu0 %v737, 32
      %v1721 = vpop.permute.xlu0 %1720
      %1722 = vrot.lane.b32.xlu0 %v738, 32
      %v1723 = vpop.permute.xlu0 %1722
      %1724 = vrot.lane.b32.xlu0 %v739, 32
      %v1725 = vpop.permute.xlu0 %1724
      %1726 = vrot.lane.b32.xlu0 %v740, 32
      %v1727 = vpop.permute.xlu0 %1726
      %1728 = vrot.lane.b32.xlu0 %v741, 32
      %v1729 = vpop.permute.xlu0 %1728
      %1730 = vrot.lane.b32.xlu0 %v742, 32
      %v1731 = vpop.permute.xlu0 %1730
      %1732 = vrot.lane.b32.xlu0 %v743, 32
      %v1733 = vpop.permute.xlu0 %1732
      %1734 = vrot.lane.b32.xlu0 %v744, 32
      %v1735 = vpop.permute.xlu0 %1734
      %1736 = vrot.lane.b32.xlu0 %v745, 32
      %v1737 = vpop.permute.xlu0 %1736
      %v1770 = vsel %vm280, %v457, %v779
      %v1771 = vsel %vm280, %v458, %v781
      %v1772 = vsel %vm280, %v459, %v783
      %v1773 = vsel %vm280, %v460, %v785
      %v1774 = vsel %vm280, %v461, %v787
      %v1775 = vsel %vm280, %v462, %v789
      %v1776 = vsel %vm280, %v463, %v791
      %v1777 = vsel %vm280, %v464, %v793
      %v1778 = vsel %vm280, %v465, %v795
      %v1779 = vsel %vm280, %v466, %v797
      %v1780 = vsel %vm280, %v467, %v799
      %v1781 = vsel %vm280, %v468, %v801
      %v1782 = vsel %vm280, %v469, %v803
      %v1783 = vsel %vm280, %v470, %v805
      %v1784 = vsel %vm280, %v471, %v807
      %v1785 = vsel %vm280, %v472, %v809
      %v1786 = vsel %vm280, %v473, %v811
      %v1787 = vsel %vm280, %v474, %v813
      %v1788 = vsel %vm280, %v475, %v815
      %v1789 = vsel %vm280, %v476, %v817
      %v1790 = vsel %vm280, %v477, %v819
      %v1791 = vsel %vm280, %v478, %v821
      %v1792 = vsel %vm280, %v479, %v823
      %v1793 = vsel %vm280, %v480, %v825
      %v1794 = vsel %vm280, %v481, %v827
      %v1795 = vsel %vm280, %v482, %v829
      %v1796 = vsel %vm280, %v483, %v831
      %v1797 = vsel %vm280, %v484, %v833
      %v1798 = vsel %vm280, %v485, %v835
      %v1799 = vsel %vm280, %v486, %v837
      %v1800 = vsel %vm280, %v487, %v839
      %v1801 = vsel %vm280, %v488, %v841
      %vm1802 = vcmask 64512
      %v1803 = vsel %vm1802, %v1770, %v907
      %v1804 = vsel %vm1802, %v1771, %v909
      %v1805 = vsel %vm1802, %v1772, %v911
      %v1806 = vsel %vm1802, %v1773, %v913
      %v1807 = vsel %vm1802, %v1774, %v915
      %v1808 = vsel %vm1802, %v1775, %v917
      %v1809 = vsel %vm1802, %v1776, %v919
      %v1810 = vsel %vm1802, %v1777, %v921
      %v1811 = vsel %vm1802, %v1778, %v923
      %v1812 = vsel %vm1802, %v1779, %v925
      %v1813 = vsel %vm1802, %v1780, %v927
      %v1814 = vsel %vm1802, %v1781, %v929
      %v1815 = vsel %vm1802, %v1782, %v931
      %v1816 = vsel %vm1802, %v1783, %v933
      %v1817 = vsel %vm1802, %v1784, %v935
      %v1818 = vsel %vm1802, %v1785, %v937
      %v1819 = vsel %vm1802, %v1786, %v939
      %v1820 = vsel %vm1802, %v1787, %v941
      %v1821 = vsel %vm1802, %v1788, %v943
      %v1822 = vsel %vm1802, %v1789, %v945
      %v1823 = vsel %vm1802, %v1790, %v947
      %v1824 = vsel %vm1802, %v1791, %v949
      %v1825 = vsel %vm1802, %v1792, %v951
      %v1826 = vsel %vm1802, %v1793, %v953
      %v1827 = vsel %vm1802, %v1794, %v955
      %v1828 = vsel %vm1802, %v1795, %v957
      %v1829 = vsel %vm1802, %v1796, %v959
      %v1830 = vsel %vm1802, %v1797, %v961
      %v1831 = vsel %vm1802, %v1798, %v963
      %v1832 = vsel %vm1802, %v1799, %v965
      %v1833 = vsel %vm1802, %v1800, %v967
      %v1834 = vsel %vm1802, %v1801, %v969
      %vm1835 = vcmask 97280
      %v1836 = vsel %vm1835, %v1803, %v1035
      %v1837 = vsel %vm1835, %v1804, %v1037
      %v1838 = vsel %vm1835, %v1805, %v1039
      %v1839 = vsel %vm1835, %v1806, %v1041
      %v1840 = vsel %vm1835, %v1807, %v1043
      %v1841 = vsel %vm1835, %v1808, %v1045
      %v1842 = vsel %vm1835, %v1809, %v1047
      %v1843 = vsel %vm1835, %v1810, %v1049
      %v1844 = vsel %vm1835, %v1811, %v1051
      %v1845 = vsel %vm1835, %v1812, %v1053
      %v1846 = vsel %vm1835, %v1813, %v1055
      %v1847 = vsel %vm1835, %v1814, %v1057
      %v1848 = vsel %vm1835, %v1815, %v1059
      %v1849 = vsel %vm1835, %v1816, %v1061
      %v1850 = vsel %vm1835, %v1817, %v1063
      %v1851 = vsel %vm1835, %v1818, %v1065
      %v1852 = vsel %vm1835, %v1819, %v1067
      %v1853 = vsel %vm1835, %v1820, %v1069
      %v1854 = vsel %vm1835, %v1821, %v1071
      %v1855 = vsel %vm1835, %v1822, %v1073
      %v1856 = vsel %vm1835, %v1823, %v1075
      %v1857 = vsel %vm1835, %v1824, %v1077
      %v1858 = vsel %vm1835, %v1825, %v1079
      %v1859 = vsel %vm1835, %v1826, %v1081
      %v1860 = vsel %vm1835, %v1827, %v1083
      %v1861 = vsel %vm1835, %v1828, %v1085
      %v1862 = vsel %vm1835, %v1829, %v1087
      %v1863 = vsel %vm1835, %v1830, %v1089
      %v1864 = vsel %vm1835, %v1831, %v1091
      %v1865 = vsel %vm1835, %v1832, %v1093
      %v1866 = vsel %vm1835, %v1833, %v1095
      %v1867 = vsel %vm1835, %v1834, %v1097
      %vm1868 = vcmask 130048
      %v1869 = vsel %vm1868, %v1836, %v1163
      %v1870 = vsel %vm1868, %v1837, %v1165
      %v1871 = vsel %vm1868, %v1838, %v1167
      %v1872 = vsel %vm1868, %v1839, %v1169
      %v1873 = vsel %vm1868, %v1840, %v1171
      %v1874 = vsel %vm1868, %v1841, %v1173
      %v1875 = vsel %vm1868, %v1842, %v1175
      %v1876 = vsel %vm1868, %v1843, %v1177
      %v1877 = vsel %vm1868, %v1844, %v1179
      %v1878 = vsel %vm1868, %v1845, %v1181
      %v1879 = vsel %vm1868, %v1846, %v1183
      %v1880 = vsel %vm1868, %v1847, %v1185
      %v1881 = vsel %vm1868, %v1848, %v1187
      %v1882 = vsel %vm1868, %v1849, %v1189
      %v1883 = vsel %vm1868, %v1850, %v1191
      %v1884 = vsel %vm1868, %v1851, %v1193
      %v1885 = vsel %vm1868, %v1852, %v1195
      %v1886 = vsel %vm1868, %v1853, %v1197
      %v1887 = vsel %vm1868, %v1854, %v1199
      %v1888 = vsel %vm1868, %v1855, %v1201
      %v1889 = vsel %vm1868, %v1856, %v1203
      %v1890 = vsel %vm1868, %v1857, %v1205
      %v1891 = vsel %vm1868, %v1858, %v1207
      %v1892 = vsel %vm1868, %v1859, %v1209
      %v1893 = vsel %vm1868, %v1860, %v1211
      %v1894 = vsel %vm1868, %v1861, %v1213
      %v1895 = vsel %vm1868, %v1862, %v1215
      %v1896 = vsel %vm1868, %v1863, %v1217
      %v1897 = vsel %vm1868, %v1864, %v1219
      %v1898 = vsel %vm1868, %v1865, %v1221
      %v1899 = vsel %vm1868, %v1866, %v1223
      %v1900 = vsel %vm1868, %v1867, %v1225
      %vm1901 = vcmask 162816
      %v1902 = vsel %vm1901, %v1869, %v1291
      %v1903 = vsel %vm1901, %v1870, %v1293
      %v1904 = vsel %vm1901, %v1871, %v1295
      %v1905 = vsel %vm1901, %v1872, %v1297
      %v1906 = vsel %vm1901, %v1873, %v1299
      %v1907 = vsel %vm1901, %v1874, %v1301
      %v1908 = vsel %vm1901, %v1875, %v1303
      %v1909 = vsel %vm1901, %v1876, %v1305
      %v1910 = vsel %vm1901, %v1877, %v1307
      %v1911 = vsel %vm1901, %v1878, %v1309
      %v1912 = vsel %vm1901, %v1879, %v1311
      %v1913 = vsel %vm1901, %v1880, %v1313
      %v1914 = vsel %vm1901, %v1881, %v1315
      %v1915 = vsel %vm1901, %v1882, %v1317
      %v1916 = vsel %vm1901, %v1883, %v1319
      %v1917 = vsel %vm1901, %v1884, %v1321
      %v1918 = vsel %vm1901, %v1885, %v1323
      %v1919 = vsel %vm1901, %v1886, %v1325
      %v1920 = vsel %vm1901, %v1887, %v1327
      %v1921 = vsel %vm1901, %v1888, %v1329
      %v1922 = vsel %vm1901, %v1889, %v1331
      %v1923 = vsel %vm1901, %v1890, %v1333
      %v1924 = vsel %vm1901, %v1891, %v1335
      %v1925 = vsel %vm1901, %v1892, %v1337
      %v1926 = vsel %vm1901, %v1893, %v1339
      %v1927 = vsel %vm1901, %v1894, %v1341
      %v1928 = vsel %vm1901, %v1895, %v1343
      %v1929 = vsel %vm1901, %v1896, %v1345
      %v1930 = vsel %vm1901, %v1897, %v1347
      %v1931 = vsel %vm1901, %v1898, %v1349
      %v1932 = vsel %vm1901, %v1899, %v1351
      %v1933 = vsel %vm1901, %v1900, %v1353
      %vm1934 = vcmask 195584
      %v1935 = vsel %vm1934, %v1902, %v1419
      %v1936 = vsel %vm1934, %v1903, %v1421
      %v1937 = vsel %vm1934, %v1904, %v1423
      %v1938 = vsel %vm1934, %v1905, %v1425
      %v1939 = vsel %vm1934, %v1906, %v1427
      %v1940 = vsel %vm1934, %v1907, %v1429
      %v1941 = vsel %vm1934, %v1908, %v1431
      %v1942 = vsel %vm1934, %v1909, %v1433
      %v1943 = vsel %vm1934, %v1910, %v1435
      %v1944 = vsel %vm1934, %v1911, %v1437
      %v1945 = vsel %vm1934, %v1912, %v1439
      %v1946 = vsel %vm1934, %v1913, %v1441
      %v1947 = vsel %vm1934, %v1914, %v1443
      %v1948 = vsel %vm1934, %v1915, %v1445
      %v1949 = vsel %vm1934, %v1916, %v1447
      %v1950 = vsel %vm1934, %v1917, %v1449
      %v1951 = vsel %vm1934, %v1918, %v1451
      %v1952 = vsel %vm1934, %v1919, %v1453
      %v1953 = vsel %vm1934, %v1920, %v1455
      %v1954 = vsel %vm1934, %v1921, %v1457
      %v1955 = vsel %vm1934, %v1922, %v1459
      %v1956 = vsel %vm1934, %v1923, %v1461
      %v1957 = vsel %vm1934, %v1924, %v1463
      %v1958 = vsel %vm1934, %v1925, %v1465
      %v1959 = vsel %vm1934, %v1926, %v1467
      %v1960 = vsel %vm1934, %v1927, %v1469
      %v1961 = vsel %vm1934, %v1928, %v1471
      %v1962 = vsel %vm1934, %v1929, %v1473
      %v1963 = vsel %vm1934, %v1930, %v1475
      %v1964 = vsel %vm1934, %v1931, %v1477
      %v1965 = vsel %vm1934, %v1932, %v1479
      %v1966 = vsel %vm1934, %v1933, %v1481
      %vm1967 = vcmask 228352
      %v1968 = vsel %vm1967, %v1935, %v1547
      %v1969 = vsel %vm1967, %v1936, %v1549
      %v1970 = vsel %vm1967, %v1937, %v1551
      %v1971 = vsel %vm1967, %v1938, %v1553
      %v1972 = vsel %vm1967, %v1939, %v1555
      %v1973 = vsel %vm1967, %v1940, %v1557
      %v1974 = vsel %vm1967, %v1941, %v1559
      %v1975 = vsel %vm1967, %v1942, %v1561
      %v1976 = vsel %vm1967, %v1943, %v1563
      %v1977 = vsel %vm1967, %v1944, %v1565
      %v1978 = vsel %vm1967, %v1945, %v1567
      %v1979 = vsel %vm1967, %v1946, %v1569
      %v1980 = vsel %vm1967, %v1947, %v1571
      %v1981 = vsel %vm1967, %v1948, %v1573
      %v1982 = vsel %vm1967, %v1949, %v1575
      %v1983 = vsel %vm1967, %v1950, %v1577
      %v1984 = vsel %vm1967, %v1951, %v1579
      %v1985 = vsel %vm1967, %v1952, %v1581
      %v1986 = vsel %vm1967, %v1953, %v1583
      %v1987 = vsel %vm1967, %v1954, %v1585
      %v1988 = vsel %vm1967, %v1955, %v1587
      %v1989 = vsel %vm1967, %v1956, %v1589
      %v1990 = vsel %vm1967, %v1957, %v1591
      %v1991 = vsel %vm1967, %v1958, %v1593
      %v1992 = vsel %vm1967, %v1959, %v1595
      %v1993 = vsel %vm1967, %v1960, %v1597
      %v1994 = vsel %vm1967, %v1961, %v1599
      %v1995 = vsel %vm1967, %v1962, %v1601
      %v1996 = vsel %vm1967, %v1963, %v1603
      %v1997 = vsel %vm1967, %v1964, %v1605
      %v1998 = vsel %vm1967, %v1965, %v1607
      %v1999 = vsel %vm1967, %v1966, %v1609
      %v2000 = vsel %vm336, %v1968, %v1675
      %v2001 = vsel %vm336, %v1969, %v1677
      %v2002 = vsel %vm336, %v1970, %v1679
      %v2003 = vsel %vm336, %v1971, %v1681
      %v2004 = vsel %vm336, %v1972, %v1683
      %v2005 = vsel %vm336, %v1973, %v1685
      %v2006 = vsel %vm336, %v1974, %v1687
      %v2007 = vsel %vm336, %v1975, %v1689
      %v2008 = vsel %vm336, %v1976, %v1691
      %v2009 = vsel %vm336, %v1977, %v1693
      %v2010 = vsel %vm336, %v1978, %v1695
      %v2011 = vsel %vm336, %v1979, %v1697
      %v2012 = vsel %vm336, %v1980, %v1699
      %v2013 = vsel %vm336, %v1981, %v1701
      %v2014 = vsel %vm336, %v1982, %v1703
      %v2015 = vsel %vm336, %v1983, %v1705
      %v2016 = vsel %vm336, %v1984, %v1707
      %v2017 = vsel %vm336, %v1985, %v1709
      %v2018 = vsel %vm336, %v1986, %v1711
      %v2019 = vsel %vm336, %v1987, %v1713
      %v2020 = vsel %vm336, %v1988, %v1715
      %v2021 = vsel %vm336, %v1989, %v1717
      %v2022 = vsel %vm336, %v1990, %v1719
      %v2023 = vsel %vm336, %v1991, %v1721
      %v2024 = vsel %vm336, %v1992, %v1723
      %v2025 = vsel %vm336, %v1993, %v1725
      %v2026 = vsel %vm336, %v1994, %v1727
      %v2027 = vsel %vm336, %v1995, %v1729
      %v2028 = vsel %vm336, %v1996, %v1731
      %v2029 = vsel %vm336, %v1997, %v1733
      %v2030 = vsel %vm336, %v1998, %v1735
      %v2031 = vsel %vm336, %v1999, %v1737
      %v2032 = vpack.c.bf16 %v2001, %v2000
      %v2033 = vpack.c.bf16 %v2003, %v2002
      %v2034 = vpack.c.bf16 %v2005, %v2004
      %v2035 = vpack.c.bf16 %v2007, %v2006
      %v2036 = vpack.c.bf16 %v2009, %v2008
      %v2037 = vpack.c.bf16 %v2011, %v2010
      %v2038 = vpack.c.bf16 %v2013, %v2012
      %v2039 = vpack.c.bf16 %v2015, %v2014
      %v2040 = vpack.c.bf16 %v2017, %v2016
      %v2041 = vpack.c.bf16 %v2019, %v2018
      %v2042 = vpack.c.bf16 %v2021, %v2020
      %v2043 = vpack.c.bf16 %v2023, %v2022
      %v2044 = vpack.c.bf16 %v2025, %v2024
      %v2045 = vpack.c.bf16 %v2027, %v2026
      %v2046 = vpack.c.bf16 %v2029, %v2028
      %v2047 = vpack.c.bf16 %v2031, %v2030
      %v2048 = vld [vmem:[%s1] sm:$0xf]
      %v2049 = vld [vmem:[%s1 + $0x4] sm:$0xf]
      %v2050 = vld [vmem:[%s1 + $0x8] sm:$0xf]
      %v2051 = vld [vmem:[%s1 + $0xc] sm:$0xf]
      %v2052 = vld [vmem:[%s1 + $0x10] sm:$0x3]
      %v2053 = vld [vmem:[%s2] sm:$0x1]
      %v2055 = vperm.slane %v2053, 0
      %v2062 = vunpack.c.l.b16 %v2048
      %v2063 = vunpack.c.l.b16 %v2049
      %v2064 = vunpack.c.l.b16 %v2050
      %v2065 = vunpack.c.l.b16 %v2051
      %v2066 = vunpack.c.l.b16 %v2052
      %v2067 = vpack.c.b16 %v2063, %v2062
      %v2068 = vpack.c.b16 %v2065, %v2064
      %v2069 = vpack.c.b16 %v2066, %v2066
      %vm2072 = vcmask 293888
      %v2074 = vsel %vm2072, %v2032, 0
      %v2077 = vsel %vm2072, %v2033, 0
      %v2080 = vsel %vm2072, %v2034, 0
      %v2083 = vsel %vm2072, %v2035, 0
      %v2086 = vsel %vm2072, %v2036, 0
      %v2089 = vsel %vm2072, %v2037, 0
      %v2092 = vsel %vm2072, %v2038, 0
      %v2095 = vsel %vm2072, %v2039, 0
      %v2098 = vsel %vm2072, %v2040, 0
      %v2101 = vsel %vm2072, %v2041, 0
      %v2104 = vsel %vm2072, %v2042, 0
      %v2107 = vsel %vm2072, %v2043, 0
      %v2110 = vsel %vm2072, %v2044, 0
      %v2113 = vsel %vm2072, %v2045, 0
      %v2116 = vsel %vm2072, %v2046, 0
      %v2119 = vsel %vm2072, %v2047, 0
      %vm2121 = vcmask 1041408
      %v2123 = vsel %vm2121, %v2069, 0
      %2125 = vmatpush.bf16.msra.mxu0 0
      %2126 = vmatpush.bf16.msra.mxu0 0
      %2127 = vmatpush.bf16.msra.mxu0 0
      %2128 = vmatpush.bf16.msra.mxu0 0
      %2129 = vmatpush.bf16.msra.mxu0 0
      %2130 = vmatpush.bf16.msra.mxu0 %v2123
      %2131 = vmatpush.bf16.msra.mxu0 %v2068
      %2132 = vmatpush.bf16.msra.mxu0 %v2067
      %2133 = vmatmul.bf16.gmra.mxu0 %v2074
      %v2134 = vpop.f32.mrf.mxu0
      %v2135 = vadd.f32 %v2055, %v2134
      %v2136 = vpop.f32.mrf.mxu0
      %v2137 = vadd.f32 %v2055, %v2136
      %2138 = vmatmul.bf16.gmra.mxu0 %v2077
      %v2139 = vpop.f32.mrf.mxu0
      %v2140 = vadd.f32 %v2055, %v2139
      %v2141 = vpop.f32.mrf.mxu0
      %v2142 = vadd.f32 %v2055, %v2141
      %2143 = vmatmul.bf16.gmra.mxu0 %v2080
      %v2144 = vpop.f32.mrf.mxu0
      %v2145 = vadd.f32 %v2055, %v2144
      %v2146 = vpop.f32.mrf.mxu0
      %v2147 = vadd.f32 %v2055, %v2146
      %2148 = vmatmul.bf16.gmra.mxu0 %v2083
      %v2149 = vpop.f32.mrf.mxu0
      %v2150 = vadd.f32 %v2055, %v2149
      %v2151 = vpop.f32.mrf.mxu0
      %v2152 = vadd.f32 %v2055, %v2151
      %2153 = vmatmul.bf16.gmra.mxu0 %v2086
      %v2154 = vpop.f32.mrf.mxu0
      %v2155 = vadd.f32 %v2055, %v2154
      %v2156 = vpop.f32.mrf.mxu0
      %v2157 = vadd.f32 %v2055, %v2156
      %2158 = vmatmul.bf16.gmra.mxu0 %v2089
      %v2159 = vpop.f32.mrf.mxu0
      %v2160 = vadd.f32 %v2055, %v2159
      %v2161 = vpop.f32.mrf.mxu0
      %v2162 = vadd.f32 %v2055, %v2161
      %2163 = vmatmul.bf16.gmra.mxu0 %v2092
      %v2164 = vpop.f32.mrf.mxu0
      %v2165 = vadd.f32 %v2055, %v2164
      %v2166 = vpop.f32.mrf.mxu0
      %v2167 = vadd.f32 %v2055, %v2166
      %2168 = vmatmul.bf16.gmra.mxu0 %v2095
      %v2169 = vpop.f32.mrf.mxu0
      %v2170 = vadd.f32 %v2055, %v2169
      %v2171 = vpop.f32.mrf.mxu0
      %v2172 = vadd.f32 %v2055, %v2171
      %2173 = vmatmul.bf16.gmra.mxu0 %v2098
      %v2174 = vpop.f32.mrf.mxu0
      %v2175 = vadd.f32 %v2055, %v2174
      %v2176 = vpop.f32.mrf.mxu0
      %v2177 = vadd.f32 %v2055, %v2176
      %2178 = vmatmul.bf16.gmra.mxu0 %v2101
      %v2179 = vpop.f32.mrf.mxu0
      %v2180 = vadd.f32 %v2055, %v2179
      %v2181 = vpop.f32.mrf.mxu0
      %v2182 = vadd.f32 %v2055, %v2181
      %2183 = vmatmul.bf16.gmra.mxu0 %v2104
      %v2184 = vpop.f32.mrf.mxu0
      %v2185 = vadd.f32 %v2055, %v2184
      %v2186 = vpop.f32.mrf.mxu0
      %v2187 = vadd.f32 %v2055, %v2186
      %2188 = vmatmul.bf16.gmra.mxu0 %v2107
      %v2189 = vpop.f32.mrf.mxu0
      %v2190 = vadd.f32 %v2055, %v2189
      %v2191 = vpop.f32.mrf.mxu0
      %v2192 = vadd.f32 %v2055, %v2191
      %2193 = vmatmul.bf16.gmra.mxu0 %v2110
      %v2194 = vpop.f32.mrf.mxu0
      %v2195 = vadd.f32 %v2055, %v2194
      %v2196 = vpop.f32.mrf.mxu0
      %v2197 = vadd.f32 %v2055, %v2196
      %2198 = vmatmul.bf16.gmra.mxu0 %v2113
      %v2199 = vpop.f32.mrf.mxu0
      %v2200 = vadd.f32 %v2055, %v2199
      %v2201 = vpop.f32.mrf.mxu0
      %v2202 = vadd.f32 %v2055, %v2201
      %2203 = vmatmul.bf16.gmra.mxu0 %v2116
      %v2204 = vpop.f32.mrf.mxu0
      %v2205 = vadd.f32 %v2055, %v2204
      %v2206 = vpop.f32.mrf.mxu0
      %v2207 = vadd.f32 %v2055, %v2206
      %2208 = vmatmul.bf16.gmra.mxu0 %v2119
      %v2209 = vpop.f32.mrf.mxu0
      %v2210 = vadd.f32 %v2055, %v2209
      %v2211 = vpop.f32.mrf.mxu0
      %v2212 = vadd.f32 %v2055, %v2211
      %2213 = vdwg.mxu0
      %v2214 = vmax.f32 %v2135, 0.0
      %v2215 = vmax.f32 %v2137, 0.0
      %v2216 = vmax.f32 %v2140, 0.0
      %v2217 = vmax.f32 %v2142, 0.0
      %v2218 = vmax.f32 %v2145, 0.0
      %v2219 = vmax.f32 %v2147, 0.0
      %v2220 = vmax.f32 %v2150, 0.0
      %v2221 = vmax.f32 %v2152, 0.0
      %v2222 = vmax.f32 %v2155, 0.0
      %v2223 = vmax.f32 %v2157, 0.0
      %v2224 = vmax.f32 %v2160, 0.0
      %v2225 = vmax.f32 %v2162, 0.0
      %v2226 = vmax.f32 %v2165, 0.0
      %v2227 = vmax.f32 %v2167, 0.0
      %v2228 = vmax.f32 %v2170, 0.0
      %v2229 = vmax.f32 %v2172, 0.0
      %v2230 = vmax.f32 %v2175, 0.0
      %v2231 = vmax.f32 %v2177, 0.0
      %v2232 = vmax.f32 %v2180, 0.0
      %v2233 = vmax.f32 %v2182, 0.0
      %v2234 = vmax.f32 %v2185, 0.0
      %v2235 = vmax.f32 %v2187, 0.0
      %v2236 = vmax.f32 %v2190, 0.0
      %v2237 = vmax.f32 %v2192, 0.0
      %v2238 = vmax.f32 %v2195, 0.0
      %v2239 = vmax.f32 %v2197, 0.0
      %v2240 = vmax.f32 %v2200, 0.0
      %v2241 = vmax.f32 %v2202, 0.0
      %v2242 = vmax.f32 %v2205, 0.0
      %v2243 = vmax.f32 %v2207, 0.0
      %v2244 = vmax.f32 %v2210, 0.0
      %v2245 = vmax.f32 %v2212, 0.0
      %s2246 = scalar_lea.vmem [#allocation3], 24
      %2247 = vst.msk [vmem:[%s2246 + $0x1] sm:$0xff] %vm336, %v2214
      %2248 = vst.msk [vmem:[%s2246 + $0x9] sm:$0xff] %vm336, %v2215
      %2249 = vst.msk [vmem:[%s2246 + $0x19] sm:$0xff] %vm336, %v2216
      %2250 = vst.msk [vmem:[%s2246 + $0x21] sm:$0xff] %vm336, %v2217
      %2251 = vst.msk [vmem:[%s2246 + $0x31] sm:$0xff] %vm336, %v2218
      %2252 = vst.msk [vmem:[%s2246 + $0x39] sm:$0xff] %vm336, %v2219
      %2253 = vst.msk [vmem:[%s2246 + $0x49] sm:$0xff] %vm336, %v2220
      %2254 = vst.msk [vmem:[%s2246 + $0x51] sm:$0xff] %vm336, %v2221
      %2255 = vst.msk [vmem:[%s2246 + $0x61] sm:$0xff] %vm336, %v2222
      %2256 = vst.msk [vmem:[%s2246 + $0x69] sm:$0xff] %vm336, %v2223
      %2257 = vst.msk [vmem:[%s2246 + $0x79] sm:$0xff] %vm336, %v2224
      %2258 = vst.msk [vmem:[%s2246 + $0x81] sm:$0xff] %vm336, %v2225
      %2259 = vst.msk [vmem:[%s2246 + $0x91] sm:$0xff] %vm336, %v2226
      %2260 = vst.msk [vmem:[%s2246 + $0x99] sm:$0xff] %vm336, %v2227
      %2261 = vst.msk [vmem:[%s2246 + $0xa9] sm:$0xff] %vm336, %v2228
      %2262 = vst.msk [vmem:[%s2246 + $0xb1] sm:$0xff] %vm336, %v2229
      %2263 = vst.msk [vmem:[%s2246 + $0xc1] sm:$0xff] %vm336, %v2230
      %2264 = vst.msk [vmem:[%s2246 + $0xc9] sm:$0xff] %vm336, %v2231
      %2265 = vst.msk [vmem:[%s2246 + $0xd9] sm:$0xff] %vm336, %v2232
      %2266 = vst.msk [vmem:[%s2246 + $0xe1] sm:$0xff] %vm336, %v2233
      %2267 = vst.msk [vmem:[%s2246 + $0xf1] sm:$0xff] %vm336, %v2234
      %2268 = vst.msk [vmem:[%s2246 + $0xf9] sm:$0xff] %vm336, %v2235
      %2269 = vst.msk [vmem:[%s2246 + $0x109] sm:$0xff] %vm336, %v2236
      %2270 = vst.msk [vmem:[%s2246 + $0x111] sm:$0xff] %vm336, %v2237
      %2271 = vst.msk [vmem:[%s2246 + $0x121] sm:$0xff] %vm336, %v2238
      %2272 = vst.msk [vmem:[%s2246 + $0x129] sm:$0xff] %vm336, %v2239
      %2273 = vst.msk [vmem:[%s2246 + $0x139] sm:$0xff] %vm336, %v2240
      %2274 = vst.msk [vmem:[%s2246 + $0x141] sm:$0xff] %vm336, %v2241
      %2275 = vst.msk [vmem:[%s2246 + $0x151] sm:$0xff] %vm336, %v2242
      %2276 = vst.msk [vmem:[%s2246 + $0x159] sm:$0xff] %vm336, %v2243
      %2277 = vst.msk [vmem:[%s2246 + $0x169] sm:$0xff] %vm336, %v2244
      %2278 = vst.msk [vmem:[%s2246 + $0x171] sm:$0xff] %vm336, %v2245
      %v2279 = vld [vmem:[#allocation3] sm:$0xff]
      %v2280 = vld [vmem:[#allocation3 + $0x8] sm:$0xff]
      %v2281 = vld [vmem:[#allocation3 + $0x18] sm:$0xff]
      %v2282 = vld [vmem:[#allocation3 + $0x20] sm:$0xff]
      %v2283 = vld [vmem:[#allocation3 + $0x30] sm:$0xff]
      %v2284 = vld [vmem:[#allocation3 + $0x38] sm:$0xff]
      %v2285 = vld [vmem:[#allocation3 + $0x48] sm:$0xff]
      %v2286 = vld [vmem:[#allocation3 + $0x50] sm:$0xff]
      %v2287 = vld [vmem:[#allocation3 + $0x60] sm:$0xff]
      %v2288 = vld [vmem:[#allocation3 + $0x68] sm:$0xff]
      %v2289 = vld [vmem:[#allocation3 + $0x78] sm:$0xff]
      %v2290 = vld [vmem:[#allocation3 + $0x80] sm:$0xff]
      %v2291 = vld [vmem:[#allocation3 + $0x90] sm:$0xff]
      %v2292 = vld [vmem:[#allocation3 + $0x98] sm:$0xff]
      %v2293 = vld [vmem:[#allocation3 + $0xa8] sm:$0xff]
      %v2294 = vld [vmem:[#allocation3 + $0xb0] sm:$0xff]
      %v2295 = vld [vmem:[#allocation3 + $0xc0] sm:$0xff]
      %v2296 = vld [vmem:[#allocation3 + $0xc8] sm:$0xff]
      %v2297 = vld [vmem:[#allocation3 + $0xd8] sm:$0xff]
      %v2298 = vld [vmem:[#allocation3 + $0xe0] sm:$0xff]
      %v2299 = vld [vmem:[#allocation3 + $0xf0] sm:$0xff]
      %v2300 = vld [vmem:[#allocation3 + $0xf8] sm:$0xff]
      %v2301 = vld [vmem:[#allocation3 + $0x108] sm:$0xff]
      %v2302 = vld [vmem:[#allocation3 + $0x110] sm:$0xff]
      %v2303 = vld [vmem:[#allocation3 + $0x120] sm:$0xff]
      %v2304 = vld [vmem:[#allocation3 + $0x128] sm:$0xff]
      %v2305 = vld [vmem:[#allocation3 + $0x138] sm:$0xff]
      %v2306 = vld [vmem:[#allocation3 + $0x140] sm:$0xff]
      %v2307 = vld [vmem:[#allocation3 + $0x150] sm:$0xff]
      %v2308 = vld [vmem:[#allocation3 + $0x158] sm:$0xff]
      %v2309 = vld [vmem:[#allocation3 + $0x168] sm:$0xff]
      %v2310 = vld [vmem:[#allocation3 + $0x170] sm:$0xff]
      %v2311 = vld [vmem:[#allocation3 + $0x1] sm:$0xff]
      %v2312 = vld [vmem:[#allocation3 + $0x9] sm:$0xff]
      %v2313 = vld [vmem:[#allocation3 + $0x19] sm:$0xff]
      %v2314 = vld [vmem:[#allocation3 + $0x21] sm:$0xff]
      %v2315 = vld [vmem:[#allocation3 + $0x31] sm:$0xff]
      %v2316 = vld [vmem:[#allocation3 + $0x39] sm:$0xff]
      %v2317 = vld [vmem:[#allocation3 + $0x49] sm:$0xff]
      %v2318 = vld [vmem:[#allocation3 + $0x51] sm:$0xff]
      %v2319 = vld [vmem:[#allocation3 + $0x61] sm:$0xff]
      %v2320 = vld [vmem:[#allocation3 + $0x69] sm:$0xff]
      %v2321 = vld [vmem:[#allocation3 + $0x79] sm:$0xff]
      %v2322 = vld [vmem:[#allocation3 + $0x81] sm:$0xff]
      %v2323 = vld [vmem:[#allocation3 + $0x91] sm:$0xff]
      %v2324 = vld [vmem:[#allocation3 + $0x99] sm:$0xff]
      %v2325 = vld [vmem:[#allocation3 + $0xa9] sm:$0xff]
      %v2326 = vld [vmem:[#allocation3 + $0xb1] sm:$0xff]
      %v2327 = vld [vmem:[#allocation3 + $0xc1] sm:$0xff]
      %v2328 = vld [vmem:[#allocation3 + $0xc9] sm:$0xff]
      %v2329 = vld [vmem:[#allocation3 + $0xd9] sm:$0xff]
      %v2330 = vld [vmem:[#allocation3 + $0xe1] sm:$0xff]
      %v2331 = vld [vmem:[#allocation3 + $0xf1] sm:$0xff]
      %v2332 = vld [vmem:[#allocation3 + $0xf9] sm:$0xff]
      %v2333 = vld [vmem:[#allocation3 + $0x109] sm:$0xff]
      %v2334 = vld [vmem:[#allocation3 + $0x111] sm:$0xff]
      %v2335 = vld [vmem:[#allocation3 + $0x121] sm:$0xff]
      %v2336 = vld [vmem:[#allocation3 + $0x129] sm:$0xff]
      %v2337 = vld [vmem:[#allocation3 + $0x139] sm:$0xff]
      %v2338 = vld [vmem:[#allocation3 + $0x141] sm:$0xff]
      %v2339 = vld [vmem:[#allocation3 + $0x151] sm:$0xff]
      %v2340 = vld [vmem:[#allocation3 + $0x159] sm:$0xff]
      %v2341 = vld [vmem:[#allocation3 + $0x169] sm:$0xff]
      %v2342 = vld [vmem:[#allocation3 + $0x171] sm:$0xff]
      %v2343 = vld [vmem:[#allocation3 + $0x2] sm:$0xff]
      %v2344 = vld [vmem:[#allocation3 + $0xa] sm:$0xff]
      %v2345 = vld [vmem:[#allocation3 + $0x1a] sm:$0xff]
      %v2346 = vld [vmem:[#allocation3 + $0x22] sm:$0xff]
      %v2347 = vld [vmem:[#allocation3 + $0x32] sm:$0xff]
      %v2348 = vld [vmem:[#allocation3 + $0x3a] sm:$0xff]
      %v2349 = vld [vmem:[#allocation3 + $0x4a] sm:$0xff]
      %v2350 = vld [vmem:[#allocation3 + $0x52] sm:$0xff]
      %v2351 = vld [vmem:[#allocation3 + $0x62] sm:$0xff]
      %v2352 = vld [vmem:[#allocation3 + $0x6a] sm:$0xff]
      %v2353 = vld [vmem:[#allocation3 + $0x7a] sm:$0xff]
      %v2354 = vld [vmem:[#allocation3 + $0x82] sm:$0xff]
      %v2355 = vld [vmem:[#allocation3 + $0x92] sm:$0xff]
      %v2356 = vld [vmem:[#allocation3 + $0x9a] sm:$0xff]
      %v2357 = vld [vmem:[#allocation3 + $0xaa] sm:$0xff]
      %v2358 = vld [vmem:[#allocation3 + $0xb2] sm:$0xff]
      %v2359 = vld [vmem:[#allocation3 + $0xc2] sm:$0xff]
      %v2360 = vld [vmem:[#allocation3 + $0xca] sm:$0xff]
      %v2361 = vld [vmem:[#allocation3 + $0xda] sm:$0xff]
      %v2362 = vld [vmem:[#allocation3 + $0xe2] sm:$0xff]
      %v2363 = vld [vmem:[#allocation3 + $0xf2] sm:$0xff]
      %v2364 = vld [vmem:[#allocation3 + $0xfa] sm:$0xff]
      %v2365 = vld [vmem:[#allocation3 + $0x10a] sm:$0xff]
      %v2366 = vld [vmem:[#allocation3 + $0x112] sm:$0xff]
      %v2367 = vld [vmem:[#allocation3 + $0x122] sm:$0xff]
      %v2368 = vld [vmem:[#allocation3 + $0x12a] sm:$0xff]
      %v2369 = vld [vmem:[#allocation3 + $0x13a] sm:$0xff]
      %v2370 = vld [vmem:[#allocation3 + $0x142] sm:$0xff]
      %v2371 = vld [vmem:[#allocation3 + $0x152] sm:$0xff]
      %v2372 = vld [vmem:[#allocation3 + $0x15a] sm:$0xff]
      %v2373 = vld [vmem:[#allocation3 + $0x16a] sm:$0xff]
      %v2374 = vld [vmem:[#allocation3 + $0x172] sm:$0xff]
      %v2375 = vld [vmem:[%s2246] sm:$0xff]
      %v2376 = vld [vmem:[%s2246 + $0x8] sm:$0xff]
      %v2377 = vld [vmem:[%s2246 + $0x18] sm:$0xff]
      %v2378 = vld [vmem:[%s2246 + $0x20] sm:$0xff]
      %v2379 = vld [vmem:[%s2246 + $0x30] sm:$0xff]
      %v2380 = vld [vmem:[%s2246 + $0x38] sm:$0xff]
      %v2381 = vld [vmem:[%s2246 + $0x48] sm:$0xff]
      %v2382 = vld [vmem:[%s2246 + $0x50] sm:$0xff]
      %v2383 = vld [vmem:[%s2246 + $0x60] sm:$0xff]
      %v2384 = vld [vmem:[%s2246 + $0x68] sm:$0xff]
      %v2385 = vld [vmem:[%s2246 + $0x78] sm:$0xff]
      %v2386 = vld [vmem:[%s2246 + $0x80] sm:$0xff]
      %v2387 = vld [vmem:[%s2246 + $0x90] sm:$0xff]
      %v2388 = vld [vmem:[%s2246 + $0x98] sm:$0xff]
      %v2389 = vld [vmem:[%s2246 + $0xa8] sm:$0xff]
      %v2390 = vld [vmem:[%s2246 + $0xb0] sm:$0xff]
      %v2391 = vld [vmem:[%s2246 + $0xc0] sm:$0xff]
      %v2392 = vld [vmem:[%s2246 + $0xc8] sm:$0xff]
      %v2393 = vld [vmem:[%s2246 + $0xd8] sm:$0xff]
      %v2394 = vld [vmem:[%s2246 + $0xe0] sm:$0xff]
      %v2395 = vld [vmem:[%s2246 + $0xf0] sm:$0xff]
      %v2396 = vld [vmem:[%s2246 + $0xf8] sm:$0xff]
      %v2397 = vld [vmem:[%s2246 + $0x108] sm:$0xff]
      %v2398 = vld [vmem:[%s2246 + $0x110] sm:$0xff]
      %v2399 = vld [vmem:[%s2246 + $0x120] sm:$0xff]
      %v2400 = vld [vmem:[%s2246 + $0x128] sm:$0xff]
      %v2401 = vld [vmem:[%s2246 + $0x138] sm:$0xff]
      %v2402 = vld [vmem:[%s2246 + $0x140] sm:$0xff]
      %v2403 = vld [vmem:[%s2246 + $0x150] sm:$0xff]
      %v2404 = vld [vmem:[%s2246 + $0x158] sm:$0xff]
      %v2405 = vld [vmem:[%s2246 + $0x168] sm:$0xff]
      %v2406 = vld [vmem:[%s2246 + $0x170] sm:$0xff]
      %v2407 = vld [vmem:[%s2246 + $0x1] sm:$0xff]
      %v2408 = vld [vmem:[%s2246 + $0x9] sm:$0xff]
      %v2409 = vld [vmem:[%s2246 + $0x19] sm:$0xff]
      %v2410 = vld [vmem:[%s2246 + $0x21] sm:$0xff]
      %v2411 = vld [vmem:[%s2246 + $0x31] sm:$0xff]
      %v2412 = vld [vmem:[%s2246 + $0x39] sm:$0xff]
      %v2413 = vld [vmem:[%s2246 + $0x49] sm:$0xff]
      %v2414 = vld [vmem:[%s2246 + $0x51] sm:$0xff]
      %v2415 = vld [vmem:[%s2246 + $0x61] sm:$0xff]
      %v2416 = vld [vmem:[%s2246 + $0x69] sm:$0xff]
      %v2417 = vld [vmem:[%s2246 + $0x79] sm:$0xff]
      %v2418 = vld [vmem:[%s2246 + $0x81] sm:$0xff]
      %v2419 = vld [vmem:[%s2246 + $0x91] sm:$0xff]
      %v2420 = vld [vmem:[%s2246 + $0x99] sm:$0xff]
      %v2421 = vld [vmem:[%s2246 + $0xa9] sm:$0xff]
      %v2422 = vld [vmem:[%s2246 + $0xb1] sm:$0xff]
      %v2423 = vld [vmem:[%s2246 + $0xc1] sm:$0xff]
      %v2424 = vld [vmem:[%s2246 + $0xc9] sm:$0xff]
      %v2425 = vld [vmem:[%s2246 + $0xd9] sm:$0xff]
      %v2426 = vld [vmem:[%s2246 + $0xe1] sm:$0xff]
      %v2427 = vld [vmem:[%s2246 + $0xf1] sm:$0xff]
      %v2428 = vld [vmem:[%s2246 + $0xf9] sm:$0xff]
      %v2429 = vld [vmem:[%s2246 + $0x109] sm:$0xff]
      %v2430 = vld [vmem:[%s2246 + $0x111] sm:$0xff]
      %v2431 = vld [vmem:[%s2246 + $0x121] sm:$0xff]
      %v2432 = vld [vmem:[%s2246 + $0x129] sm:$0xff]
      %v2433 = vld [vmem:[%s2246 + $0x139] sm:$0xff]
      %v2434 = vld [vmem:[%s2246 + $0x141] sm:$0xff]
      %v2435 = vld [vmem:[%s2246 + $0x151] sm:$0xff]
      %v2436 = vld [vmem:[%s2246 + $0x159] sm:$0xff]
      %v2437 = vld [vmem:[%s2246 + $0x169] sm:$0xff]
      %v2438 = vld [vmem:[%s2246 + $0x171] sm:$0xff]
      %v2439 = vld [vmem:[%s2246 + $0x2] sm:$0xff]
      %v2440 = vld [vmem:[%s2246 + $0xa] sm:$0xff]
      %v2441 = vld [vmem:[%s2246 + $0x1a] sm:$0xff]
      %v2442 = vld [vmem:[%s2246 + $0x22] sm:$0xff]
      %v2443 = vld [vmem:[%s2246 + $0x32] sm:$0xff]
      %v2444 = vld [vmem:[%s2246 + $0x3a] sm:$0xff]
      %v2445 = vld [vmem:[%s2246 + $0x4a] sm:$0xff]
      %v2446 = vld [vmem:[%s2246 + $0x52] sm:$0xff]
      %v2447 = vld [vmem:[%s2246 + $0x62] sm:$0xff]
      %v2448 = vld [vmem:[%s2246 + $0x6a] sm:$0xff]
      %v2449 = vld [vmem:[%s2246 + $0x7a] sm:$0xff]
      %v2450 = vld [vmem:[%s2246 + $0x82] sm:$0xff]
      %v2451 = vld [vmem:[%s2246 + $0x92] sm:$0xff]
      %v2452 = vld [vmem:[%s2246 + $0x9a] sm:$0xff]
      %v2453 = vld [vmem:[%s2246 + $0xaa] sm:$0xff]
      %v2454 = vld [vmem:[%s2246 + $0xb2] sm:$0xff]
      %v2455 = vld [vmem:[%s2246 + $0xc2] sm:$0xff]
      %v2456 = vld [vmem:[%s2246 + $0xca] sm:$0xff]
      %v2457 = vld [vmem:[%s2246 + $0xda] sm:$0xff]
      %v2458 = vld [vmem:[%s2246 + $0xe2] sm:$0xff]
      %v2459 = vld [vmem:[%s2246 + $0xf2] sm:$0xff]
      %v2460 = vld [vmem:[%s2246 + $0xfa] sm:$0xff]
      %v2461 = vld [vmem:[%s2246 + $0x10a] sm:$0xff]
      %v2462 = vld [vmem:[%s2246 + $0x112] sm:$0xff]
      %v2463 = vld [vmem:[%s2246 + $0x122] sm:$0xff]
      %v2464 = vld [vmem:[%s2246 + $0x12a] sm:$0xff]
      %v2465 = vld [vmem:[%s2246 + $0x13a] sm:$0xff]
      %v2466 = vld [vmem:[%s2246 + $0x142] sm:$0xff]
      %v2467 = vld [vmem:[%s2246 + $0x152] sm:$0xff]
      %v2468 = vld [vmem:[%s2246 + $0x15a] sm:$0xff]
      %v2469 = vld [vmem:[%s2246 + $0x16a] sm:$0xff]
      %v2470 = vld [vmem:[%s2246 + $0x172] sm:$0xff]
      %s2471 = scalar_lea.vmem [#allocation3], 48
      %v2472 = vld [vmem:[%s2471] sm:$0xff]
      %v2473 = vld [vmem:[%s2471 + $0x8] sm:$0xff]
      %v2474 = vld [vmem:[%s2471 + $0x18] sm:$0xff]
      %v2475 = vld [vmem:[%s2471 + $0x20] sm:$0xff]
      %v2476 = vld [vmem:[%s2471 + $0x30] sm:$0xff]
      %v2477 = vld [vmem:[%s2471 + $0x38] sm:$0xff]
      %v2478 = vld [vmem:[%s2471 + $0x48] sm:$0xff]
      %v2479 = vld [vmem:[%s2471 + $0x50] sm:$0xff]
      %v2480 = vld [vmem:[%s2471 + $0x60] sm:$0xff]
      %v2481 = vld [vmem:[%s2471 + $0x68] sm:$0xff]
      %v2482 = vld [vmem:[%s2471 + $0x78] sm:$0xff]
      %v2483 = vld [vmem:[%s2471 + $0x80] sm:$0xff]
      %v2484 = vld [vmem:[%s2471 + $0x90] sm:$0xff]
      %v2485 = vld [vmem:[%s2471 + $0x98] sm:$0xff]
      %v2486 = vld [vmem:[%s2471 + $0xa8] sm:$0xff]
      %v2487 = vld [vmem:[%s2471 + $0xb0] sm:$0xff]
      %v2488 = vld [vmem:[%s2471 + $0xc0] sm:$0xff]
      %v2489 = vld [vmem:[%s2471 + $0xc8] sm:$0xff]
      %v2490 = vld [vmem:[%s2471 + $0xd8] sm:$0xff]
      %v2491 = vld [vmem:[%s2471 + $0xe0] sm:$0xff]
      %v2492 = vld [vmem:[%s2471 + $0xf0] sm:$0xff]
      %v2493 = vld [vmem:[%s2471 + $0xf8] sm:$0xff]
      %v2494 = vld [vmem:[%s2471 + $0x108] sm:$0xff]
      %v2495 = vld [vmem:[%s2471 + $0x110] sm:$0xff]
      %v2496 = vld [vmem:[%s2471 + $0x120] sm:$0xff]
      %v2497 = vld [vmem:[%s2471 + $0x128] sm:$0xff]
      %v2498 = vld [vmem:[%s2471 + $0x138] sm:$0xff]
      %v2499 = vld [vmem:[%s2471 + $0x140] sm:$0xff]
      %v2500 = vld [vmem:[%s2471 + $0x150] sm:$0xff]
      %v2501 = vld [vmem:[%s2471 + $0x158] sm:$0xff]
      %v2502 = vld [vmem:[%s2471 + $0x168] sm:$0xff]
      %v2503 = vld [vmem:[%s2471 + $0x170] sm:$0xff]
      %v2504 = vld [vmem:[%s2471 + $0x1] sm:$0xff]
      %v2505 = vld [vmem:[%s2471 + $0x9] sm:$0xff]
      %v2506 = vld [vmem:[%s2471 + $0x19] sm:$0xff]
      %v2507 = vld [vmem:[%s2471 + $0x21] sm:$0xff]
      %v2508 = vld [vmem:[%s2471 + $0x31] sm:$0xff]
      %v2509 = vld [vmem:[%s2471 + $0x39] sm:$0xff]
      %v2510 = vld [vmem:[%s2471 + $0x49] sm:$0xff]
      %v2511 = vld [vmem:[%s2471 + $0x51] sm:$0xff]
      %v2512 = vld [vmem:[%s2471 + $0x61] sm:$0xff]
      %v2513 = vld [vmem:[%s2471 + $0x69] sm:$0xff]
      %v2514 = vld [vmem:[%s2471 + $0x79] sm:$0xff]
      %v2515 = vld [vmem:[%s2471 + $0x81] sm:$0xff]
      %v2516 = vld [vmem:[%s2471 + $0x91] sm:$0xff]
      %v2517 = vld [vmem:[%s2471 + $0x99] sm:$0xff]
      %v2518 = vld [vmem:[%s2471 + $0xa9] sm:$0xff]
      %v2519 = vld [vmem:[%s2471 + $0xb1] sm:$0xff]
      %v2520 = vld [vmem:[%s2471 + $0xc1] sm:$0xff]
      %v2521 = vld [vmem:[%s2471 + $0xc9] sm:$0xff]
      %v2522 = vld [vmem:[%s2471 + $0xd9] sm:$0xff]
      %v2523 = vld [vmem:[%s2471 + $0xe1] sm:$0xff]
      %v2524 = vld [vmem:[%s2471 + $0xf1] sm:$0xff]
      %v2525 = vld [vmem:[%s2471 + $0xf9] sm:$0xff]
      %v2526 = vld [vmem:[%s2471 + $0x109] sm:$0xff]
      %v2527 = vld [vmem:[%s2471 + $0x111] sm:$0xff]
      %v2528 = vld [vmem:[%s2471 + $0x121] sm:$0xff]
      %v2529 = vld [vmem:[%s2471 + $0x129] sm:$0xff]
      %v2530 = vld [vmem:[%s2471 + $0x139] sm:$0xff]
      %v2531 = vld [vmem:[%s2471 + $0x141] sm:$0xff]
      %v2532 = vld [vmem:[%s2471 + $0x151] sm:$0xff]
      %v2533 = vld [vmem:[%s2471 + $0x159] sm:$0xff]
      %v2534 = vld [vmem:[%s2471 + $0x169] sm:$0xff]
      %v2535 = vld [vmem:[%s2471 + $0x171] sm:$0xff]
      %v2536 = vld [vmem:[%s2471 + $0x2] sm:$0xff]
      %v2537 = vld [vmem:[%s2471 + $0xa] sm:$0xff]
      %v2538 = vld [vmem:[%s2471 + $0x1a] sm:$0xff]
      %v2539 = vld [vmem:[%s2471 + $0x22] sm:$0xff]
      %v2540 = vld [vmem:[%s2471 + $0x32] sm:$0xff]
      %v2541 = vld [vmem:[%s2471 + $0x3a] sm:$0xff]
      %v2542 = vld [vmem:[%s2471 + $0x4a] sm:$0xff]
      %v2543 = vld [vmem:[%s2471 + $0x52] sm:$0xff]
      %v2544 = vld [vmem:[%s2471 + $0x62] sm:$0xff]
      %v2545 = vld [vmem:[%s2471 + $0x6a] sm:$0xff]
      %v2546 = vld [vmem:[%s2471 + $0x7a] sm:$0xff]
      %v2547 = vld [vmem:[%s2471 + $0x82] sm:$0xff]
      %v2548 = vld [vmem:[%s2471 + $0x92] sm:$0xff]
      %v2549 = vld [vmem:[%s2471 + $0x9a] sm:$0xff]
      %v2550 = vld [vmem:[%s2471 + $0xaa] sm:$0xff]
      %v2551 = vld [vmem:[%s2471 + $0xb2] sm:$0xff]
      %v2552 = vld [vmem:[%s2471 + $0xc2] sm:$0xff]
      %v2553 = vld [vmem:[%s2471 + $0xca] sm:$0xff]
      %v2554 = vld [vmem:[%s2471 + $0xda] sm:$0xff]
      %v2555 = vld [vmem:[%s2471 + $0xe2] sm:$0xff]
      %v2556 = vld [vmem:[%s2471 + $0xf2] sm:$0xff]
      %v2557 = vld [vmem:[%s2471 + $0xfa] sm:$0xff]
      %v2558 = vld [vmem:[%s2471 + $0x10a] sm:$0xff]
      %v2559 = vld [vmem:[%s2471 + $0x112] sm:$0xff]
      %v2560 = vld [vmem:[%s2471 + $0x122] sm:$0xff]
      %v2561 = vld [vmem:[%s2471 + $0x12a] sm:$0xff]
      %v2562 = vld [vmem:[%s2471 + $0x13a] sm:$0xff]
      %v2563 = vld [vmem:[%s2471 + $0x142] sm:$0xff]
      %v2564 = vld [vmem:[%s2471 + $0x152] sm:$0xff]
      %v2565 = vld [vmem:[%s2471 + $0x15a] sm:$0xff]
      %v2566 = vld [vmem:[%s2471 + $0x16a] sm:$0xff]
      %v2567 = vld [vmem:[%s2471 + $0x172] sm:$0xff]
      %2600 = vrot.lane.b32.xlu0 %v2311, 32
      %v2601 = vpop.permute.xlu0 %2600
      %2602 = vrot.lane.b32.xlu0 %v2312, 32
      %v2603 = vpop.permute.xlu0 %2602
      %2604 = vrot.lane.b32.xlu0 %v2313, 32
      %v2605 = vpop.permute.xlu0 %2604
      %2606 = vrot.lane.b32.xlu0 %v2314, 32
      %v2607 = vpop.permute.xlu0 %2606
      %2608 = vrot.lane.b32.xlu0 %v2315, 32
      %v2609 = vpop.permute.xlu0 %2608
      %2610 = vrot.lane.b32.xlu0 %v2316, 32
      %v2611 = vpop.permute.xlu0 %2610
      %2612 = vrot.lane.b32.xlu0 %v2317, 32
      %v2613 = vpop.permute.xlu0 %2612
      %2614 = vrot.lane.b32.xlu0 %v2318, 32
      %v2615 = vpop.permute.xlu0 %2614
      %2616 = vrot.lane.b32.xlu0 %v2319, 32
      %v2617 = vpop.permute.xlu0 %2616
      %2618 = vrot.lane.b32.xlu0 %v2320, 32
      %v2619 = vpop.permute.xlu0 %2618
      %2620 = vrot.lane.b32.xlu0 %v2321, 32
      %v2621 = vpop.permute.xlu0 %2620
      %2622 = vrot.lane.b32.xlu0 %v2322, 32
      %v2623 = vpop.permute.xlu0 %2622
      %2624 = vrot.lane.b32.xlu0 %v2323, 32
      %v2625 = vpop.permute.xlu0 %2624
      %2626 = vrot.lane.b32.xlu0 %v2324, 32
      %v2627 = vpop.permute.xlu0 %2626
      %2628 = vrot.lane.b32.xlu0 %v2325, 32
      %v2629 = vpop.permute.xlu0 %2628
      %2630 = vrot.lane.b32.xlu0 %v2326, 32
      %v2631 = vpop.permute.xlu0 %2630
      %2632 = vrot.lane.b32.xlu0 %v2327, 32
      %v2633 = vpop.permute.xlu0 %2632
      %2634 = vrot.lane.b32.xlu0 %v2328, 32
      %v2635 = vpop.permute.xlu0 %2634
      %2636 = vrot.lane.b32.xlu0 %v2329, 32
      %v2637 = vpop.permute.xlu0 %2636
      %2638 = vrot.lane.b32.xlu0 %v2330, 32
      %v2639 = vpop.permute.xlu0 %2638
      %2640 = vrot.lane.b32.xlu0 %v2331, 32
      %v2641 = vpop.permute.xlu0 %2640
      %2642 = vrot.lane.b32.xlu0 %v2332, 32
      %v2643 = vpop.permute.xlu0 %2642
      %2644 = vrot.lane.b32.xlu0 %v2333, 32
      %v2645 = vpop.permute.xlu0 %2644
      %2646 = vrot.lane.b32.xlu0 %v2334, 32
      %v2647 = vpop.permute.xlu0 %2646
      %2648 = vrot.lane.b32.xlu0 %v2335, 32
      %v2649 = vpop.permute.xlu0 %2648
      %2650 = vrot.lane.b32.xlu0 %v2336, 32
      %v2651 = vpop.permute.xlu0 %2650
      %2652 = vrot.lane.b32.xlu0 %v2337, 32
      %v2653 = vpop.permute.xlu0 %2652
      %2654 = vrot.lane.b32.xlu0 %v2338, 32
      %v2655 = vpop.permute.xlu0 %2654
      %2656 = vrot.lane.b32.xlu0 %v2339, 32
      %v2657 = vpop.permute.xlu0 %2656
      %2658 = vrot.lane.b32.xlu0 %v2340, 32
      %v2659 = vpop.permute.xlu0 %2658
      %2660 = vrot.lane.b32.xlu0 %v2341, 32
      %v2661 = vpop.permute.xlu0 %2660
      %2662 = vrot.lane.b32.xlu0 %v2342, 32
      %v2663 = vpop.permute.xlu0 %2662
      %2728 = vrot.lane.b32.xlu0 %v2343, 64
      %v2729 = vpop.permute.xlu0 %2728
      %2730 = vrot.lane.b32.xlu0 %v2344, 64
      %v2731 = vpop.permute.xlu0 %2730
      %2732 = vrot.lane.b32.xlu0 %v2345, 64
      %v2733 = vpop.permute.xlu0 %2732
      %2734 = vrot.lane.b32.xlu0 %v2346, 64
      %v2735 = vpop.permute.xlu0 %2734
      %2736 = vrot.lane.b32.xlu0 %v2347, 64
      %v2737 = vpop.permute.xlu0 %2736
      %2738 = vrot.lane.b32.xlu0 %v2348, 64
      %v2739 = vpop.permute.xlu0 %2738
      %2740 = vrot.lane.b32.xlu0 %v2349, 64
      %v2741 = vpop.permute.xlu0 %2740
      %2742 = vrot.lane.b32.xlu0 %v2350, 64
      %v2743 = vpop.permute.xlu0 %2742
      %2744 = vrot.lane.b32.xlu0 %v2351, 64
      %v2745 = vpop.permute.xlu0 %2744
      %2746 = vrot.lane.b32.xlu0 %v2352, 64
      %v2747 = vpop.permute.xlu0 %2746
      %2748 = vrot.lane.b32.xlu0 %v2353, 64
      %v2749 = vpop.permute.xlu0 %2748
      %2750 = vrot.lane.b32.xlu0 %v2354, 64
      %v2751 = vpop.permute.xlu0 %2750
      %2752 = vrot.lane.b32.xlu0 %v2355, 64
      %v2753 = vpop.permute.xlu0 %2752
      %2754 = vrot.lane.b32.xlu0 %v2356, 64
      %v2755 = vpop.permute.xlu0 %2754
      %2756 = vrot.lane.b32.xlu0 %v2357, 64
      %v2757 = vpop.permute.xlu0 %2756
      %2758 = vrot.lane.b32.xlu0 %v2358, 64
      %v2759 = vpop.permute.xlu0 %2758
      %2760 = vrot.lane.b32.xlu0 %v2359, 64
      %v2761 = vpop.permute.xlu0 %2760
      %2762 = vrot.lane.b32.xlu0 %v2360, 64
      %v2763 = vpop.permute.xlu0 %2762
      %2764 = vrot.lane.b32.xlu0 %v2361, 64
      %v2765 = vpop.permute.xlu0 %2764
      %2766 = vrot.lane.b32.xlu0 %v2362, 64
      %v2767 = vpop.permute.xlu0 %2766
      %2768 = vrot.lane.b32.xlu0 %v2363, 64
      %v2769 = vpop.permute.xlu0 %2768
      %2770 = vrot.lane.b32.xlu0 %v2364, 64
      %v2771 = vpop.permute.xlu0 %2770
      %2772 = vrot.lane.b32.xlu0 %v2365, 64
      %v2773 = vpop.permute.xlu0 %2772
      %2774 = vrot.lane.b32.xlu0 %v2366, 64
      %v2775 = vpop.permute.xlu0 %2774
      %2776 = vrot.lane.b32.xlu0 %v2367, 64
      %v2777 = vpop.permute.xlu0 %2776
      %2778 = vrot.lane.b32.xlu0 %v2368, 64
      %v2779 = vpop.permute.xlu0 %2778
      %2780 = vrot.lane.b32.xlu0 %v2369, 64
      %v2781 = vpop.permute.xlu0 %2780
      %2782 = vrot.lane.b32.xlu0 %v2370, 64
      %v2783 = vpop.permute.xlu0 %2782
      %2784 = vrot.lane.b32.xlu0 %v2371, 64
      %v2785 = vpop.permute.xlu0 %2784
      %2786 = vrot.lane.b32.xlu0 %v2372, 64
      %v2787 = vpop.permute.xlu0 %2786
      %2788 = vrot.lane.b32.xlu0 %v2373, 64
      %v2789 = vpop.permute.xlu0 %2788
      %2790 = vrot.lane.b32.xlu0 %v2374, 64
      %v2791 = vpop.permute.xlu0 %2790
      %2856 = vrot.lane.b32.xlu0 %v2375, 96
      %v2857 = vpop.permute.xlu0 %2856
      %2858 = vrot.lane.b32.xlu0 %v2376, 96
      %v2859 = vpop.permute.xlu0 %2858
      %2860 = vrot.lane.b32.xlu0 %v2377, 96
      %v2861 = vpop.permute.xlu0 %2860
      %2862 = vrot.lane.b32.xlu0 %v2378, 96
      %v2863 = vpop.permute.xlu0 %2862
      %2864 = vrot.lane.b32.xlu0 %v2379, 96
      %v2865 = vpop.permute.xlu0 %2864
      %2866 = vrot.lane.b32.xlu0 %v2380, 96
      %v2867 = vpop.permute.xlu0 %2866
      %2868 = vrot.lane.b32.xlu0 %v2381, 96
      %v2869 = vpop.permute.xlu0 %2868
      %2870 = vrot.lane.b32.xlu0 %v2382, 96
      %v2871 = vpop.permute.xlu0 %2870
      %2872 = vrot.lane.b32.xlu0 %v2383, 96
      %v2873 = vpop.permute.xlu0 %2872
      %2874 = vrot.lane.b32.xlu0 %v2384, 96
      %v2875 = vpop.permute.xlu0 %2874
      %2876 = vrot.lane.b32.xlu0 %v2385, 96
      %v2877 = vpop.permute.xlu0 %2876
      %2878 = vrot.lane.b32.xlu0 %v2386, 96
      %v2879 = vpop.permute.xlu0 %2878
      %2880 = vrot.lane.b32.xlu0 %v2387, 96
      %v2881 = vpop.permute.xlu0 %2880
      %2882 = vrot.lane.b32.xlu0 %v2388, 96
      %v2883 = vpop.permute.xlu0 %2882
      %2884 = vrot.lane.b32.xlu0 %v2389, 96
      %v2885 = vpop.permute.xlu0 %2884
      %2886 = vrot.lane.b32.xlu0 %v2390, 96
      %v2887 = vpop.permute.xlu0 %2886
      %2888 = vrot.lane.b32.xlu0 %v2391, 96
      %v2889 = vpop.permute.xlu0 %2888
      %2890 = vrot.lane.b32.xlu0 %v2392, 96
      %v2891 = vpop.permute.xlu0 %2890
      %2892 = vrot.lane.b32.xlu0 %v2393, 96
      %v2893 = vpop.permute.xlu0 %2892
      %2894 = vrot.lane.b32.xlu0 %v2394, 96
      %v2895 = vpop.permute.xlu0 %2894
      %2896 = vrot.lane.b32.xlu0 %v2395, 96
      %v2897 = vpop.permute.xlu0 %2896
      %2898 = vrot.lane.b32.xlu0 %v2396, 96
      %v2899 = vpop.permute.xlu0 %2898
      %2900 = vrot.lane.b32.xlu0 %v2397, 96
      %v2901 = vpop.permute.xlu0 %2900
      %2902 = vrot.lane.b32.xlu0 %v2398, 96
      %v2903 = vpop.permute.xlu0 %2902
      %2904 = vrot.lane.b32.xlu0 %v2399, 96
      %v2905 = vpop.permute.xlu0 %2904
      %2906 = vrot.lane.b32.xlu0 %v2400, 96
      %v2907 = vpop.permute.xlu0 %2906
      %2908 = vrot.lane.b32.xlu0 %v2401, 96
      %v2909 = vpop.permute.xlu0 %2908
      %2910 = vrot.lane.b32.xlu0 %v2402, 96
      %v2911 = vpop.permute.xlu0 %2910
      %2912 = vrot.lane.b32.xlu0 %v2403, 96
      %v2913 = vpop.permute.xlu0 %2912
      %2914 = vrot.lane.b32.xlu0 %v2404, 96
      %v2915 = vpop.permute.xlu0 %2914
      %2916 = vrot.lane.b32.xlu0 %v2405, 96
      %v2917 = vpop.permute.xlu0 %2916
      %2918 = vrot.lane.b32.xlu0 %v2406, 96
      %v2919 = vpop.permute.xlu0 %2918
      %2984 = vrot.lane.b32.xlu0 %v2439, 32
      %v2985 = vpop.permute.xlu0 %2984
      %2986 = vrot.lane.b32.xlu0 %v2440, 32
      %v2987 = vpop.permute.xlu0 %2986
      %2988 = vrot.lane.b32.xlu0 %v2441, 32
      %v2989 = vpop.permute.xlu0 %2988
      %2990 = vrot.lane.b32.xlu0 %v2442, 32
      %v2991 = vpop.permute.xlu0 %2990
      %2992 = vrot.lane.b32.xlu0 %v2443, 32
      %v2993 = vpop.permute.xlu0 %2992
      %2994 = vrot.lane.b32.xlu0 %v2444, 32
      %v2995 = vpop.permute.xlu0 %2994
      %2996 = vrot.lane.b32.xlu0 %v2445, 32
      %v2997 = vpop.permute.xlu0 %2996
      %2998 = vrot.lane.b32.xlu0 %v2446, 32
      %v2999 = vpop.permute.xlu0 %2998
      %3000 = vrot.lane.b32.xlu0 %v2447, 32
      %v3001 = vpop.permute.xlu0 %3000
      %3002 = vrot.lane.b32.xlu0 %v2448, 32
      %v3003 = vpop.permute.xlu0 %3002
      %3004 = vrot.lane.b32.xlu0 %v2449, 32
      %v3005 = vpop.permute.xlu0 %3004
      %3006 = vrot.lane.b32.xlu0 %v2450, 32
      %v3007 = vpop.permute.xlu0 %3006
      %3008 = vrot.lane.b32.xlu0 %v2451, 32
      %v3009 = vpop.permute.xlu0 %3008
      %3010 = vrot.lane.b32.xlu0 %v2452, 32
      %v3011 = vpop.permute.xlu0 %3010
      %3012 = vrot.lane.b32.xlu0 %v2453, 32
      %v3013 = vpop.permute.xlu0 %3012
      %3014 = vrot.lane.b32.xlu0 %v2454, 32
      %v3015 = vpop.permute.xlu0 %3014
      %3016 = vrot.lane.b32.xlu0 %v2455, 32
      %v3017 = vpop.permute.xlu0 %3016
      %3018 = vrot.lane.b32.xlu0 %v2456, 32
      %v3019 = vpop.permute.xlu0 %3018
      %3020 = vrot.lane.b32.xlu0 %v2457, 32
      %v3021 = vpop.permute.xlu0 %3020
      %3022 = vrot.lane.b32.xlu0 %v2458, 32
      %v3023 = vpop.permute.xlu0 %3022
      %3024 = vrot.lane.b32.xlu0 %v2459, 32
      %v3025 = vpop.permute.xlu0 %3024
      %3026 = vrot.lane.b32.xlu0 %v2460, 32
      %v3027 = vpop.permute.xlu0 %3026
      %3028 = vrot.lane.b32.xlu0 %v2461, 32
      %v3029 = vpop.permute.xlu0 %3028
      %3030 = vrot.lane.b32.xlu0 %v2462, 32
      %v3031 = vpop.permute.xlu0 %3030
      %3032 = vrot.lane.b32.xlu0 %v2463, 32
      %v3033 = vpop.permute.xlu0 %3032
      %3034 = vrot.lane.b32.xlu0 %v2464, 32
      %v3035 = vpop.permute.xlu0 %3034
      %3036 = vrot.lane.b32.xlu0 %v2465, 32
      %v3037 = vpop.permute.xlu0 %3036
      %3038 = vrot.lane.b32.xlu0 %v2466, 32
      %v3039 = vpop.permute.xlu0 %3038
      %3040 = vrot.lane.b32.xlu0 %v2467, 32
      %v3041 = vpop.permute.xlu0 %3040
      %3042 = vrot.lane.b32.xlu0 %v2468, 32
      %v3043 = vpop.permute.xlu0 %3042
      %3044 = vrot.lane.b32.xlu0 %v2469, 32
      %v3045 = vpop.permute.xlu0 %3044
      %3046 = vrot.lane.b32.xlu0 %v2470, 32
      %v3047 = vpop.permute.xlu0 %3046
      %3112 = vrot.lane.b32.xlu0 %v2472, 64
      %v3113 = vpop.permute.xlu0 %3112
      %3114 = vrot.lane.b32.xlu0 %v2473, 64
      %v3115 = vpop.permute.xlu0 %3114
      %3116 = vrot.lane.b32.xlu0 %v2474, 64
      %v3117 = vpop.permute.xlu0 %3116
      %3118 = vrot.lane.b32.xlu0 %v2475, 64
      %v3119 = vpop.permute.xlu0 %3118
      %3120 = vrot.lane.b32.xlu0 %v2476, 64
      %v3121 = vpop.permute.xlu0 %3120
      %3122 = vrot.lane.b32.xlu0 %v2477, 64
      %v3123 = vpop.permute.xlu0 %3122
      %3124 = vrot.lane.b32.xlu0 %v2478, 64
      %v3125 = vpop.permute.xlu0 %3124
      %3126 = vrot.lane.b32.xlu0 %v2479, 64
      %v3127 = vpop.permute.xlu0 %3126
      %3128 = vrot.lane.b32.xlu0 %v2480, 64
      %v3129 = vpop.permute.xlu0 %3128
      %3130 = vrot.lane.b32.xlu0 %v2481, 64
      %v3131 = vpop.permute.xlu0 %3130
      %3132 = vrot.lane.b32.xlu0 %v2482, 64
      %v3133 = vpop.permute.xlu0 %3132
      %3134 = vrot.lane.b32.xlu0 %v2483, 64
      %v3135 = vpop.permute.xlu0 %3134
      %3136 = vrot.lane.b32.xlu0 %v2484, 64
      %v3137 = vpop.permute.xlu0 %3136
      %3138 = vrot.lane.b32.xlu0 %v2485, 64
      %v3139 = vpop.permute.xlu0 %3138
      %3140 = vrot.lane.b32.xlu0 %v2486, 64
      %v3141 = vpop.permute.xlu0 %3140
      %3142 = vrot.lane.b32.xlu0 %v2487, 64
      %v3143 = vpop.permute.xlu0 %3142
      %3144 = vrot.lane.b32.xlu0 %v2488, 64
      %v3145 = vpop.permute.xlu0 %3144
      %3146 = vrot.lane.b32.xlu0 %v2489, 64
      %v3147 = vpop.permute.xlu0 %3146
      %3148 = vrot.lane.b32.xlu0 %v2490, 64
      %v3149 = vpop.permute.xlu0 %3148
      %3150 = vrot.lane.b32.xlu0 %v2491, 64
      %v3151 = vpop.permute.xlu0 %3150
      %3152 = vrot.lane.b32.xlu0 %v2492, 64
      %v3153 = vpop.permute.xlu0 %3152
      %3154 = vrot.lane.b32.xlu0 %v2493, 64
      %v3155 = vpop.permute.xlu0 %3154
      %3156 = vrot.lane.b32.xlu0 %v2494, 64
      %v3157 = vpop.permute.xlu0 %3156
      %3158 = vrot.lane.b32.xlu0 %v2495, 64
      %v3159 = vpop.permute.xlu0 %3158
      %3160 = vrot.lane.b32.xlu0 %v2496, 64
      %v3161 = vpop.permute.xlu0 %3160
      %3162 = vrot.lane.b32.xlu0 %v2497, 64
      %v3163 = vpop.permute.xlu0 %3162
      %3164 = vrot.lane.b32.xlu0 %v2498, 64
      %v3165 = vpop.permute.xlu0 %3164
      %3166 = vrot.lane.b32.xlu0 %v2499, 64
      %v3167 = vpop.permute.xlu0 %3166
      %3168 = vrot.lane.b32.xlu0 %v2500, 64
      %v3169 = vpop.permute.xlu0 %3168
      %3170 = vrot.lane.b32.xlu0 %v2501, 64
      %v3171 = vpop.permute.xlu0 %3170
      %3172 = vrot.lane.b32.xlu0 %v2502, 64
      %v3173 = vpop.permute.xlu0 %3172
      %3174 = vrot.lane.b32.xlu0 %v2503, 64
      %v3175 = vpop.permute.xlu0 %3174
      %3240 = vrot.lane.b32.xlu0 %v2504, 96
      %v3241 = vpop.permute.xlu0 %3240
      %3242 = vrot.lane.b32.xlu0 %v2505, 96
      %v3243 = vpop.permute.xlu0 %3242
      %3244 = vrot.lane.b32.xlu0 %v2506, 96
      %v3245 = vpop.permute.xlu0 %3244
      %3246 = vrot.lane.b32.xlu0 %v2507, 96
      %v3247 = vpop.permute.xlu0 %3246
      %3248 = vrot.lane.b32.xlu0 %v2508, 96
      %v3249 = vpop.permute.xlu0 %3248
      %3250 = vrot.lane.b32.xlu0 %v2509, 96
      %v3251 = vpop.permute.xlu0 %3250
      %3252 = vrot.lane.b32.xlu0 %v2510, 96
      %v3253 = vpop.permute.xlu0 %3252
      %3254 = vrot.lane.b32.xlu0 %v2511, 96
      %v3255 = vpop.permute.xlu0 %3254
      %3256 = vrot.lane.b32.xlu0 %v2512, 96
      %v3257 = vpop.permute.xlu0 %3256
      %3258 = vrot.lane.b32.xlu0 %v2513, 96
      %v3259 = vpop.permute.xlu0 %3258
      %3260 = vrot.lane.b32.xlu0 %v2514, 96
      %v3261 = vpop.permute.xlu0 %3260
      %3262 = vrot.lane.b32.xlu0 %v2515, 96
      %v3263 = vpop.permute.xlu0 %3262
      %3264 = vrot.lane.b32.xlu0 %v2516, 96
      %v3265 = vpop.permute.xlu0 %3264
      %3266 = vrot.lane.b32.xlu0 %v2517, 96
      %v3267 = vpop.permute.xlu0 %3266
      %3268 = vrot.lane.b32.xlu0 %v2518, 96
      %v3269 = vpop.permute.xlu0 %3268
      %3270 = vrot.lane.b32.xlu0 %v2519, 96
      %v3271 = vpop.permute.xlu0 %3270
      %3272 = vrot.lane.b32.xlu0 %v2520, 96
      %v3273 = vpop.permute.xlu0 %3272
      %3274 = vrot.lane.b32.xlu0 %v2521, 96
      %v3275 = vpop.permute.xlu0 %3274
      %3276 = vrot.lane.b32.xlu0 %v2522, 96
      %v3277 = vpop.permute.xlu0 %3276
      %3278 = vrot.lane.b32.xlu0 %v2523, 96
      %v3279 = vpop.permute.xlu0 %3278
      %3280 = vrot.lane.b32.xlu0 %v2524, 96
      %v3281 = vpop.permute.xlu0 %3280
      %3282 = vrot.lane.b32.xlu0 %v2525, 96
      %v3283 = vpop.permute.xlu0 %3282
      %3284 = vrot.lane.b32.xlu0 %v2526, 96
      %v3285 = vpop.permute.xlu0 %3284
      %3286 = vrot.lane.b32.xlu0 %v2527, 96
      %v3287 = vpop.permute.xlu0 %3286
      %3288 = vrot.lane.b32.xlu0 %v2528, 96
      %v3289 = vpop.permute.xlu0 %3288
      %3290 = vrot.lane.b32.xlu0 %v2529, 96
      %v3291 = vpop.permute.xlu0 %3290
      %3292 = vrot.lane.b32.xlu0 %v2530, 96
      %v3293 = vpop.permute.xlu0 %3292
      %3294 = vrot.lane.b32.xlu0 %v2531, 96
      %v3295 = vpop.permute.xlu0 %3294
      %3296 = vrot.lane.b32.xlu0 %v2532, 96
      %v3297 = vpop.permute.xlu0 %3296
      %3298 = vrot.lane.b32.xlu0 %v2533, 96
      %v3299 = vpop.permute.xlu0 %3298
      %3300 = vrot.lane.b32.xlu0 %v2534, 96
      %v3301 = vpop.permute.xlu0 %3300
      %3302 = vrot.lane.b32.xlu0 %v2535, 96
      %v3303 = vpop.permute.xlu0 %3302
      %v3336 = vsel %vm336, %v2279, %v2601
      %v3337 = vsel %vm336, %v2280, %v2603
      %v3338 = vsel %vm336, %v2281, %v2605
      %v3339 = vsel %vm336, %v2282, %v2607
      %v3340 = vsel %vm336, %v2283, %v2609
      %v3341 = vsel %vm336, %v2284, %v2611
      %v3342 = vsel %vm336, %v2285, %v2613
      %v3343 = vsel %vm336, %v2286, %v2615
      %v3344 = vsel %vm336, %v2287, %v2617
      %v3345 = vsel %vm336, %v2288, %v2619
      %v3346 = vsel %vm336, %v2289, %v2621
      %v3347 = vsel %vm336, %v2290, %v2623
      %v3348 = vsel %vm336, %v2291, %v2625
      %v3349 = vsel %vm336, %v2292, %v2627
      %v3350 = vsel %vm336, %v2293, %v2629
      %v3351 = vsel %vm336, %v2294, %v2631
      %v3352 = vsel %vm336, %v2295, %v2633
      %v3353 = vsel %vm336, %v2296, %v2635
      %v3354 = vsel %vm336, %v2297, %v2637
      %v3355 = vsel %vm336, %v2298, %v2639
      %v3356 = vsel %vm336, %v2299, %v2641
      %v3357 = vsel %vm336, %v2300, %v2643
      %v3358 = vsel %vm336, %v2301, %v2645
      %v3359 = vsel %vm336, %v2302, %v2647
      %v3360 = vsel %vm336, %v2303, %v2649
      %v3361 = vsel %vm336, %v2304, %v2651
      %v3362 = vsel %vm336, %v2305, %v2653
      %v3363 = vsel %vm336, %v2306, %v2655
      %v3364 = vsel %vm336, %v2307, %v2657
      %v3365 = vsel %vm336, %v2308, %v2659
      %v3366 = vsel %vm336, %v2309, %v2661
      %v3367 = vsel %vm336, %v2310, %v2663
      %vm3368 = vcmask 523264
      %v3369 = vsel %vm3368, %v3336, %v2729
      %v3370 = vsel %vm3368, %v3337, %v2731
      %v3371 = vsel %vm3368, %v3338, %v2733
      %v3372 = vsel %vm3368, %v3339, %v2735
      %v3373 = vsel %vm3368, %v3340, %v2737
      %v3374 = vsel %vm3368, %v3341, %v2739
      %v3375 = vsel %vm3368, %v3342, %v2741
      %v3376 = vsel %vm3368, %v3343, %v2743
      %v3377 = vsel %vm3368, %v3344, %v2745
      %v3378 = vsel %vm3368, %v3345, %v2747
      %v3379 = vsel %vm3368, %v3346, %v2749
      %v3380 = vsel %vm3368, %v3347, %v2751
      %v3381 = vsel %vm3368, %v3348, %v2753
      %v3382 = vsel %vm3368, %v3349, %v2755
      %v3383 = vsel %vm3368, %v3350, %v2757
      %v3384 = vsel %vm3368, %v3351, %v2759
      %v3385 = vsel %vm3368, %v3352, %v2761
      %v3386 = vsel %vm3368, %v3353, %v2763
      %v3387 = vsel %vm3368, %v3354, %v2765
      %v3388 = vsel %vm3368, %v3355, %v2767
      %v3389 = vsel %vm3368, %v3356, %v2769
      %v3390 = vsel %vm3368, %v3357, %v2771
      %v3391 = vsel %vm3368, %v3358, %v2773
      %v3392 = vsel %vm3368, %v3359, %v2775
      %v3393 = vsel %vm3368, %v3360, %v2777
      %v3394 = vsel %vm3368, %v3361, %v2779
      %v3395 = vsel %vm3368, %v3362, %v2781
      %v3396 = vsel %vm3368, %v3363, %v2783
      %v3397 = vsel %vm3368, %v3364, %v2785
      %v3398 = vsel %vm3368, %v3365, %v2787
      %v3399 = vsel %vm3368, %v3366, %v2789
      %v3400 = vsel %vm3368, %v3367, %v2791
      %vm3401 = vcmask 785408
      %v3402 = vsel %vm3401, %v3369, %v2857
      %v3403 = vsel %vm3401, %v3370, %v2859
      %v3404 = vsel %vm3401, %v3371, %v2861
      %v3405 = vsel %vm3401, %v3372, %v2863
      %v3406 = vsel %vm3401, %v3373, %v2865
      %v3407 = vsel %vm3401, %v3374, %v2867
      %v3408 = vsel %vm3401, %v3375, %v2869
      %v3409 = vsel %vm3401, %v3376, %v2871
      %v3410 = vsel %vm3401, %v3377, %v2873
      %v3411 = vsel %vm3401, %v3378, %v2875
      %v3412 = vsel %vm3401, %v3379, %v2877
      %v3413 = vsel %vm3401, %v3380, %v2879
      %v3414 = vsel %vm3401, %v3381, %v2881
      %v3415 = vsel %vm3401, %v3382, %v2883
      %v3416 = vsel %vm3401, %v3383, %v2885
      %v3417 = vsel %vm3401, %v3384, %v2887
      %v3418 = vsel %vm3401, %v3385, %v2889
      %v3419 = vsel %vm3401, %v3386, %v2891
      %v3420 = vsel %vm3401, %v3387, %v2893
      %v3421 = vsel %vm3401, %v3388, %v2895
      %v3422 = vsel %vm3401, %v3389, %v2897
      %v3423 = vsel %vm3401, %v3390, %v2899
      %v3424 = vsel %vm3401, %v3391, %v2901
      %v3425 = vsel %vm3401, %v3392, %v2903
      %v3426 = vsel %vm3401, %v3393, %v2905
      %v3427 = vsel %vm3401, %v3394, %v2907
      %v3428 = vsel %vm3401, %v3395, %v2909
      %v3429 = vsel %vm3401, %v3396, %v2911
      %v3430 = vsel %vm3401, %v3397, %v2913
      %v3431 = vsel %vm3401, %v3398, %v2915
      %v3432 = vsel %vm3401, %v3399, %v2917
      %v3433 = vsel %vm3401, %v3400, %v2919
      %v3434 = vsel %vm336, %v2407, %v2985
      %v3435 = vsel %vm336, %v2408, %v2987
      %v3436 = vsel %vm336, %v2409, %v2989
      %v3437 = vsel %vm336, %v2410, %v2991
      %v3438 = vsel %vm336, %v2411, %v2993
      %v3439 = vsel %vm336, %v2412, %v2995
      %v3440 = vsel %vm336, %v2413, %v2997
      %v3441 = vsel %vm336, %v2414, %v2999
      %v3442 = vsel %vm336, %v2415, %v3001
      %v3443 = vsel %vm336, %v2416, %v3003
      %v3444 = vsel %vm336, %v2417, %v3005
      %v3445 = vsel %vm336, %v2418, %v3007
      %v3446 = vsel %vm336, %v2419, %v3009
      %v3447 = vsel %vm336, %v2420, %v3011
      %v3448 = vsel %vm336, %v2421, %v3013
      %v3449 = vsel %vm336, %v2422, %v3015
      %v3450 = vsel %vm336, %v2423, %v3017
      %v3451 = vsel %vm336, %v2424, %v3019
      %v3452 = vsel %vm336, %v2425, %v3021
      %v3453 = vsel %vm336, %v2426, %v3023
      %v3454 = vsel %vm336, %v2427, %v3025
      %v3455 = vsel %vm336, %v2428, %v3027
      %v3456 = vsel %vm336, %v2429, %v3029
      %v3457 = vsel %vm336, %v2430, %v3031
      %v3458 = vsel %vm336, %v2431, %v3033
      %v3459 = vsel %vm336, %v2432, %v3035
      %v3460 = vsel %vm336, %v2433, %v3037
      %v3461 = vsel %vm336, %v2434, %v3039
      %v3462 = vsel %vm336, %v2435, %v3041
      %v3463 = vsel %vm336, %v2436, %v3043
      %v3464 = vsel %vm336, %v2437, %v3045
      %v3465 = vsel %vm336, %v2438, %v3047
      %v3466 = vsel %vm3368, %v3434, %v3113
      %v3467 = vsel %vm3368, %v3435, %v3115
      %v3468 = vsel %vm3368, %v3436, %v3117
      %v3469 = vsel %vm3368, %v3437, %v3119
      %v3470 = vsel %vm3368, %v3438, %v3121
      %v3471 = vsel %vm3368, %v3439, %v3123
      %v3472 = vsel %vm3368, %v3440, %v3125
      %v3473 = vsel %vm3368, %v3441, %v3127
      %v3474 = vsel %vm3368, %v3442, %v3129
      %v3475 = vsel %vm3368, %v3443, %v3131
      %v3476 = vsel %vm3368, %v3444, %v3133
      %v3477 = vsel %vm3368, %v3445, %v3135
      %v3478 = vsel %vm3368, %v3446, %v3137
      %v3479 = vsel %vm3368, %v3447, %v3139
      %v3480 = vsel %vm3368, %v3448, %v3141
      %v3481 = vsel %vm3368, %v3449, %v3143
      %v3482 = vsel %vm3368, %v3450, %v3145
      %v3483 = vsel %vm3368, %v3451, %v3147
      %v3484 = vsel %vm3368, %v3452, %v3149
      %v3485 = vsel %vm3368, %v3453, %v3151
      %v3486 = vsel %vm3368, %v3454, %v3153
      %v3487 = vsel %vm3368, %v3455, %v3155
      %v3488 = vsel %vm3368, %v3456, %v3157
      %v3489 = vsel %vm3368, %v3457, %v3159
      %v3490 = vsel %vm3368, %v3458, %v3161
      %v3491 = vsel %vm3368, %v3459, %v3163
      %v3492 = vsel %vm3368, %v3460, %v3165
      %v3493 = vsel %vm3368, %v3461, %v3167
      %v3494 = vsel %vm3368, %v3462, %v3169
      %v3495 = vsel %vm3368, %v3463, %v3171
      %v3496 = vsel %vm3368, %v3464, %v3173
      %v3497 = vsel %vm3368, %v3465, %v3175
      %v3498 = vsel %vm3401, %v3466, %v3241
      %v3499 = vsel %vm3401, %v3467, %v3243
      %v3500 = vsel %vm3401, %v3468, %v3245
      %v3501 = vsel %vm3401, %v3469, %v3247
      %v3502 = vsel %vm3401, %v3470, %v3249
      %v3503 = vsel %vm3401, %v3471, %v3251
      %v3504 = vsel %vm3401, %v3472, %v3253
      %v3505 = vsel %vm3401, %v3473, %v3255
      %v3506 = vsel %vm3401, %v3474, %v3257
      %v3507 = vsel %vm3401, %v3475, %v3259
      %v3508 = vsel %vm3401, %v3476, %v3261
      %v3509 = vsel %vm3401, %v3477, %v3263
      %v3510 = vsel %vm3401, %v3478, %v3265
      %v3511 = vsel %vm3401, %v3479, %v3267
      %v3512 = vsel %vm3401, %v3480, %v3269
      %v3513 = vsel %vm3401, %v3481, %v3271
      %v3514 = vsel %vm3401, %v3482, %v3273
      %v3515 = vsel %vm3401, %v3483, %v3275
      %v3516 = vsel %vm3401, %v3484, %v3277
      %v3517 = vsel %vm3401, %v3485, %v3279
      %v3518 = vsel %vm3401, %v3486, %v3281
      %v3519 = vsel %vm3401, %v3487, %v3283
      %v3520 = vsel %vm3401, %v3488, %v3285
      %v3521 = vsel %vm3401, %v3489, %v3287
      %v3522 = vsel %vm3401, %v3490, %v3289
      %v3523 = vsel %vm3401, %v3491, %v3291
      %v3524 = vsel %vm3401, %v3492, %v3293
      %v3525 = vsel %vm3401, %v3493, %v3295
      %v3526 = vsel %vm3401, %v3494, %v3297
      %v3527 = vsel %vm3401, %v3495, %v3299
      %v3528 = vsel %vm3401, %v3496, %v3301
      %v3529 = vsel %vm3401, %v3497, %v3303
      %v3530 = vpack.c.bf16 %v3403, %v3402
      %v3531 = vpack.c.bf16 %v3499, %v3498
      %v3532 = vpack.c.bf16 %v2537, %v2536
      %v3533 = vpack.c.bf16 %v3405, %v3404
      %v3534 = vpack.c.bf16 %v3501, %v3500
      %v3535 = vpack.c.bf16 %v2539, %v2538
      %v3536 = vpack.c.bf16 %v3407, %v3406
      %v3537 = vpack.c.bf16 %v3503, %v3502
      %v3538 = vpack.c.bf16 %v2541, %v2540
      %v3539 = vpack.c.bf16 %v3409, %v3408
      %v3540 = vpack.c.bf16 %v3505, %v3504
      %v3541 = vpack.c.bf16 %v2543, %v2542
      %v3542 = vpack.c.bf16 %v3411, %v3410
      %v3543 = vpack.c.bf16 %v3507, %v3506
      %v3544 = vpack.c.bf16 %v2545, %v2544
      %v3545 = vpack.c.bf16 %v3413, %v3412
      %v3546 = vpack.c.bf16 %v3509, %v3508
      %v3547 = vpack.c.bf16 %v2547, %v2546
      %v3548 = vpack.c.bf16 %v3415, %v3414
      %v3549 = vpack.c.bf16 %v3511, %v3510
      %v3550 = vpack.c.bf16 %v2549, %v2548
      %v3551 = vpack.c.bf16 %v3417, %v3416
      %v3552 = vpack.c.bf16 %v3513, %v3512
      %v3553 = vpack.c.bf16 %v2551, %v2550
      %v3554 = vpack.c.bf16 %v3419, %v3418
      %v3555 = vpack.c.bf16 %v3515, %v3514
      %v3556 = vpack.c.bf16 %v2553, %v2552
      %v3557 = vpack.c.bf16 %v3421, %v3420
      %v3558 = vpack.c.bf16 %v3517, %v3516
      %v3559 = vpack.c.bf16 %v2555, %v2554
      %v3560 = vpack.c.bf16 %v3423, %v3422
      %v3561 = vpack.c.bf16 %v3519, %v3518
      %v3562 = vpack.c.bf16 %v2557, %v2556
      %v3563 = vpack.c.bf16 %v3425, %v3424
      %v3564 = vpack.c.bf16 %v3521, %v3520
      %v3565 = vpack.c.bf16 %v2559, %v2558
      %v3566 = vpack.c.bf16 %v3427, %v3426
      %v3567 = vpack.c.bf16 %v3523, %v3522
      %v3568 = vpack.c.bf16 %v2561, %v2560
      %v3569 = vpack.c.bf16 %v3429, %v3428
      %v3570 = vpack.c.bf16 %v3525, %v3524
      %v3571 = vpack.c.bf16 %v2563, %v2562
      %v3572 = vpack.c.bf16 %v3431, %v3430
      %v3573 = vpack.c.bf16 %v3527, %v3526
      %v3574 = vpack.c.bf16 %v2565, %v2564
      %v3575 = vpack.c.bf16 %v3433, %v3432
      %v3576 = vpack.c.bf16 %v3529, %v3528
      %v3577 = vpack.c.bf16 %v2567, %v2566
      %v3578 = vld [vmem:[%s3] sm:$0xf]
      %v3579 = vld [vmem:[%s3 + $0x4] sm:$0xf]
      %v3580 = vld [vmem:[%s3 + $0x8] sm:$0xf]
      %v3581 = vld [vmem:[%s3 + $0xc] sm:$0xf]
      %v3582 = vld [vmem:[%s3 + $0x10] sm:$0xf]
      %v3583 = vld [vmem:[%s3 + $0x14] sm:$0xf]
      %v3584 = vld [vmem:[%s3 + $0x18] sm:$0xf]
      %v3585 = vld [vmem:[%s3 + $0x1c] sm:$0xf]
      %v3586 = vld [vmem:[%s3 + $0x20] sm:$0xf]
      %v3587 = vld [vmem:[%s3 + $0x24] sm:$0xf]
      %v3588 = vld [vmem:[%s3 + $0x28] sm:$0xf]
      %v3589 = vld [vmem:[%s3 + $0x2c] sm:$0xf]
      %v3590 = vld [vmem:[%s3 + $0x30] sm:$0xf]
      %v3591 = vld [vmem:[%s3 + $0x34] sm:$0xf]
      %v3592 = vld [vmem:[%s3 + $0x38] sm:$0xf]
      %v3593 = vld [vmem:[%s3 + $0x3c] sm:$0xf]
      %v3594 = vld [vmem:[%s3 + $0x40] sm:$0xf]
      %v3595 = vld [vmem:[%s3 + $0x44] sm:$0xf]
      %v3596 = vld [vmem:[%s3 + $0x48] sm:$0xf]
      %v3597 = vld [vmem:[%s3 + $0x4c] sm:$0xf]
      %v3598 = vld [vmem:[%s3 + $0x50] sm:$0xf]
      %v3599 = vld [vmem:[%s3 + $0x54] sm:$0xf]
      %v3600 = vld [vmem:[%s3 + $0x58] sm:$0xf]
      %v3601 = vld [vmem:[%s3 + $0x5c] sm:$0xf]
      %v3602 = vld [vmem:[%s3 + $0x60] sm:$0xf]
      %v3603 = vld [vmem:[%s3 + $0x64] sm:$0xf]
      %v3604 = vld [vmem:[%s3 + $0x68] sm:$0xf]
      %v3605 = vld [vmem:[%s3 + $0x6c] sm:$0xf]
      %v3606 = vld [vmem:[%s3 + $0x70] sm:$0xf]
      %v3607 = vld [vmem:[%s3 + $0x74] sm:$0xf]
      %v3608 = vld [vmem:[%s3 + $0x78] sm:$0xf]
      %v3609 = vld [vmem:[%s3 + $0x7c] sm:$0xf]
      %v3610 = vld [vmem:[%s3 + $0x80] sm:$0xf]
      %v3611 = vld [vmem:[%s3 + $0x84] sm:$0xf]
      %v3612 = vld [vmem:[%s3 + $0x88] sm:$0xf]
      %v3613 = vld [vmem:[%s3 + $0x8c] sm:$0xf]
      %v3614 = vld [vmem:[%s4] sm:$0x1]
      %v3616 = vperm.slane %v3614, 0
      %v3654 = vunpack.c.l.b16 %v3578
      %v3655 = vunpack.c.l.b16 %v3579
      %v3656 = vunpack.c.l.b16 %v3580
      %v3657 = vunpack.c.l.b16 %v3581
      %v3658 = vunpack.c.l.b16 %v3582
      %v3659 = vunpack.c.l.b16 %v3583
      %v3660 = vunpack.c.l.b16 %v3584
      %v3661 = vunpack.c.l.b16 %v3585
      %v3662 = vunpack.c.l.b16 %v3586
      %v3663 = vunpack.c.l.b16 %v3587
      %v3664 = vunpack.c.l.b16 %v3588
      %v3665 = vunpack.c.l.b16 %v3589
      %v3666 = vunpack.c.l.b16 %v3590
      %v3667 = vunpack.c.l.b16 %v3591
      %v3668 = vunpack.c.l.b16 %v3592
      %v3669 = vunpack.c.l.b16 %v3593
      %v3670 = vunpack.c.l.b16 %v3594
      %v3671 = vunpack.c.l.b16 %v3595
      %v3672 = vunpack.c.l.b16 %v3596
      %v3673 = vunpack.c.l.b16 %v3597
      %v3674 = vunpack.c.l.b16 %v3598
      %v3675 = vunpack.c.l.b16 %v3599
      %v3676 = vunpack.c.l.b16 %v3600
      %v3677 = vunpack.c.l.b16 %v3601
      %v3678 = vunpack.c.l.b16 %v3602
      %v3679 = vunpack.c.l.b16 %v3603
      %v3680 = vunpack.c.l.b16 %v3604
      %v3681 = vunpack.c.l.b16 %v3605
      %v3682 = vunpack.c.l.b16 %v3606
      %v3683 = vunpack.c.l.b16 %v3607
      %v3684 = vunpack.c.l.b16 %v3608
      %v3685 = vunpack.c.l.b16 %v3609
      %v3686 = vunpack.c.l.b16 %v3610
      %v3687 = vunpack.c.l.b16 %v3611
      %v3688 = vunpack.c.l.b16 %v3612
      %v3689 = vunpack.c.l.b16 %v3613
      %v3690 = vpack.c.b16 %v3655, %v3654
      %v3691 = vpack.c.b16 %v3657, %v3656
      %v3692 = vpack.c.b16 %v3659, %v3658
      %v3693 = vpack.c.b16 %v3661, %v3660
      %v3694 = vpack.c.b16 %v3663, %v3662
      %v3695 = vpack.c.b16 %v3665, %v3664
      %v3696 = vpack.c.b16 %v3667, %v3666
      %v3697 = vpack.c.b16 %v3669, %v3668
      %v3698 = vpack.c.b16 %v3671, %v3670
      %v3699 = vpack.c.b16 %v3673, %v3672
      %v3700 = vpack.c.b16 %v3675, %v3674
      %v3701 = vpack.c.b16 %v3677, %v3676
      %v3702 = vpack.c.b16 %v3679, %v3678
      %v3703 = vpack.c.b16 %v3681, %v3680
      %v3704 = vpack.c.b16 %v3683, %v3682
      %v3705 = vpack.c.b16 %v3685, %v3684
      %v3706 = vpack.c.b16 %v3687, %v3686
      %v3707 = vpack.c.b16 %v3689, %v3688
      %v3727 = vsel %vm336, %v3532, 0
      %v3730 = vsel %vm336, %v3535, 0
      %v3733 = vsel %vm336, %v3538, 0
      %v3736 = vsel %vm336, %v3541, 0
      %v3739 = vsel %vm336, %v3544, 0
      %v3742 = vsel %vm336, %v3547, 0
      %v3745 = vsel %vm336, %v3550, 0
      %v3748 = vsel %vm336, %v3553, 0
      %v3751 = vsel %vm336, %v3556, 0
      %v3754 = vsel %vm336, %v3559, 0
      %v3757 = vsel %vm336, %v3562, 0
      %v3760 = vsel %vm336, %v3565, 0
      %v3763 = vsel %vm336, %v3568, 0
      %v3766 = vsel %vm336, %v3571, 0
      %v3769 = vsel %vm336, %v3574, 0
      %v3772 = vsel %vm336, %v3577, 0
      %3774 = vmatpush.bf16.msra.mxu0 %v3697
      %3775 = vmatpush.bf16.msra.mxu0 %v3696
      %3776 = vmatpush.bf16.msra.mxu0 %v3695
      %3777 = vmatpush.bf16.msra.mxu0 %v3694
      %3778 = vmatpush.bf16.msra.mxu0 %v3693
      %3779 = vmatpush.bf16.msra.mxu0 %v3692
      %3780 = vmatpush.bf16.msra.mxu0 %v3691
      %3781 = vmatpush.bf16.msra.mxu0 %v3690
      %3782 = vmatmul.bf16.gmra.mxu0 %v3530
      %v3783 = vpop.f32.mrf.mxu0
      %v3784 = vadd.f32 %v3616, %v3783
      %v3785 = vpop.f32.mrf.mxu0
      %v3786 = vadd.f32 %v3616, %v3785
      %3787 = vmatmul.bf16.gmra.mxu0 %v3533
      %v3788 = vpop.f32.mrf.mxu0
      %v3789 = vadd.f32 %v3616, %v3788
      %v3790 = vpop.f32.mrf.mxu0
      %v3791 = vadd.f32 %v3616, %v3790
      %3792 = vmatmul.bf16.gmra.mxu0 %v3536
      %v3793 = vpop.f32.mrf.mxu0
      %v3794 = vadd.f32 %v3616, %v3793
      %v3795 = vpop.f32.mrf.mxu0
      %v3796 = vadd.f32 %v3616, %v3795
      %3797 = vmatmul.bf16.gmra.mxu0 %v3539
      %v3798 = vpop.f32.mrf.mxu0
      %v3799 = vadd.f32 %v3616, %v3798
      %v3800 = vpop.f32.mrf.mxu0
      %v3801 = vadd.f32 %v3616, %v3800
      %3802 = vmatmul.bf16.gmra.mxu0 %v3542
      %v3803 = vpop.f32.mrf.mxu0
      %v3804 = vadd.f32 %v3616, %v3803
      %v3805 = vpop.f32.mrf.mxu0
      %v3806 = vadd.f32 %v3616, %v3805
      %3807 = vmatmul.bf16.gmra.mxu0 %v3545
      %v3808 = vpop.f32.mrf.mxu0
      %v3809 = vadd.f32 %v3616, %v3808
      %v3810 = vpop.f32.mrf.mxu0
      %v3811 = vadd.f32 %v3616, %v3810
      %3812 = vmatmul.bf16.gmra.mxu0 %v3548
      %v3813 = vpop.f32.mrf.mxu0
      %v3814 = vadd.f32 %v3616, %v3813
      %v3815 = vpop.f32.mrf.mxu0
      %v3816 = vadd.f32 %v3616, %v3815
      %3817 = vmatmul.bf16.gmra.mxu0 %v3551
      %v3818 = vpop.f32.mrf.mxu0
      %v3819 = vadd.f32 %v3616, %v3818
      %v3820 = vpop.f32.mrf.mxu0
      %v3821 = vadd.f32 %v3616, %v3820
      %3822 = vmatmul.bf16.gmra.mxu0 %v3554
      %v3823 = vpop.f32.mrf.mxu0
      %v3824 = vadd.f32 %v3616, %v3823
      %v3825 = vpop.f32.mrf.mxu0
      %v3826 = vadd.f32 %v3616, %v3825
      %3827 = vmatmul.bf16.gmra.mxu0 %v3557
      %v3828 = vpop.f32.mrf.mxu0
      %v3829 = vadd.f32 %v3616, %v3828
      %v3830 = vpop.f32.mrf.mxu0
      %v3831 = vadd.f32 %v3616, %v3830
      %3832 = vmatmul.bf16.gmra.mxu0 %v3560
      %v3833 = vpop.f32.mrf.mxu0
      %v3834 = vadd.f32 %v3616, %v3833
      %v3835 = vpop.f32.mrf.mxu0
      %v3836 = vadd.f32 %v3616, %v3835
      %3837 = vmatmul.bf16.gmra.mxu0 %v3563
      %v3838 = vpop.f32.mrf.mxu0
      %v3839 = vadd.f32 %v3616, %v3838
      %v3840 = vpop.f32.mrf.mxu0
      %v3841 = vadd.f32 %v3616, %v3840
      %3842 = vmatmul.bf16.gmra.mxu0 %v3566
      %v3843 = vpop.f32.mrf.mxu0
      %v3844 = vadd.f32 %v3616, %v3843
      %v3845 = vpop.f32.mrf.mxu0
      %v3846 = vadd.f32 %v3616, %v3845
      %3847 = vmatmul.bf16.gmra.mxu0 %v3569
      %v3848 = vpop.f32.mrf.mxu0
      %v3849 = vadd.f32 %v3616, %v3848
      %v3850 = vpop.f32.mrf.mxu0
      %v3851 = vadd.f32 %v3616, %v3850
      %3852 = vmatmul.bf16.gmra.mxu0 %v3572
      %v3853 = vpop.f32.mrf.mxu0
      %v3854 = vadd.f32 %v3616, %v3853
      %v3855 = vpop.f32.mrf.mxu0
      %v3856 = vadd.f32 %v3616, %v3855
      %3857 = vmatmul.bf16.gmra.mxu0 %v3575
      %v3858 = vpop.f32.mrf.mxu0
      %v3859 = vadd.f32 %v3616, %v3858
      %v3860 = vpop.f32.mrf.mxu0
      %v3861 = vadd.f32 %v3616, %v3860
      %3862 = vdwg.mxu0
      %3863 = vmatpush.bf16.msra.mxu0 %v3705
      %3864 = vmatpush.bf16.msra.mxu0 %v3704
      %3865 = vmatpush.bf16.msra.mxu0 %v3703
      %3866 = vmatpush.bf16.msra.mxu0 %v3702
      %3867 = vmatpush.bf16.msra.mxu0 %v3701
      %3868 = vmatpush.bf16.msra.mxu0 %v3700
      %3869 = vmatpush.bf16.msra.mxu0 %v3699
      %3870 = vmatpush.bf16.msra.mxu0 %v3698
      %3871 = vmatmul.bf16.gmra.mxu0 %v3531
      %v3872 = vpop.f32.mrf.mxu0
      %v3873 = vadd.f32 %v3784, %v3872
      %v3874 = vpop.f32.mrf.mxu0
      %v3875 = vadd.f32 %v3786, %v3874
      %3876 = vmatmul.bf16.gmra.mxu0 %v3534
      %v3877 = vpop.f32.mrf.mxu0
      %v3878 = vadd.f32 %v3789, %v3877
      %v3879 = vpop.f32.mrf.mxu0
      %v3880 = vadd.f32 %v3791, %v3879
      %3881 = vmatmul.bf16.gmra.mxu0 %v3537
      %v3882 = vpop.f32.mrf.mxu0
      %v3883 = vadd.f32 %v3794, %v3882
      %v3884 = vpop.f32.mrf.mxu0
      %v3885 = vadd.f32 %v3796, %v3884
      %3886 = vmatmul.bf16.gmra.mxu0 %v3540
      %v3887 = vpop.f32.mrf.mxu0
      %v3888 = vadd.f32 %v3799, %v3887
      %v3889 = vpop.f32.mrf.mxu0
      %v3890 = vadd.f32 %v3801, %v3889
      %3891 = vmatmul.bf16.gmra.mxu0 %v3543
      %v3892 = vpop.f32.mrf.mxu0
      %v3893 = vadd.f32 %v3804, %v3892
      %v3894 = vpop.f32.mrf.mxu0
      %v3895 = vadd.f32 %v3806, %v3894
      %3896 = vmatmul.bf16.gmra.mxu0 %v3546
      %v3897 = vpop.f32.mrf.mxu0
      %v3898 = vadd.f32 %v3809, %v3897
      %v3899 = vpop.f32.mrf.mxu0
      %v3900 = vadd.f32 %v3811, %v3899
      %3901 = vmatmul.bf16.gmra.mxu0 %v3549
      %v3902 = vpop.f32.mrf.mxu0
      %v3903 = vadd.f32 %v3814, %v3902
      %v3904 = vpop.f32.mrf.mxu0
      %v3905 = vadd.f32 %v3816, %v3904
      %3906 = vmatmul.bf16.gmra.mxu0 %v3552
      %v3907 = vpop.f32.mrf.mxu0
      %v3908 = vadd.f32 %v3819, %v3907
      %v3909 = vpop.f32.mrf.mxu0
      %v3910 = vadd.f32 %v3821, %v3909
      %3911 = vmatmul.bf16.gmra.mxu0 %v3555
      %v3912 = vpop.f32.mrf.mxu0
      %v3913 = vadd.f32 %v3824, %v3912
      %v3914 = vpop.f32.mrf.mxu0
      %v3915 = vadd.f32 %v3826, %v3914
      %3916 = vmatmul.bf16.gmra.mxu0 %v3558
      %v3917 = vpop.f32.mrf.mxu0
      %v3918 = vadd.f32 %v3829, %v3917
      %v3919 = vpop.f32.mrf.mxu0
      %v3920 = vadd.f32 %v3831, %v3919
      %3921 = vmatmul.bf16.gmra.mxu0 %v3561
      %v3922 = vpop.f32.mrf.mxu0
      %v3923 = vadd.f32 %v3834, %v3922
      %v3924 = vpop.f32.mrf.mxu0
      %v3925 = vadd.f32 %v3836, %v3924
      %3926 = vmatmul.bf16.gmra.mxu0 %v3564
      %v3927 = vpop.f32.mrf.mxu0
      %v3928 = vadd.f32 %v3839, %v3927
      %v3929 = vpop.f32.mrf.mxu0
      %v3930 = vadd.f32 %v3841, %v3929
      %3931 = vmatmul.bf16.gmra.mxu0 %v3567
      %v3932 = vpop.f32.mrf.mxu0
      %v3933 = vadd.f32 %v3844, %v3932
      %v3934 = vpop.f32.mrf.mxu0
      %v3935 = vadd.f32 %v3846, %v3934
      %3936 = vmatmul.bf16.gmra.mxu0 %v3570
      %v3937 = vpop.f32.mrf.mxu0
      %v3938 = vadd.f32 %v3849, %v3937
      %v3939 = vpop.f32.mrf.mxu0
      %v3940 = vadd.f32 %v3851, %v3939
      %3941 = vmatmul.bf16.gmra.mxu0 %v3573
      %v3942 = vpop.f32.mrf.mxu0
      %v3943 = vadd.f32 %v3854, %v3942
      %v3944 = vpop.f32.mrf.mxu0
      %v3945 = vadd.f32 %v3856, %v3944
      %3946 = vmatmul.bf16.gmra.mxu0 %v3576
      %v3947 = vpop.f32.mrf.mxu0
      %v3948 = vadd.f32 %v3859, %v3947
      %v3949 = vpop.f32.mrf.mxu0
      %v3950 = vadd.f32 %v3861, %v3949
      %3951 = vdwg.mxu0
      %3952 = vmatpush.bf16.msra.mxu0 0
      %3953 = vmatpush.bf16.msra.mxu0 0
      %3954 = vmatpush.bf16.msra.mxu0 0
      %3955 = vmatpush.bf16.msra.mxu0 0
      %3956 = vmatpush.bf16.msra.mxu0 0
      %3957 = vmatpush.bf16.msra.mxu0 0
      %3958 = vmatpush.bf16.msra.mxu0 %v3707
      %3959 = vmatpush.bf16.msra.mxu0 %v3706
      %3960 = vmatmul.bf16.gmra.mxu0 %v3727
      %v3961 = vpop.f32.mrf.mxu0
      %v3962 = vadd.f32 %v3873, %v3961
      %v3963 = vpop.f32.mrf.mxu0
      %v3964 = vadd.f32 %v3875, %v3963
      %3965 = vmatmul.bf16.gmra.mxu0 %v3730
      %v3966 = vpop.f32.mrf.mxu0
      %v3967 = vadd.f32 %v3878, %v3966
      %v3968 = vpop.f32.mrf.mxu0
      %v3969 = vadd.f32 %v3880, %v3968
      %3970 = vmatmul.bf16.gmra.mxu0 %v3733
      %v3971 = vpop.f32.mrf.mxu0
      %v3972 = vadd.f32 %v3883, %v3971
      %v3973 = vpop.f32.mrf.mxu0
      %v3974 = vadd.f32 %v3885, %v3973
      %3975 = vmatmul.bf16.gmra.mxu0 %v3736
      %v3976 = vpop.f32.mrf.mxu0
      %v3977 = vadd.f32 %v3888, %v3976
      %v3978 = vpop.f32.mrf.mxu0
      %v3979 = vadd.f32 %v3890, %v3978
      %3980 = vmatmul.bf16.gmra.mxu0 %v3739
      %v3981 = vpop.f32.mrf.mxu0
      %v3982 = vadd.f32 %v3893, %v3981
      %v3983 = vpop.f32.mrf.mxu0
      %v3984 = vadd.f32 %v3895, %v3983
      %3985 = vmatmul.bf16.gmra.mxu0 %v3742
      %v3986 = vpop.f32.mrf.mxu0
      %v3987 = vadd.f32 %v3898, %v3986
      %v3988 = vpop.f32.mrf.mxu0
      %v3989 = vadd.f32 %v3900, %v3988
      %3990 = vmatmul.bf16.gmra.mxu0 %v3745
      %v3991 = vpop.f32.mrf.mxu0
      %v3992 = vadd.f32 %v3903, %v3991
      %v3993 = vpop.f32.mrf.mxu0
      %v3994 = vadd.f32 %v3905, %v3993
      %3995 = vmatmul.bf16.gmra.mxu0 %v3748
      %v3996 = vpop.f32.mrf.mxu0
      %v3997 = vadd.f32 %v3908, %v3996
      %v3998 = vpop.f32.mrf.mxu0
      %v3999 = vadd.f32 %v3910, %v3998
      %4000 = vmatmul.bf16.gmra.mxu0 %v3751
      %v4001 = vpop.f32.mrf.mxu0
      %v4002 = vadd.f32 %v3913, %v4001
      %v4003 = vpop.f32.mrf.mxu0
      %v4004 = vadd.f32 %v3915, %v4003
      %4005 = vmatmul.bf16.gmra.mxu0 %v3754
      %v4006 = vpop.f32.mrf.mxu0
      %v4007 = vadd.f32 %v3918, %v4006
      %v4008 = vpop.f32.mrf.mxu0
      %v4009 = vadd.f32 %v3920, %v4008
      %4010 = vmatmul.bf16.gmra.mxu0 %v3757
      %v4011 = vpop.f32.mrf.mxu0
      %v4012 = vadd.f32 %v3923, %v4011
      %v4013 = vpop.f32.mrf.mxu0
      %v4014 = vadd.f32 %v3925, %v4013
      %4015 = vmatmul.bf16.gmra.mxu0 %v3760
      %v4016 = vpop.f32.mrf.mxu0
      %v4017 = vadd.f32 %v3928, %v4016
      %v4018 = vpop.f32.mrf.mxu0
      %v4019 = vadd.f32 %v3930, %v4018
      %4020 = vmatmul.bf16.gmra.mxu0 %v3763
      %v4021 = vpop.f32.mrf.mxu0
      %v4022 = vadd.f32 %v3933, %v4021
      %v4023 = vpop.f32.mrf.mxu0
      %v4024 = vadd.f32 %v3935, %v4023
      %4025 = vmatmul.bf16.gmra.mxu0 %v3766
      %v4026 = vpop.f32.mrf.mxu0
      %v4027 = vadd.f32 %v3938, %v4026
      %v4028 = vpop.f32.mrf.mxu0
      %v4029 = vadd.f32 %v3940, %v4028
      %4030 = vmatmul.bf16.gmra.mxu0 %v3769
      %v4031 = vpop.f32.mrf.mxu0
      %v4032 = vadd.f32 %v3943, %v4031
      %v4033 = vpop.f32.mrf.mxu0
      %v4034 = vadd.f32 %v3945, %v4033
      %4035 = vmatmul.bf16.gmra.mxu0 %v3772
      %v4036 = vpop.f32.mrf.mxu0
      %v4037 = vadd.f32 %v3948, %v4036
      %v4038 = vpop.f32.mrf.mxu0
      %v4039 = vadd.f32 %v3950, %v4038
      %4040 = vdwg.mxu0
      %v4041 = vmax.f32 %v3962, 0.0
      %v4042 = vmax.f32 %v3964, 0.0
      %v4043 = vmax.f32 %v3967, 0.0
      %v4044 = vmax.f32 %v3969, 0.0
      %v4045 = vmax.f32 %v3972, 0.0
      %v4046 = vmax.f32 %v3974, 0.0
      %v4047 = vmax.f32 %v3977, 0.0
      %v4048 = vmax.f32 %v3979, 0.0
      %v4049 = vmax.f32 %v3982, 0.0
      %v4050 = vmax.f32 %v3984, 0.0
      %v4051 = vmax.f32 %v3987, 0.0
      %v4052 = vmax.f32 %v3989, 0.0
      %v4053 = vmax.f32 %v3992, 0.0
      %v4054 = vmax.f32 %v3994, 0.0
      %v4055 = vmax.f32 %v3997, 0.0
      %v4056 = vmax.f32 %v3999, 0.0
      %v4057 = vmax.f32 %v4002, 0.0
      %v4058 = vmax.f32 %v4004, 0.0
      %v4059 = vmax.f32 %v4007, 0.0
      %v4060 = vmax.f32 %v4009, 0.0
      %v4061 = vmax.f32 %v4012, 0.0
      %v4062 = vmax.f32 %v4014, 0.0
      %v4063 = vmax.f32 %v4017, 0.0
      %v4064 = vmax.f32 %v4019, 0.0
      %v4065 = vmax.f32 %v4022, 0.0
      %v4066 = vmax.f32 %v4024, 0.0
      %v4067 = vmax.f32 %v4027, 0.0
      %v4068 = vmax.f32 %v4029, 0.0
      %v4069 = vmax.f32 %v4032, 0.0
      %v4070 = vmax.f32 %v4034, 0.0
      %v4071 = vmax.f32 %v4037, 0.0
      %v4072 = vmax.f32 %v4039, 0.0
      %4073 = vst.msk [vmem:[%s2246 + $0x1] sm:$0xff] %vm336, %v4041
      %4074 = vst.msk [vmem:[%s2246 + $0x9] sm:$0xff] %vm336, %v4042
      %4075 = vst.msk [vmem:[%s2246 + $0x19] sm:$0xff] %vm336, %v4043
      %4076 = vst.msk [vmem:[%s2246 + $0x21] sm:$0xff] %vm336, %v4044
      %4077 = vst.msk [vmem:[%s2246 + $0x31] sm:$0xff] %vm336, %v4045
      %4078 = vst.msk [vmem:[%s2246 + $0x39] sm:$0xff] %vm336, %v4046
      %4079 = vst.msk [vmem:[%s2246 + $0x49] sm:$0xff] %vm336, %v4047
      %4080 = vst.msk [vmem:[%s2246 + $0x51] sm:$0xff] %vm336, %v4048
      %4081 = vst.msk [vmem:[%s2246 + $0x61] sm:$0xff] %vm336, %v4049
      %4082 = vst.msk [vmem:[%s2246 + $0x69] sm:$0xff] %vm336, %v4050
      %4083 = vst.msk [vmem:[%s2246 + $0x79] sm:$0xff] %vm336, %v4051
      %4084 = vst.msk [vmem:[%s2246 + $0x81] sm:$0xff] %vm336, %v4052
      %4085 = vst.msk [vmem:[%s2246 + $0x91] sm:$0xff] %vm336, %v4053
      %4086 = vst.msk [vmem:[%s2246 + $0x99] sm:$0xff] %vm336, %v4054
      %4087 = vst.msk [vmem:[%s2246 + $0xa9] sm:$0xff] %vm336, %v4055
      %4088 = vst.msk [vmem:[%s2246 + $0xb1] sm:$0xff] %vm336, %v4056
      %4089 = vst.msk [vmem:[%s2246 + $0xc1] sm:$0xff] %vm336, %v4057
      %4090 = vst.msk [vmem:[%s2246 + $0xc9] sm:$0xff] %vm336, %v4058
      %4091 = vst.msk [vmem:[%s2246 + $0xd9] sm:$0xff] %vm336, %v4059
      %4092 = vst.msk [vmem:[%s2246 + $0xe1] sm:$0xff] %vm336, %v4060
      %4093 = vst.msk [vmem:[%s2246 + $0xf1] sm:$0xff] %vm336, %v4061
      %4094 = vst.msk [vmem:[%s2246 + $0xf9] sm:$0xff] %vm336, %v4062
      %4095 = vst.msk [vmem:[%s2246 + $0x109] sm:$0xff] %vm336, %v4063
      %4096 = vst.msk [vmem:[%s2246 + $0x111] sm:$0xff] %vm336, %v4064
      %4097 = vst.msk [vmem:[%s2246 + $0x121] sm:$0xff] %vm336, %v4065
      %4098 = vst.msk [vmem:[%s2246 + $0x129] sm:$0xff] %vm336, %v4066
      %4099 = vst.msk [vmem:[%s2246 + $0x139] sm:$0xff] %vm336, %v4067
      %4100 = vst.msk [vmem:[%s2246 + $0x141] sm:$0xff] %vm336, %v4068
      %4101 = vst.msk [vmem:[%s2246 + $0x151] sm:$0xff] %vm336, %v4069
      %4102 = vst.msk [vmem:[%s2246 + $0x159] sm:$0xff] %vm336, %v4070
      %4103 = vst.msk [vmem:[%s2246 + $0x169] sm:$0xff] %vm336, %v4071
      %4104 = vst.msk [vmem:[%s2246 + $0x171] sm:$0xff] %vm336, %v4072
      %v4105 = vld [vmem:[#allocation3] sm:$0xff]
      %v4106 = vld [vmem:[#allocation3 + $0x8] sm:$0xff]
      %v4107 = vld [vmem:[#allocation3 + $0x18] sm:$0xff]
      %v4108 = vld [vmem:[#allocation3 + $0x20] sm:$0xff]
      %v4109 = vld [vmem:[#allocation3 + $0x30] sm:$0xff]
      %v4110 = vld [vmem:[#allocation3 + $0x38] sm:$0xff]
      %v4111 = vld [vmem:[#allocation3 + $0x48] sm:$0xff]
      %v4112 = vld [vmem:[#allocation3 + $0x50] sm:$0xff]
      %v4113 = vld [vmem:[#allocation3 + $0x60] sm:$0xff]
      %v4114 = vld [vmem:[#allocation3 + $0x68] sm:$0xff]
      %v4115 = vld [vmem:[#allocation3 + $0x78] sm:$0xff]
      %v4116 = vld [vmem:[#allocation3 + $0x80] sm:$0xff]
      %v4117 = vld [vmem:[#allocation3 + $0x90] sm:$0xff]
      %v4118 = vld [vmem:[#allocation3 + $0x98] sm:$0xff]
      %v4119 = vld [vmem:[#allocation3 + $0xa8] sm:$0xff]
      %v4120 = vld [vmem:[#allocation3 + $0xb0] sm:$0xff]
      %v4121 = vld [vmem:[#allocation3 + $0xc0] sm:$0xff]
      %v4122 = vld [vmem:[#allocation3 + $0xc8] sm:$0xff]
      %v4123 = vld [vmem:[#allocation3 + $0xd8] sm:$0xff]
      %v4124 = vld [vmem:[#allocation3 + $0xe0] sm:$0xff]
      %v4125 = vld [vmem:[#allocation3 + $0xf0] sm:$0xff]
      %v4126 = vld [vmem:[#allocation3 + $0xf8] sm:$0xff]
      %v4127 = vld [vmem:[#allocation3 + $0x108] sm:$0xff]
      %v4128 = vld [vmem:[#allocation3 + $0x110] sm:$0xff]
      %v4129 = vld [vmem:[#allocation3 + $0x120] sm:$0xff]
      %v4130 = vld [vmem:[#allocation3 + $0x128] sm:$0xff]
      %v4131 = vld [vmem:[#allocation3 + $0x138] sm:$0xff]
      %v4132 = vld [vmem:[#allocation3 + $0x140] sm:$0xff]
      %v4133 = vld [vmem:[#allocation3 + $0x150] sm:$0xff]
      %v4134 = vld [vmem:[#allocation3 + $0x158] sm:$0xff]
      %v4135 = vld [vmem:[#allocation3 + $0x168] sm:$0xff]
      %v4136 = vld [vmem:[#allocation3 + $0x170] sm:$0xff]
      %v4137 = vld [vmem:[#allocation3 + $0x1] sm:$0xff]
      %v4138 = vld [vmem:[#allocation3 + $0x9] sm:$0xff]
      %v4139 = vld [vmem:[#allocation3 + $0x19] sm:$0xff]
      %v4140 = vld [vmem:[#allocation3 + $0x21] sm:$0xff]
      %v4141 = vld [vmem:[#allocation3 + $0x31] sm:$0xff]
      %v4142 = vld [vmem:[#allocation3 + $0x39] sm:$0xff]
      %v4143 = vld [vmem:[#allocation3 + $0x49] sm:$0xff]
      %v4144 = vld [vmem:[#allocation3 + $0x51] sm:$0xff]
      %v4145 = vld [vmem:[#allocation3 + $0x61] sm:$0xff]
      %v4146 = vld [vmem:[#allocation3 + $0x69] sm:$0xff]
      %v4147 = vld [vmem:[#allocation3 + $0x79] sm:$0xff]
      %v4148 = vld [vmem:[#allocation3 + $0x81] sm:$0xff]
      %v4149 = vld [vmem:[#allocation3 + $0x91] sm:$0xff]
      %v4150 = vld [vmem:[#allocation3 + $0x99] sm:$0xff]
      %v4151 = vld [vmem:[#allocation3 + $0xa9] sm:$0xff]
      %v4152 = vld [vmem:[#allocation3 + $0xb1] sm:$0xff]
      %v4153 = vld [vmem:[#allocation3 + $0xc1] sm:$0xff]
      %v4154 = vld [vmem:[#allocation3 + $0xc9] sm:$0xff]
      %v4155 = vld [vmem:[#allocation3 + $0xd9] sm:$0xff]
      %v4156 = vld [vmem:[#allocation3 + $0xe1] sm:$0xff]
      %v4157 = vld [vmem:[#allocation3 + $0xf1] sm:$0xff]
      %v4158 = vld [vmem:[#allocation3 + $0xf9] sm:$0xff]
      %v4159 = vld [vmem:[#allocation3 + $0x109] sm:$0xff]
      %v4160 = vld [vmem:[#allocation3 + $0x111] sm:$0xff]
      %v4161 = vld [vmem:[#allocation3 + $0x121] sm:$0xff]
      %v4162 = vld [vmem:[#allocation3 + $0x129] sm:$0xff]
      %v4163 = vld [vmem:[#allocation3 + $0x139] sm:$0xff]
      %v4164 = vld [vmem:[#allocation3 + $0x141] sm:$0xff]
      %v4165 = vld [vmem:[#allocation3 + $0x151] sm:$0xff]
      %v4166 = vld [vmem:[#allocation3 + $0x159] sm:$0xff]
      %v4167 = vld [vmem:[#allocation3 + $0x169] sm:$0xff]
      %v4168 = vld [vmem:[#allocation3 + $0x171] sm:$0xff]
      %v4169 = vld [vmem:[#allocation3 + $0x2] sm:$0xff]
      %v4170 = vld [vmem:[#allocation3 + $0xa] sm:$0xff]
      %v4171 = vld [vmem:[#allocation3 + $0x1a] sm:$0xff]
      %v4172 = vld [vmem:[#allocation3 + $0x22] sm:$0xff]
      %v4173 = vld [vmem:[#allocation3 + $0x32] sm:$0xff]
      %v4174 = vld [vmem:[#allocation3 + $0x3a] sm:$0xff]
      %v4175 = vld [vmem:[#allocation3 + $0x4a] sm:$0xff]
      %v4176 = vld [vmem:[#allocation3 + $0x52] sm:$0xff]
      %v4177 = vld [vmem:[#allocation3 + $0x62] sm:$0xff]
      %v4178 = vld [vmem:[#allocation3 + $0x6a] sm:$0xff]
      %v4179 = vld [vmem:[#allocation3 + $0x7a] sm:$0xff]
      %v4180 = vld [vmem:[#allocation3 + $0x82] sm:$0xff]
      %v4181 = vld [vmem:[#allocation3 + $0x92] sm:$0xff]
      %v4182 = vld [vmem:[#allocation3 + $0x9a] sm:$0xff]
      %v4183 = vld [vmem:[#allocation3 + $0xaa] sm:$0xff]
      %v4184 = vld [vmem:[#allocation3 + $0xb2] sm:$0xff]
      %v4185 = vld [vmem:[#allocation3 + $0xc2] sm:$0xff]
      %v4186 = vld [vmem:[#allocation3 + $0xca] sm:$0xff]
      %v4187 = vld [vmem:[#allocation3 + $0xda] sm:$0xff]
      %v4188 = vld [vmem:[#allocation3 + $0xe2] sm:$0xff]
      %v4189 = vld [vmem:[#allocation3 + $0xf2] sm:$0xff]
      %v4190 = vld [vmem:[#allocation3 + $0xfa] sm:$0xff]
      %v4191 = vld [vmem:[#allocation3 + $0x10a] sm:$0xff]
      %v4192 = vld [vmem:[#allocation3 + $0x112] sm:$0xff]
      %v4193 = vld [vmem:[#allocation3 + $0x122] sm:$0xff]
      %v4194 = vld [vmem:[#allocation3 + $0x12a] sm:$0xff]
      %v4195 = vld [vmem:[#allocation3 + $0x13a] sm:$0xff]
      %v4196 = vld [vmem:[#allocation3 + $0x142] sm:$0xff]
      %v4197 = vld [vmem:[#allocation3 + $0x152] sm:$0xff]
      %v4198 = vld [vmem:[#allocation3 + $0x15a] sm:$0xff]
      %v4199 = vld [vmem:[#allocation3 + $0x16a] sm:$0xff]
      %v4200 = vld [vmem:[#allocation3 + $0x172] sm:$0xff]
      %v4201 = vld [vmem:[%s2246] sm:$0xff]
      %v4202 = vld [vmem:[%s2246 + $0x8] sm:$0xff]
      %v4203 = vld [vmem:[%s2246 + $0x18] sm:$0xff]
      %v4204 = vld [vmem:[%s2246 + $0x20] sm:$0xff]
      %v4205 = vld [vmem:[%s2246 + $0x30] sm:$0xff]
      %v4206 = vld [vmem:[%s2246 + $0x38] sm:$0xff]
      %v4207 = vld [vmem:[%s2246 + $0x48] sm:$0xff]
      %v4208 = vld [vmem:[%s2246 + $0x50] sm:$0xff]
      %v4209 = vld [vmem:[%s2246 + $0x60] sm:$0xff]
      %v4210 = vld [vmem:[%s2246 + $0x68] sm:$0xff]
      %v4211 = vld [vmem:[%s2246 + $0x78] sm:$0xff]
      %v4212 = vld [vmem:[%s2246 + $0x80] sm:$0xff]
      %v4213 = vld [vmem:[%s2246 + $0x90] sm:$0xff]
      %v4214 = vld [vmem:[%s2246 + $0x98] sm:$0xff]
      %v4215 = vld [vmem:[%s2246 + $0xa8] sm:$0xff]
      %v4216 = vld [vmem:[%s2246 + $0xb0] sm:$0xff]
      %v4217 = vld [vmem:[%s2246 + $0xc0] sm:$0xff]
      %v4218 = vld [vmem:[%s2246 + $0xc8] sm:$0xff]
      %v4219 = vld [vmem:[%s2246 + $0xd8] sm:$0xff]
      %v4220 = vld [vmem:[%s2246 + $0xe0] sm:$0xff]
      %v4221 = vld [vmem:[%s2246 + $0xf0] sm:$0xff]
      %v4222 = vld [vmem:[%s2246 + $0xf8] sm:$0xff]
      %v4223 = vld [vmem:[%s2246 + $0x108] sm:$0xff]
      %v4224 = vld [vmem:[%s2246 + $0x110] sm:$0xff]
      %v4225 = vld [vmem:[%s2246 + $0x120] sm:$0xff]
      %v4226 = vld [vmem:[%s2246 + $0x128] sm:$0xff]
      %v4227 = vld [vmem:[%s2246 + $0x138] sm:$0xff]
      %v4228 = vld [vmem:[%s2246 + $0x140] sm:$0xff]
      %v4229 = vld [vmem:[%s2246 + $0x150] sm:$0xff]
      %v4230 = vld [vmem:[%s2246 + $0x158] sm:$0xff]
      %v4231 = vld [vmem:[%s2246 + $0x168] sm:$0xff]
      %v4232 = vld [vmem:[%s2246 + $0x170] sm:$0xff]
      %v4233 = vld [vmem:[%s2246 + $0x1] sm:$0xff]
      %v4234 = vld [vmem:[%s2246 + $0x9] sm:$0xff]
      %v4235 = vld [vmem:[%s2246 + $0x19] sm:$0xff]
      %v4236 = vld [vmem:[%s2246 + $0x21] sm:$0xff]
      %v4237 = vld [vmem:[%s2246 + $0x31] sm:$0xff]
      %v4238 = vld [vmem:[%s2246 + $0x39] sm:$0xff]
      %v4239 = vld [vmem:[%s2246 + $0x49] sm:$0xff]
      %v4240 = vld [vmem:[%s2246 + $0x51] sm:$0xff]
      %v4241 = vld [vmem:[%s2246 + $0x61] sm:$0xff]
      %v4242 = vld [vmem:[%s2246 + $0x69] sm:$0xff]
      %v4243 = vld [vmem:[%s2246 + $0x79] sm:$0xff]
      %v4244 = vld [vmem:[%s2246 + $0x81] sm:$0xff]
      %v4245 = vld [vmem:[%s2246 + $0x91] sm:$0xff]
      %v4246 = vld [vmem:[%s2246 + $0x99] sm:$0xff]
      %v4247 = vld [vmem:[%s2246 + $0xa9] sm:$0xff]
      %v4248 = vld [vmem:[%s2246 + $0xb1] sm:$0xff]
      %v4249 = vld [vmem:[%s2246 + $0xc1] sm:$0xff]
      %v4250 = vld [vmem:[%s2246 + $0xc9] sm:$0xff]
      %v4251 = vld [vmem:[%s2246 + $0xd9] sm:$0xff]
      %v4252 = vld [vmem:[%s2246 + $0xe1] sm:$0xff]
      %v4253 = vld [vmem:[%s2246 + $0xf1] sm:$0xff]
      %v4254 = vld [vmem:[%s2246 + $0xf9] sm:$0xff]
      %v4255 = vld [vmem:[%s2246 + $0x109] sm:$0xff]
      %v4256 = vld [vmem:[%s2246 + $0x111] sm:$0xff]
      %v4257 = vld [vmem:[%s2246 + $0x121] sm:$0xff]
      %v4258 = vld [vmem:[%s2246 + $0x129] sm:$0xff]
      %v4259 = vld [vmem:[%s2246 + $0x139] sm:$0xff]
      %v4260 = vld [vmem:[%s2246 + $0x141] sm:$0xff]
      %v4261 = vld [vmem:[%s2246 + $0x151] sm:$0xff]
      %v4262 = vld [vmem:[%s2246 + $0x159] sm:$0xff]
      %v4263 = vld [vmem:[%s2246 + $0x169] sm:$0xff]
      %v4264 = vld [vmem:[%s2246 + $0x171] sm:$0xff]
      %v4265 = vld [vmem:[%s2246 + $0x2] sm:$0xff]
      %v4266 = vld [vmem:[%s2246 + $0xa] sm:$0xff]
      %v4267 = vld [vmem:[%s2246 + $0x1a] sm:$0xff]
      %v4268 = vld [vmem:[%s2246 + $0x22] sm:$0xff]
      %v4269 = vld [vmem:[%s2246 + $0x32] sm:$0xff]
      %v4270 = vld [vmem:[%s2246 + $0x3a] sm:$0xff]
      %v4271 = vld [vmem:[%s2246 + $0x4a] sm:$0xff]
      %v4272 = vld [vmem:[%s2246 + $0x52] sm:$0xff]
      %v4273 = vld [vmem:[%s2246 + $0x62] sm:$0xff]
      %v4274 = vld [vmem:[%s2246 + $0x6a] sm:$0xff]
      %v4275 = vld [vmem:[%s2246 + $0x7a] sm:$0xff]
      %v4276 = vld [vmem:[%s2246 + $0x82] sm:$0xff]
      %v4277 = vld [vmem:[%s2246 + $0x92] sm:$0xff]
      %v4278 = vld [vmem:[%s2246 + $0x9a] sm:$0xff]
      %v4279 = vld [vmem:[%s2246 + $0xaa] sm:$0xff]
      %v4280 = vld [vmem:[%s2246 + $0xb2] sm:$0xff]
      %v4281 = vld [vmem:[%s2246 + $0xc2] sm:$0xff]
      %v4282 = vld [vmem:[%s2246 + $0xca] sm:$0xff]
      %v4283 = vld [vmem:[%s2246 + $0xda] sm:$0xff]
      %v4284 = vld [vmem:[%s2246 + $0xe2] sm:$0xff]
      %v4285 = vld [vmem:[%s2246 + $0xf2] sm:$0xff]
      %v4286 = vld [vmem:[%s2246 + $0xfa] sm:$0xff]
      %v4287 = vld [vmem:[%s2246 + $0x10a] sm:$0xff]
      %v4288 = vld [vmem:[%s2246 + $0x112] sm:$0xff]
      %v4289 = vld [vmem:[%s2246 + $0x122] sm:$0xff]
      %v4290 = vld [vmem:[%s2246 + $0x12a] sm:$0xff]
      %v4291 = vld [vmem:[%s2246 + $0x13a] sm:$0xff]
      %v4292 = vld [vmem:[%s2246 + $0x142] sm:$0xff]
      %v4293 = vld [vmem:[%s2246 + $0x152] sm:$0xff]
      %v4294 = vld [vmem:[%s2246 + $0x15a] sm:$0xff]
      %v4295 = vld [vmem:[%s2246 + $0x16a] sm:$0xff]
      %v4296 = vld [vmem:[%s2246 + $0x172] sm:$0xff]
      %v4297 = vld [vmem:[%s2471] sm:$0xff]
      %v4298 = vld [vmem:[%s2471 + $0x8] sm:$0xff]
      %v4299 = vld [vmem:[%s2471 + $0x18] sm:$0xff]
      %v4300 = vld [vmem:[%s2471 + $0x20] sm:$0xff]
      %v4301 = vld [vmem:[%s2471 + $0x30] sm:$0xff]
      %v4302 = vld [vmem:[%s2471 + $0x38] sm:$0xff]
      %v4303 = vld [vmem:[%s2471 + $0x48] sm:$0xff]
      %v4304 = vld [vmem:[%s2471 + $0x50] sm:$0xff]
      %v4305 = vld [vmem:[%s2471 + $0x60] sm:$0xff]
      %v4306 = vld [vmem:[%s2471 + $0x68] sm:$0xff]
      %v4307 = vld [vmem:[%s2471 + $0x78] sm:$0xff]
      %v4308 = vld [vmem:[%s2471 + $0x80] sm:$0xff]
      %v4309 = vld [vmem:[%s2471 + $0x90] sm:$0xff]
      %v4310 = vld [vmem:[%s2471 + $0x98] sm:$0xff]
      %v4311 = vld [vmem:[%s2471 + $0xa8] sm:$0xff]
      %v4312 = vld [vmem:[%s2471 + $0xb0] sm:$0xff]
      %v4313 = vld [vmem:[%s2471 + $0xc0] sm:$0xff]
      %v4314 = vld [vmem:[%s2471 + $0xc8] sm:$0xff]
      %v4315 = vld [vmem:[%s2471 + $0xd8] sm:$0xff]
      %v4316 = vld [vmem:[%s2471 + $0xe0] sm:$0xff]
      %v4317 = vld [vmem:[%s2471 + $0xf0] sm:$0xff]
      %v4318 = vld [vmem:[%s2471 + $0xf8] sm:$0xff]
      %v4319 = vld [vmem:[%s2471 + $0x108] sm:$0xff]
      %v4320 = vld [vmem:[%s2471 + $0x110] sm:$0xff]
      %v4321 = vld [vmem:[%s2471 + $0x120] sm:$0xff]
      %v4322 = vld [vmem:[%s2471 + $0x128] sm:$0xff]
      %v4323 = vld [vmem:[%s2471 + $0x138] sm:$0xff]
      %v4324 = vld [vmem:[%s2471 + $0x140] sm:$0xff]
      %v4325 = vld [vmem:[%s2471 + $0x150] sm:$0xff]
      %v4326 = vld [vmem:[%s2471 + $0x158] sm:$0xff]
      %v4327 = vld [vmem:[%s2471 + $0x168] sm:$0xff]
      %v4328 = vld [vmem:[%s2471 + $0x170] sm:$0xff]
      %v4329 = vld [vmem:[%s2471 + $0x1] sm:$0xff]
      %v4330 = vld [vmem:[%s2471 + $0x9] sm:$0xff]
      %v4331 = vld [vmem:[%s2471 + $0x19] sm:$0xff]
      %v4332 = vld [vmem:[%s2471 + $0x21] sm:$0xff]
      %v4333 = vld [vmem:[%s2471 + $0x31] sm:$0xff]
      %v4334 = vld [vmem:[%s2471 + $0x39] sm:$0xff]
      %v4335 = vld [vmem:[%s2471 + $0x49] sm:$0xff]
      %v4336 = vld [vmem:[%s2471 + $0x51] sm:$0xff]
      %v4337 = vld [vmem:[%s2471 + $0x61] sm:$0xff]
      %v4338 = vld [vmem:[%s2471 + $0x69] sm:$0xff]
      %v4339 = vld [vmem:[%s2471 + $0x79] sm:$0xff]
      %v4340 = vld [vmem:[%s2471 + $0x81] sm:$0xff]
      %v4341 = vld [vmem:[%s2471 + $0x91] sm:$0xff]
      %v4342 = vld [vmem:[%s2471 + $0x99] sm:$0xff]
      %v4343 = vld [vmem:[%s2471 + $0xa9] sm:$0xff]
      %v4344 = vld [vmem:[%s2471 + $0xb1] sm:$0xff]
      %v4345 = vld [vmem:[%s2471 + $0xc1] sm:$0xff]
      %v4346 = vld [vmem:[%s2471 + $0xc9] sm:$0xff]
      %v4347 = vld [vmem:[%s2471 + $0xd9] sm:$0xff]
      %v4348 = vld [vmem:[%s2471 + $0xe1] sm:$0xff]
      %v4349 = vld [vmem:[%s2471 + $0xf1] sm:$0xff]
      %v4350 = vld [vmem:[%s2471 + $0xf9] sm:$0xff]
      %v4351 = vld [vmem:[%s2471 + $0x109] sm:$0xff]
      %v4352 = vld [vmem:[%s2471 + $0x111] sm:$0xff]
      %v4353 = vld [vmem:[%s2471 + $0x121] sm:$0xff]
      %v4354 = vld [vmem:[%s2471 + $0x129] sm:$0xff]
      %v4355 = vld [vmem:[%s2471 + $0x139] sm:$0xff]
      %v4356 = vld [vmem:[%s2471 + $0x141] sm:$0xff]
      %v4357 = vld [vmem:[%s2471 + $0x151] sm:$0xff]
      %v4358 = vld [vmem:[%s2471 + $0x159] sm:$0xff]
      %v4359 = vld [vmem:[%s2471 + $0x169] sm:$0xff]
      %v4360 = vld [vmem:[%s2471 + $0x171] sm:$0xff]
      %v4361 = vld [vmem:[%s2471 + $0x2] sm:$0xff]
      %v4362 = vld [vmem:[%s2471 + $0xa] sm:$0xff]
      %v4363 = vld [vmem:[%s2471 + $0x1a] sm:$0xff]
      %v4364 = vld [vmem:[%s2471 + $0x22] sm:$0xff]
      %v4365 = vld [vmem:[%s2471 + $0x32] sm:$0xff]
      %v4366 = vld [vmem:[%s2471 + $0x3a] sm:$0xff]
      %v4367 = vld [vmem:[%s2471 + $0x4a] sm:$0xff]
      %v4368 = vld [vmem:[%s2471 + $0x52] sm:$0xff]
      %v4369 = vld [vmem:[%s2471 + $0x62] sm:$0xff]
      %v4370 = vld [vmem:[%s2471 + $0x6a] sm:$0xff]
      %v4371 = vld [vmem:[%s2471 + $0x7a] sm:$0xff]
      %v4372 = vld [vmem:[%s2471 + $0x82] sm:$0xff]
      %v4373 = vld [vmem:[%s2471 + $0x92] sm:$0xff]
      %v4374 = vld [vmem:[%s2471 + $0x9a] sm:$0xff]
      %v4375 = vld [vmem:[%s2471 + $0xaa] sm:$0xff]
      %v4376 = vld [vmem:[%s2471 + $0xb2] sm:$0xff]
      %v4377 = vld [vmem:[%s2471 + $0xc2] sm:$0xff]
      %v4378 = vld [vmem:[%s2471 + $0xca] sm:$0xff]
      %v4379 = vld [vmem:[%s2471 + $0xda] sm:$0xff]
      %v4380 = vld [vmem:[%s2471 + $0xe2] sm:$0xff]
      %v4381 = vld [vmem:[%s2471 + $0xf2] sm:$0xff]
      %v4382 = vld [vmem:[%s2471 + $0xfa] sm:$0xff]
      %v4383 = vld [vmem:[%s2471 + $0x10a] sm:$0xff]
      %v4384 = vld [vmem:[%s2471 + $0x112] sm:$0xff]
      %v4385 = vld [vmem:[%s2471 + $0x122] sm:$0xff]
      %v4386 = vld [vmem:[%s2471 + $0x12a] sm:$0xff]
      %v4387 = vld [vmem:[%s2471 + $0x13a] sm:$0xff]
      %v4388 = vld [vmem:[%s2471 + $0x142] sm:$0xff]
      %v4389 = vld [vmem:[%s2471 + $0x152] sm:$0xff]
      %v4390 = vld [vmem:[%s2471 + $0x15a] sm:$0xff]
      %v4391 = vld [vmem:[%s2471 + $0x16a] sm:$0xff]
      %v4392 = vld [vmem:[%s2471 + $0x172] sm:$0xff]
      %4425 = vrot.lane.b32.xlu0 %v4137, 32
      %v4426 = vpop.permute.xlu0 %4425
      %4427 = vrot.lane.b32.xlu0 %v4138, 32
      %v4428 = vpop.permute.xlu0 %4427
      %4429 = vrot.lane.b32.xlu0 %v4139, 32
      %v4430 = vpop.permute.xlu0 %4429
      %4431 = vrot.lane.b32.xlu0 %v4140, 32
      %v4432 = vpop.permute.xlu0 %4431
      %4433 = vrot.lane.b32.xlu0 %v4141, 32
      %v4434 = vpop.permute.xlu0 %4433
      %4435 = vrot.lane.b32.xlu0 %v4142, 32
      %v4436 = vpop.permute.xlu0 %4435
      %4437 = vrot.lane.b32.xlu0 %v4143, 32
      %v4438 = vpop.permute.xlu0 %4437
      %4439 = vrot.lane.b32.xlu0 %v4144, 32
      %v4440 = vpop.permute.xlu0 %4439
      %4441 = vrot.lane.b32.xlu0 %v4145, 32
      %v4442 = vpop.permute.xlu0 %4441
      %4443 = vrot.lane.b32.xlu0 %v4146, 32
      %v4444 = vpop.permute.xlu0 %4443
      %4445 = vrot.lane.b32.xlu0 %v4147, 32
      %v4446 = vpop.permute.xlu0 %4445
      %4447 = vrot.lane.b32.xlu0 %v4148, 32
      %v4448 = vpop.permute.xlu0 %4447
      %4449 = vrot.lane.b32.xlu0 %v4149, 32
      %v4450 = vpop.permute.xlu0 %4449
      %4451 = vrot.lane.b32.xlu0 %v4150, 32
      %v4452 = vpop.permute.xlu0 %4451
      %4453 = vrot.lane.b32.xlu0 %v4151, 32
      %v4454 = vpop.permute.xlu0 %4453
      %4455 = vrot.lane.b32.xlu0 %v4152, 32
      %v4456 = vpop.permute.xlu0 %4455
      %4457 = vrot.lane.b32.xlu0 %v4153, 32
      %v4458 = vpop.permute.xlu0 %4457
      %4459 = vrot.lane.b32.xlu0 %v4154, 32
      %v4460 = vpop.permute.xlu0 %4459
      %4461 = vrot.lane.b32.xlu0 %v4155, 32
      %v4462 = vpop.permute.xlu0 %4461
      %4463 = vrot.lane.b32.xlu0 %v4156, 32
      %v4464 = vpop.permute.xlu0 %4463
      %4465 = vrot.lane.b32.xlu0 %v4157, 32
      %v4466 = vpop.permute.xlu0 %4465
      %4467 = vrot.lane.b32.xlu0 %v4158, 32
      %v4468 = vpop.permute.xlu0 %4467
      %4469 = vrot.lane.b32.xlu0 %v4159, 32
      %v4470 = vpop.permute.xlu0 %4469
      %4471 = vrot.lane.b32.xlu0 %v4160, 32
      %v4472 = vpop.permute.xlu0 %4471
      %4473 = vrot.lane.b32.xlu0 %v4161, 32
      %v4474 = vpop.permute.xlu0 %4473
      %4475 = vrot.lane.b32.xlu0 %v4162, 32
      %v4476 = vpop.permute.xlu0 %4475
      %4477 = vrot.lane.b32.xlu0 %v4163, 32
      %v4478 = vpop.permute.xlu0 %4477
      %4479 = vrot.lane.b32.xlu0 %v4164, 32
      %v4480 = vpop.permute.xlu0 %4479
      %4481 = vrot.lane.b32.xlu0 %v4165, 32
      %v4482 = vpop.permute.xlu0 %4481
      %4483 = vrot.lane.b32.xlu0 %v4166, 32
      %v4484 = vpop.permute.xlu0 %4483
      %4485 = vrot.lane.b32.xlu0 %v4167, 32
      %v4486 = vpop.permute.xlu0 %4485
      %4487 = vrot.lane.b32.xlu0 %v4168, 32
      %v4488 = vpop.permute.xlu0 %4487
      %4553 = vrot.lane.b32.xlu0 %v4169, 64
      %v4554 = vpop.permute.xlu0 %4553
      %4555 = vrot.lane.b32.xlu0 %v4170, 64
      %v4556 = vpop.permute.xlu0 %4555
      %4557 = vrot.lane.b32.xlu0 %v4171, 64
      %v4558 = vpop.permute.xlu0 %4557
      %4559 = vrot.lane.b32.xlu0 %v4172, 64
      %v4560 = vpop.permute.xlu0 %4559
      %4561 = vrot.lane.b32.xlu0 %v4173, 64
      %v4562 = vpop.permute.xlu0 %4561
      %4563 = vrot.lane.b32.xlu0 %v4174, 64
      %v4564 = vpop.permute.xlu0 %4563
      %4565 = vrot.lane.b32.xlu0 %v4175, 64
      %v4566 = vpop.permute.xlu0 %4565
      %4567 = vrot.lane.b32.xlu0 %v4176, 64
      %v4568 = vpop.permute.xlu0 %4567
      %4569 = vrot.lane.b32.xlu0 %v4177, 64
      %v4570 = vpop.permute.xlu0 %4569
      %4571 = vrot.lane.b32.xlu0 %v4178, 64
      %v4572 = vpop.permute.xlu0 %4571
      %4573 = vrot.lane.b32.xlu0 %v4179, 64
      %v4574 = vpop.permute.xlu0 %4573
      %4575 = vrot.lane.b32.xlu0 %v4180, 64
      %v4576 = vpop.permute.xlu0 %4575
      %4577 = vrot.lane.b32.xlu0 %v4181, 64
      %v4578 = vpop.permute.xlu0 %4577
      %4579 = vrot.lane.b32.xlu0 %v4182, 64
      %v4580 = vpop.permute.xlu0 %4579
      %4581 = vrot.lane.b32.xlu0 %v4183, 64
      %v4582 = vpop.permute.xlu0 %4581
      %4583 = vrot.lane.b32.xlu0 %v4184, 64
      %v4584 = vpop.permute.xlu0 %4583
      %4585 = vrot.lane.b32.xlu0 %v4185, 64
      %v4586 = vpop.permute.xlu0 %4585
      %4587 = vrot.lane.b32.xlu0 %v4186, 64
      %v4588 = vpop.permute.xlu0 %4587
      %4589 = vrot.lane.b32.xlu0 %v4187, 64
      %v4590 = vpop.permute.xlu0 %4589
      %4591 = vrot.lane.b32.xlu0 %v4188, 64
      %v4592 = vpop.permute.xlu0 %4591
      %4593 = vrot.lane.b32.xlu0 %v4189, 64
      %v4594 = vpop.permute.xlu0 %4593
      %4595 = vrot.lane.b32.xlu0 %v4190, 64
      %v4596 = vpop.permute.xlu0 %4595
      %4597 = vrot.lane.b32.xlu0 %v4191, 64
      %v4598 = vpop.permute.xlu0 %4597
      %4599 = vrot.lane.b32.xlu0 %v4192, 64
      %v4600 = vpop.permute.xlu0 %4599
      %4601 = vrot.lane.b32.xlu0 %v4193, 64
      %v4602 = vpop.permute.xlu0 %4601
      %4603 = vrot.lane.b32.xlu0 %v4194, 64
      %v4604 = vpop.permute.xlu0 %4603
      %4605 = vrot.lane.b32.xlu0 %v4195, 64
      %v4606 = vpop.permute.xlu0 %4605
      %4607 = vrot.lane.b32.xlu0 %v4196, 64
      %v4608 = vpop.permute.xlu0 %4607
      %4609 = vrot.lane.b32.xlu0 %v4197, 64
      %v4610 = vpop.permute.xlu0 %4609
      %4611 = vrot.lane.b32.xlu0 %v4198, 64
      %v4612 = vpop.permute.xlu0 %4611
      %4613 = vrot.lane.b32.xlu0 %v4199, 64
      %v4614 = vpop.permute.xlu0 %4613
      %4615 = vrot.lane.b32.xlu0 %v4200, 64
      %v4616 = vpop.permute.xlu0 %4615
      %4681 = vrot.lane.b32.xlu0 %v4201, 96
      %v4682 = vpop.permute.xlu0 %4681
      %4683 = vrot.lane.b32.xlu0 %v4202, 96
      %v4684 = vpop.permute.xlu0 %4683
      %4685 = vrot.lane.b32.xlu0 %v4203, 96
      %v4686 = vpop.permute.xlu0 %4685
      %4687 = vrot.lane.b32.xlu0 %v4204, 96
      %v4688 = vpop.permute.xlu0 %4687
      %4689 = vrot.lane.b32.xlu0 %v4205, 96
      %v4690 = vpop.permute.xlu0 %4689
      %4691 = vrot.lane.b32.xlu0 %v4206, 96
      %v4692 = vpop.permute.xlu0 %4691
      %4693 = vrot.lane.b32.xlu0 %v4207, 96
      %v4694 = vpop.permute.xlu0 %4693
      %4695 = vrot.lane.b32.xlu0 %v4208, 96
      %v4696 = vpop.permute.xlu0 %4695
      %4697 = vrot.lane.b32.xlu0 %v4209, 96
      %v4698 = vpop.permute.xlu0 %4697
      %4699 = vrot.lane.b32.xlu0 %v4210, 96
      %v4700 = vpop.permute.xlu0 %4699
      %4701 = vrot.lane.b32.xlu0 %v4211, 96
      %v4702 = vpop.permute.xlu0 %4701
      %4703 = vrot.lane.b32.xlu0 %v4212, 96
      %v4704 = vpop.permute.xlu0 %4703
      %4705 = vrot.lane.b32.xlu0 %v4213, 96
      %v4706 = vpop.permute.xlu0 %4705
      %4707 = vrot.lane.b32.xlu0 %v4214, 96
      %v4708 = vpop.permute.xlu0 %4707
      %4709 = vrot.lane.b32.xlu0 %v4215, 96
      %v4710 = vpop.permute.xlu0 %4709
      %4711 = vrot.lane.b32.xlu0 %v4216, 96
      %v4712 = vpop.permute.xlu0 %4711
      %4713 = vrot.lane.b32.xlu0 %v4217, 96
      %v4714 = vpop.permute.xlu0 %4713
      %4715 = vrot.lane.b32.xlu0 %v4218, 96
      %v4716 = vpop.permute.xlu0 %4715
      %4717 = vrot.lane.b32.xlu0 %v4219, 96
      %v4718 = vpop.permute.xlu0 %4717
      %4719 = vrot.lane.b32.xlu0 %v4220, 96
      %v4720 = vpop.permute.xlu0 %4719
      %4721 = vrot.lane.b32.xlu0 %v4221, 96
      %v4722 = vpop.permute.xlu0 %4721
      %4723 = vrot.lane.b32.xlu0 %v4222, 96
      %v4724 = vpop.permute.xlu0 %4723
      %4725 = vrot.lane.b32.xlu0 %v4223, 96
      %v4726 = vpop.permute.xlu0 %4725
      %4727 = vrot.lane.b32.xlu0 %v4224, 96
      %v4728 = vpop.permute.xlu0 %4727
      %4729 = vrot.lane.b32.xlu0 %v4225, 96
      %v4730 = vpop.permute.xlu0 %4729
      %4731 = vrot.lane.b32.xlu0 %v4226, 96
      %v4732 = vpop.permute.xlu0 %4731
      %4733 = vrot.lane.b32.xlu0 %v4227, 96
      %v4734 = vpop.permute.xlu0 %4733
      %4735 = vrot.lane.b32.xlu0 %v4228, 96
      %v4736 = vpop.permute.xlu0 %4735
      %4737 = vrot.lane.b32.xlu0 %v4229, 96
      %v4738 = vpop.permute.xlu0 %4737
      %4739 = vrot.lane.b32.xlu0 %v4230, 96
      %v4740 = vpop.permute.xlu0 %4739
      %4741 = vrot.lane.b32.xlu0 %v4231, 96
      %v4742 = vpop.permute.xlu0 %4741
      %4743 = vrot.lane.b32.xlu0 %v4232, 96
      %v4744 = vpop.permute.xlu0 %4743
      %4809 = vrot.lane.b32.xlu0 %v4265, 32
      %v4810 = vpop.permute.xlu0 %4809
      %4811 = vrot.lane.b32.xlu0 %v4266, 32
      %v4812 = vpop.permute.xlu0 %4811
      %4813 = vrot.lane.b32.xlu0 %v4267, 32
      %v4814 = vpop.permute.xlu0 %4813
      %4815 = vrot.lane.b32.xlu0 %v4268, 32
      %v4816 = vpop.permute.xlu0 %4815
      %4817 = vrot.lane.b32.xlu0 %v4269, 32
      %v4818 = vpop.permute.xlu0 %4817
      %4819 = vrot.lane.b32.xlu0 %v4270, 32
      %v4820 = vpop.permute.xlu0 %4819
      %4821 = vrot.lane.b32.xlu0 %v4271, 32
      %v4822 = vpop.permute.xlu0 %4821
      %4823 = vrot.lane.b32.xlu0 %v4272, 32
      %v4824 = vpop.permute.xlu0 %4823
      %4825 = vrot.lane.b32.xlu0 %v4273, 32
      %v4826 = vpop.permute.xlu0 %4825
      %4827 = vrot.lane.b32.xlu0 %v4274, 32
      %v4828 = vpop.permute.xlu0 %4827
      %4829 = vrot.lane.b32.xlu0 %v4275, 32
      %v4830 = vpop.permute.xlu0 %4829
      %4831 = vrot.lane.b32.xlu0 %v4276, 32
      %v4832 = vpop.permute.xlu0 %4831
      %4833 = vrot.lane.b32.xlu0 %v4277, 32
      %v4834 = vpop.permute.xlu0 %4833
      %4835 = vrot.lane.b32.xlu0 %v4278, 32
      %v4836 = vpop.permute.xlu0 %4835
      %4837 = vrot.lane.b32.xlu0 %v4279, 32
      %v4838 = vpop.permute.xlu0 %4837
      %4839 = vrot.lane.b32.xlu0 %v4280, 32
      %v4840 = vpop.permute.xlu0 %4839
      %4841 = vrot.lane.b32.xlu0 %v4281, 32
      %v4842 = vpop.permute.xlu0 %4841
      %4843 = vrot.lane.b32.xlu0 %v4282, 32
      %v4844 = vpop.permute.xlu0 %4843
      %4845 = vrot.lane.b32.xlu0 %v4283, 32
      %v4846 = vpop.permute.xlu0 %4845
      %4847 = vrot.lane.b32.xlu0 %v4284, 32
      %v4848 = vpop.permute.xlu0 %4847
      %4849 = vrot.lane.b32.xlu0 %v4285, 32
      %v4850 = vpop.permute.xlu0 %4849
      %4851 = vrot.lane.b32.xlu0 %v4286, 32
      %v4852 = vpop.permute.xlu0 %4851
      %4853 = vrot.lane.b32.xlu0 %v4287, 32
      %v4854 = vpop.permute.xlu0 %4853
      %4855 = vrot.lane.b32.xlu0 %v4288, 32
      %v4856 = vpop.permute.xlu0 %4855
      %4857 = vrot.lane.b32.xlu0 %v4289, 32
      %v4858 = vpop.permute.xlu0 %4857
      %4859 = vrot.lane.b32.xlu0 %v4290, 32
      %v4860 = vpop.permute.xlu0 %4859
      %4861 = vrot.lane.b32.xlu0 %v4291, 32
      %v4862 = vpop.permute.xlu0 %4861
      %4863 = vrot.lane.b32.xlu0 %v4292, 32
      %v4864 = vpop.permute.xlu0 %4863
      %4865 = vrot.lane.b32.xlu0 %v4293, 32
      %v4866 = vpop.permute.xlu0 %4865
      %4867 = vrot.lane.b32.xlu0 %v4294, 32
      %v4868 = vpop.permute.xlu0 %4867
      %4869 = vrot.lane.b32.xlu0 %v4295, 32
      %v4870 = vpop.permute.xlu0 %4869
      %4871 = vrot.lane.b32.xlu0 %v4296, 32
      %v4872 = vpop.permute.xlu0 %4871
      %4937 = vrot.lane.b32.xlu0 %v4297, 64
      %v4938 = vpop.permute.xlu0 %4937
      %4939 = vrot.lane.b32.xlu0 %v4298, 64
      %v4940 = vpop.permute.xlu0 %4939
      %4941 = vrot.lane.b32.xlu0 %v4299, 64
      %v4942 = vpop.permute.xlu0 %4941
      %4943 = vrot.lane.b32.xlu0 %v4300, 64
      %v4944 = vpop.permute.xlu0 %4943
      %4945 = vrot.lane.b32.xlu0 %v4301, 64
      %v4946 = vpop.permute.xlu0 %4945
      %4947 = vrot.lane.b32.xlu0 %v4302, 64
      %v4948 = vpop.permute.xlu0 %4947
      %4949 = vrot.lane.b32.xlu0 %v4303, 64
      %v4950 = vpop.permute.xlu0 %4949
      %4951 = vrot.lane.b32.xlu0 %v4304, 64
      %v4952 = vpop.permute.xlu0 %4951
      %4953 = vrot.lane.b32.xlu0 %v4305, 64
      %v4954 = vpop.permute.xlu0 %4953
      %4955 = vrot.lane.b32.xlu0 %v4306, 64
      %v4956 = vpop.permute.xlu0 %4955
      %4957 = vrot.lane.b32.xlu0 %v4307, 64
      %v4958 = vpop.permute.xlu0 %4957
      %4959 = vrot.lane.b32.xlu0 %v4308, 64
      %v4960 = vpop.permute.xlu0 %4959
      %4961 = vrot.lane.b32.xlu0 %v4309, 64
      %v4962 = vpop.permute.xlu0 %4961
      %4963 = vrot.lane.b32.xlu0 %v4310, 64
      %v4964 = vpop.permute.xlu0 %4963
      %4965 = vrot.lane.b32.xlu0 %v4311, 64
      %v4966 = vpop.permute.xlu0 %4965
      %4967 = vrot.lane.b32.xlu0 %v4312, 64
      %v4968 = vpop.permute.xlu0 %4967
      %4969 = vrot.lane.b32.xlu0 %v4313, 64
      %v4970 = vpop.permute.xlu0 %4969
      %4971 = vrot.lane.b32.xlu0 %v4314, 64
      %v4972 = vpop.permute.xlu0 %4971
      %4973 = vrot.lane.b32.xlu0 %v4315, 64
      %v4974 = vpop.permute.xlu0 %4973
      %4975 = vrot.lane.b32.xlu0 %v4316, 64
      %v4976 = vpop.permute.xlu0 %4975
      %4977 = vrot.lane.b32.xlu0 %v4317, 64
      %v4978 = vpop.permute.xlu0 %4977
      %4979 = vrot.lane.b32.xlu0 %v4318, 64
      %v4980 = vpop.permute.xlu0 %4979
      %4981 = vrot.lane.b32.xlu0 %v4319, 64
      %v4982 = vpop.permute.xlu0 %4981
      %4983 = vrot.lane.b32.xlu0 %v4320, 64
      %v4984 = vpop.permute.xlu0 %4983
      %4985 = vrot.lane.b32.xlu0 %v4321, 64
      %v4986 = vpop.permute.xlu0 %4985
      %4987 = vrot.lane.b32.xlu0 %v4322, 64
      %v4988 = vpop.permute.xlu0 %4987
      %4989 = vrot.lane.b32.xlu0 %v4323, 64
      %v4990 = vpop.permute.xlu0 %4989
      %4991 = vrot.lane.b32.xlu0 %v4324, 64
      %v4992 = vpop.permute.xlu0 %4991
      %4993 = vrot.lane.b32.xlu0 %v4325, 64
      %v4994 = vpop.permute.xlu0 %4993
      %4995 = vrot.lane.b32.xlu0 %v4326, 64
      %v4996 = vpop.permute.xlu0 %4995
      %4997 = vrot.lane.b32.xlu0 %v4327, 64
      %v4998 = vpop.permute.xlu0 %4997
      %4999 = vrot.lane.b32.xlu0 %v4328, 64
      %v5000 = vpop.permute.xlu0 %4999
      %5065 = vrot.lane.b32.xlu0 %v4329, 96
      %v5066 = vpop.permute.xlu0 %5065
      %5067 = vrot.lane.b32.xlu0 %v4330, 96
      %v5068 = vpop.permute.xlu0 %5067
      %5069 = vrot.lane.b32.xlu0 %v4331, 96
      %v5070 = vpop.permute.xlu0 %5069
      %5071 = vrot.lane.b32.xlu0 %v4332, 96
      %v5072 = vpop.permute.xlu0 %5071
      %5073 = vrot.lane.b32.xlu0 %v4333, 96
      %v5074 = vpop.permute.xlu0 %5073
      %5075 = vrot.lane.b32.xlu0 %v4334, 96
      %v5076 = vpop.permute.xlu0 %5075
      %5077 = vrot.lane.b32.xlu0 %v4335, 96
      %v5078 = vpop.permute.xlu0 %5077
      %5079 = vrot.lane.b32.xlu0 %v4336, 96
      %v5080 = vpop.permute.xlu0 %5079
      %5081 = vrot.lane.b32.xlu0 %v4337, 96
      %v5082 = vpop.permute.xlu0 %5081
      %5083 = vrot.lane.b32.xlu0 %v4338, 96
      %v5084 = vpop.permute.xlu0 %5083
      %5085 = vrot.lane.b32.xlu0 %v4339, 96
      %v5086 = vpop.permute.xlu0 %5085
      %5087 = vrot.lane.b32.xlu0 %v4340, 96
      %v5088 = vpop.permute.xlu0 %5087
      %5089 = vrot.lane.b32.xlu0 %v4341, 96
      %v5090 = vpop.permute.xlu0 %5089
      %5091 = vrot.lane.b32.xlu0 %v4342, 96
      %v5092 = vpop.permute.xlu0 %5091
      %5093 = vrot.lane.b32.xlu0 %v4343, 96
      %v5094 = vpop.permute.xlu0 %5093
      %5095 = vrot.lane.b32.xlu0 %v4344, 96
      %v5096 = vpop.permute.xlu0 %5095
      %5097 = vrot.lane.b32.xlu0 %v4345, 96
      %v5098 = vpop.permute.xlu0 %5097
      %5099 = vrot.lane.b32.xlu0 %v4346, 96
      %v5100 = vpop.permute.xlu0 %5099
      %5101 = vrot.lane.b32.xlu0 %v4347, 96
      %v5102 = vpop.permute.xlu0 %5101
      %5103 = vrot.lane.b32.xlu0 %v4348, 96
      %v5104 = vpop.permute.xlu0 %5103
      %5105 = vrot.lane.b32.xlu0 %v4349, 96
      %v5106 = vpop.permute.xlu0 %5105
      %5107 = vrot.lane.b32.xlu0 %v4350, 96
      %v5108 = vpop.permute.xlu0 %5107
      %5109 = vrot.lane.b32.xlu0 %v4351, 96
      %v5110 = vpop.permute.xlu0 %5109
      %5111 = vrot.lane.b32.xlu0 %v4352, 96
      %v5112 = vpop.permute.xlu0 %5111
      %5113 = vrot.lane.b32.xlu0 %v4353, 96
      %v5114 = vpop.permute.xlu0 %5113
      %5115 = vrot.lane.b32.xlu0 %v4354, 96
      %v5116 = vpop.permute.xlu0 %5115
      %5117 = vrot.lane.b32.xlu0 %v4355, 96
      %v5118 = vpop.permute.xlu0 %5117
      %5119 = vrot.lane.b32.xlu0 %v4356, 96
      %v5120 = vpop.permute.xlu0 %5119
      %5121 = vrot.lane.b32.xlu0 %v4357, 96
      %v5122 = vpop.permute.xlu0 %5121
      %5123 = vrot.lane.b32.xlu0 %v4358, 96
      %v5124 = vpop.permute.xlu0 %5123
      %5125 = vrot.lane.b32.xlu0 %v4359, 96
      %v5126 = vpop.permute.xlu0 %5125
      %5127 = vrot.lane.b32.xlu0 %v4360, 96
      %v5128 = vpop.permute.xlu0 %5127
      %v5161 = vsel %vm336, %v4105, %v4426
      %v5162 = vsel %vm336, %v4106, %v4428
      %v5163 = vsel %vm336, %v4107, %v4430
      %v5164 = vsel %vm336, %v4108, %v4432
      %v5165 = vsel %vm336, %v4109, %v4434
      %v5166 = vsel %vm336, %v4110, %v4436
      %v5167 = vsel %vm336, %v4111, %v4438
      %v5168 = vsel %vm336, %v4112, %v4440
      %v5169 = vsel %vm336, %v4113, %v4442
      %v5170 = vsel %vm336, %v4114, %v4444
      %v5171 = vsel %vm336, %v4115, %v4446
      %v5172 = vsel %vm336, %v4116, %v4448
      %v5173 = vsel %vm336, %v4117, %v4450
      %v5174 = vsel %vm336, %v4118, %v4452
      %v5175 = vsel %vm336, %v4119, %v4454
      %v5176 = vsel %vm336, %v4120, %v4456
      %v5177 = vsel %vm336, %v4121, %v4458
      %v5178 = vsel %vm336, %v4122, %v4460
      %v5179 = vsel %vm336, %v4123, %v4462
      %v5180 = vsel %vm336, %v4124, %v4464
      %v5181 = vsel %vm336, %v4125, %v4466
      %v5182 = vsel %vm336, %v4126, %v4468
      %v5183 = vsel %vm336, %v4127, %v4470
      %v5184 = vsel %vm336, %v4128, %v4472
      %v5185 = vsel %vm336, %v4129, %v4474
      %v5186 = vsel %vm336, %v4130, %v4476
      %v5187 = vsel %vm336, %v4131, %v4478
      %v5188 = vsel %vm336, %v4132, %v4480
      %v5189 = vsel %vm336, %v4133, %v4482
      %v5190 = vsel %vm336, %v4134, %v4484
      %v5191 = vsel %vm336, %v4135, %v4486
      %v5192 = vsel %vm336, %v4136, %v4488
      %v5193 = vsel %vm3368, %v5161, %v4554
      %v5194 = vsel %vm3368, %v5162, %v4556
      %v5195 = vsel %vm3368, %v5163, %v4558
      %v5196 = vsel %vm3368, %v5164, %v4560
      %v5197 = vsel %vm3368, %v5165, %v4562
      %v5198 = vsel %vm3368, %v5166, %v4564
      %v5199 = vsel %vm3368, %v5167, %v4566
      %v5200 = vsel %vm3368, %v5168, %v4568
      %v5201 = vsel %vm3368, %v5169, %v4570
      %v5202 = vsel %vm3368, %v5170, %v4572
      %v5203 = vsel %vm3368, %v5171, %v4574
      %v5204 = vsel %vm3368, %v5172, %v4576
      %v5205 = vsel %vm3368, %v5173, %v4578
      %v5206 = vsel %vm3368, %v5174, %v4580
      %v5207 = vsel %vm3368, %v5175, %v4582
      %v5208 = vsel %vm3368, %v5176, %v4584
      %v5209 = vsel %vm3368, %v5177, %v4586
      %v5210 = vsel %vm3368, %v5178, %v4588
      %v5211 = vsel %vm3368, %v5179, %v4590
      %v5212 = vsel %vm3368, %v5180, %v4592
      %v5213 = vsel %vm3368, %v5181, %v4594
      %v5214 = vsel %vm3368, %v5182, %v4596
      %v5215 = vsel %vm3368, %v5183, %v4598
      %v5216 = vsel %vm3368, %v5184, %v4600
      %v5217 = vsel %vm3368, %v5185, %v4602
      %v5218 = vsel %vm3368, %v5186, %v4604
      %v5219 = vsel %vm3368, %v5187, %v4606
      %v5220 = vsel %vm3368, %v5188, %v4608
      %v5221 = vsel %vm3368, %v5189, %v4610
      %v5222 = vsel %vm3368, %v5190, %v4612
      %v5223 = vsel %vm3368, %v5191, %v4614
      %v5224 = vsel %vm3368, %v5192, %v4616
      %v5225 = vsel %vm3401, %v5193, %v4682
      %v5226 = vsel %vm3401, %v5194, %v4684
      %v5227 = vsel %vm3401, %v5195, %v4686
      %v5228 = vsel %vm3401, %v5196, %v4688
      %v5229 = vsel %vm3401, %v5197, %v4690
      %v5230 = vsel %vm3401, %v5198, %v4692
      %v5231 = vsel %vm3401, %v5199, %v4694
      %v5232 = vsel %vm3401, %v5200, %v4696
      %v5233 = vsel %vm3401, %v5201, %v4698
      %v5234 = vsel %vm3401, %v5202, %v4700
      %v5235 = vsel %vm3401, %v5203, %v4702
      %v5236 = vsel %vm3401, %v5204, %v4704
      %v5237 = vsel %vm3401, %v5205, %v4706
      %v5238 = vsel %vm3401, %v5206, %v4708
      %v5239 = vsel %vm3401, %v5207, %v4710
      %v5240 = vsel %vm3401, %v5208, %v4712
      %v5241 = vsel %vm3401, %v5209, %v4714
      %v5242 = vsel %vm3401, %v5210, %v4716
      %v5243 = vsel %vm3401, %v5211, %v4718
      %v5244 = vsel %vm3401, %v5212, %v4720
      %v5245 = vsel %vm3401, %v5213, %v4722
      %v5246 = vsel %vm3401, %v5214, %v4724
      %v5247 = vsel %vm3401, %v5215, %v4726
      %v5248 = vsel %vm3401, %v5216, %v4728
      %v5249 = vsel %vm3401, %v5217, %v4730
      %v5250 = vsel %vm3401, %v5218, %v4732
      %v5251 = vsel %vm3401, %v5219, %v4734
      %v5252 = vsel %vm3401, %v5220, %v4736
      %v5253 = vsel %vm3401, %v5221, %v4738
      %v5254 = vsel %vm3401, %v5222, %v4740
      %v5255 = vsel %vm3401, %v5223, %v4742
      %v5256 = vsel %vm3401, %v5224, %v4744
      %v5257 = vsel %vm336, %v4233, %v4810
      %v5258 = vsel %vm336, %v4234, %v4812
      %v5259 = vsel %vm336, %v4235, %v4814
      %v5260 = vsel %vm336, %v4236, %v4816
      %v5261 = vsel %vm336, %v4237, %v4818
      %v5262 = vsel %vm336, %v4238, %v4820
      %v5263 = vsel %vm336, %v4239, %v4822
      %v5264 = vsel %vm336, %v4240, %v4824
      %v5265 = vsel %vm336, %v4241, %v4826
      %v5266 = vsel %vm336, %v4242, %v4828
      %v5267 = vsel %vm336, %v4243, %v4830
      %v5268 = vsel %vm336, %v4244, %v4832
      %v5269 = vsel %vm336, %v4245, %v4834
      %v5270 = vsel %vm336, %v4246, %v4836
      %v5271 = vsel %vm336, %v4247, %v4838
      %v5272 = vsel %vm336, %v4248, %v4840
      %v5273 = vsel %vm336, %v4249, %v4842
      %v5274 = vsel %vm336, %v4250, %v4844
      %v5275 = vsel %vm336, %v4251, %v4846
      %v5276 = vsel %vm336, %v4252, %v4848
      %v5277 = vsel %vm336, %v4253, %v4850
      %v5278 = vsel %vm336, %v4254, %v4852
      %v5279 = vsel %vm336, %v4255, %v4854
      %v5280 = vsel %vm336, %v4256, %v4856
      %v5281 = vsel %vm336, %v4257, %v4858
      %v5282 = vsel %vm336, %v4258, %v4860
      %v5283 = vsel %vm336, %v4259, %v4862
      %v5284 = vsel %vm336, %v4260, %v4864
      %v5285 = vsel %vm336, %v4261, %v4866
      %v5286 = vsel %vm336, %v4262, %v4868
      %v5287 = vsel %vm336, %v4263, %v4870
      %v5288 = vsel %vm336, %v4264, %v4872
      %v5289 = vsel %vm3368, %v5257, %v4938
      %v5290 = vsel %vm3368, %v5258, %v4940
      %v5291 = vsel %vm3368, %v5259, %v4942
      %v5292 = vsel %vm3368, %v5260, %v4944
      %v5293 = vsel %vm3368, %v5261, %v4946
      %v5294 = vsel %vm3368, %v5262, %v4948
      %v5295 = vsel %vm3368, %v5263, %v4950
      %v5296 = vsel %vm3368, %v5264, %v4952
      %v5297 = vsel %vm3368, %v5265, %v4954
      %v5298 = vsel %vm3368, %v5266, %v4956
      %v5299 = vsel %vm3368, %v5267, %v4958
      %v5300 = vsel %vm3368, %v5268, %v4960
      %v5301 = vsel %vm3368, %v5269, %v4962
      %v5302 = vsel %vm3368, %v5270, %v4964
      %v5303 = vsel %vm3368, %v5271, %v4966
      %v5304 = vsel %vm3368, %v5272, %v4968
      %v5305 = vsel %vm3368, %v5273, %v4970
      %v5306 = vsel %vm3368, %v5274, %v4972
      %v5307 = vsel %vm3368, %v5275, %v4974
      %v5308 = vsel %vm3368, %v5276, %v4976
      %v5309 = vsel %vm3368, %v5277, %v4978
      %v5310 = vsel %vm3368, %v5278, %v4980
      %v5311 = vsel %vm3368, %v5279, %v4982
      %v5312 = vsel %vm3368, %v5280, %v4984
      %v5313 = vsel %vm3368, %v5281, %v4986
      %v5314 = vsel %vm3368, %v5282, %v4988
      %v5315 = vsel %vm3368, %v5283, %v4990
      %v5316 = vsel %vm3368, %v5284, %v4992
      %v5317 = vsel %vm3368, %v5285, %v4994
      %v5318 = vsel %vm3368, %v5286, %v4996
      %v5319 = vsel %vm3368, %v5287, %v4998
      %v5320 = vsel %vm3368, %v5288, %v5000
      %v5321 = vsel %vm3401, %v5289, %v5066
      %v5322 = vsel %vm3401, %v5290, %v5068
      %v5323 = vsel %vm3401, %v5291, %v5070
      %v5324 = vsel %vm3401, %v5292, %v5072
      %v5325 = vsel %vm3401, %v5293, %v5074
      %v5326 = vsel %vm3401, %v5294, %v5076
      %v5327 = vsel %vm3401, %v5295, %v5078
      %v5328 = vsel %vm3401, %v5296, %v5080
      %v5329 = vsel %vm3401, %v5297, %v5082
      %v5330 = vsel %vm3401, %v5298, %v5084
      %v5331 = vsel %vm3401, %v5299, %v5086
      %v5332 = vsel %vm3401, %v5300, %v5088
      %v5333 = vsel %vm3401, %v5301, %v5090
      %v5334 = vsel %vm3401, %v5302, %v5092
      %v5335 = vsel %vm3401, %v5303, %v5094
      %v5336 = vsel %vm3401, %v5304, %v5096
      %v5337 = vsel %vm3401, %v5305, %v5098
      %v5338 = vsel %vm3401, %v5306, %v5100
      %v5339 = vsel %vm3401, %v5307, %v5102
      %v5340 = vsel %vm3401, %v5308, %v5104
      %v5341 = vsel %vm3401, %v5309, %v5106
      %v5342 = vsel %vm3401, %v5310, %v5108
      %v5343 = vsel %vm3401, %v5311, %v5110
      %v5344 = vsel %vm3401, %v5312, %v5112
      %v5345 = vsel %vm3401, %v5313, %v5114
      %v5346 = vsel %vm3401, %v5314, %v5116
      %v5347 = vsel %vm3401, %v5315, %v5118
      %v5348 = vsel %vm3401, %v5316, %v5120
      %v5349 = vsel %vm3401, %v5317, %v5122
      %v5350 = vsel %vm3401, %v5318, %v5124
      %v5351 = vsel %vm3401, %v5319, %v5126
      %v5352 = vsel %vm3401, %v5320, %v5128
      %v5353 = vpack.c.bf16 %v5226, %v5225
      %v5354 = vpack.c.bf16 %v5322, %v5321
      %v5355 = vpack.c.bf16 %v4362, %v4361
      %v5356 = vpack.c.bf16 %v5228, %v5227
      %v5357 = vpack.c.bf16 %v5324, %v5323
      %v5358 = vpack.c.bf16 %v4364, %v4363
      %v5359 = vpack.c.bf16 %v5230, %v5229
      %v5360 = vpack.c.bf16 %v5326, %v5325
      %v5361 = vpack.c.bf16 %v4366, %v4365
      %v5362 = vpack.c.bf16 %v5232, %v5231
      %v5363 = vpack.c.bf16 %v5328, %v5327
      %v5364 = vpack.c.bf16 %v4368, %v4367
      %v5365 = vpack.c.bf16 %v5234, %v5233
      %v5366 = vpack.c.bf16 %v5330, %v5329
      %v5367 = vpack.c.bf16 %v4370, %v4369
      %v5368 = vpack.c.bf16 %v5236, %v5235
      %v5369 = vpack.c.bf16 %v5332, %v5331
      %v5370 = vpack.c.bf16 %v4372, %v4371
      %v5371 = vpack.c.bf16 %v5238, %v5237
      %v5372 = vpack.c.bf16 %v5334, %v5333
      %v5373 = vpack.c.bf16 %v4374, %v4373
      %v5374 = vpack.c.bf16 %v5240, %v5239
      %v5375 = vpack.c.bf16 %v5336, %v5335
      %v5376 = vpack.c.bf16 %v4376, %v4375
      %v5377 = vpack.c.bf16 %v5242, %v5241
      %v5378 = vpack.c.bf16 %v5338, %v5337
      %v5379 = vpack.c.bf16 %v4378, %v4377
      %v5380 = vpack.c.bf16 %v5244, %v5243
      %v5381 = vpack.c.bf16 %v5340, %v5339
      %v5382 = vpack.c.bf16 %v4380, %v4379
      %v5383 = vpack.c.bf16 %v5246, %v5245
      %v5384 = vpack.c.bf16 %v5342, %v5341
      %v5385 = vpack.c.bf16 %v4382, %v4381
      %v5386 = vpack.c.bf16 %v5248, %v5247
      %v5387 = vpack.c.bf16 %v5344, %v5343
      %v5388 = vpack.c.bf16 %v4384, %v4383
      %v5389 = vpack.c.bf16 %v5250, %v5249
      %v5390 = vpack.c.bf16 %v5346, %v5345
      %v5391 = vpack.c.bf16 %v4386, %v4385
      %v5392 = vpack.c.bf16 %v5252, %v5251
      %v5393 = vpack.c.bf16 %v5348, %v5347
      %v5394 = vpack.c.bf16 %v4388, %v4387
      %v5395 = vpack.c.bf16 %v5254, %v5253
      %v5396 = vpack.c.bf16 %v5350, %v5349
      %v5397 = vpack.c.bf16 %v4390, %v4389
      %v5398 = vpack.c.bf16 %v5256, %v5255
      %v5399 = vpack.c.bf16 %v5352, %v5351
      %v5400 = vpack.c.bf16 %v4392, %v4391
      %v5401 = vld [vmem:[%s5] sm:$0xf]
      %v5402 = vld [vmem:[%s5 + $0x4] sm:$0xf]
      %v5403 = vld [vmem:[%s5 + $0x8] sm:$0xf]
      %v5404 = vld [vmem:[%s5 + $0xc] sm:$0xf]
      %v5405 = vld [vmem:[%s5 + $0x10] sm:$0xf]
      %v5406 = vld [vmem:[%s5 + $0x14] sm:$0xf]
      %v5407 = vld [vmem:[%s5 + $0x18] sm:$0xf]
      %v5408 = vld [vmem:[%s5 + $0x1c] sm:$0xf]
      %v5409 = vld [vmem:[%s5 + $0x20] sm:$0xf]
      %v5410 = vld [vmem:[%s5 + $0x24] sm:$0xf]
      %v5411 = vld [vmem:[%s5 + $0x28] sm:$0xf]
      %v5412 = vld [vmem:[%s5 + $0x2c] sm:$0xf]
      %v5413 = vld [vmem:[%s5 + $0x30] sm:$0xf]
      %v5414 = vld [vmem:[%s5 + $0x34] sm:$0xf]
      %v5415 = vld [vmem:[%s5 + $0x38] sm:$0xf]
      %v5416 = vld [vmem:[%s5 + $0x3c] sm:$0xf]
      %v5417 = vld [vmem:[%s5 + $0x40] sm:$0xf]
      %v5418 = vld [vmem:[%s5 + $0x44] sm:$0xf]
      %v5419 = vld [vmem:[%s5 + $0x48] sm:$0xf]
      %v5420 = vld [vmem:[%s5 + $0x4c] sm:$0xf]
      %v5421 = vld [vmem:[%s5 + $0x50] sm:$0xf]
      %v5422 = vld [vmem:[%s5 + $0x54] sm:$0xf]
      %v5423 = vld [vmem:[%s5 + $0x58] sm:$0xf]
      %v5424 = vld [vmem:[%s5 + $0x5c] sm:$0xf]
      %v5425 = vld [vmem:[%s5 + $0x60] sm:$0xf]
      %v5426 = vld [vmem:[%s5 + $0x64] sm:$0xf]
      %v5427 = vld [vmem:[%s5 + $0x68] sm:$0xf]
      %v5428 = vld [vmem:[%s5 + $0x6c] sm:$0xf]
      %v5429 = vld [vmem:[%s5 + $0x70] sm:$0xf]
      %v5430 = vld [vmem:[%s5 + $0x74] sm:$0xf]
      %v5431 = vld [vmem:[%s5 + $0x78] sm:$0xf]
      %v5432 = vld [vmem:[%s5 + $0x7c] sm:$0xf]
      %v5433 = vld [vmem:[%s5 + $0x80] sm:$0xf]
      %v5434 = vld [vmem:[%s5 + $0x84] sm:$0xf]
      %v5435 = vld [vmem:[%s5 + $0x88] sm:$0xf]
      %v5436 = vld [vmem:[%s5 + $0x8c] sm:$0xf]
      %v5437 = vld [vmem:[%s6] sm:$0x1]
      %v5439 = vperm.slane %v5437, 0
      %v5477 = vunpack.c.l.b16 %v5401
      %v5478 = vunpack.c.l.b16 %v5402
      %v5479 = vunpack.c.l.b16 %v5403
      %v5480 = vunpack.c.l.b16 %v5404
      %v5481 = vunpack.c.l.b16 %v5405
      %v5482 = vunpack.c.l.b16 %v5406
      %v5483 = vunpack.c.l.b16 %v5407
      %v5484 = vunpack.c.l.b16 %v5408
      %v5485 = vunpack.c.l.b16 %v5409
      %v5486 = vunpack.c.l.b16 %v5410
      %v5487 = vunpack.c.l.b16 %v5411
      %v5488 = vunpack.c.l.b16 %v5412
      %v5489 = vunpack.c.l.b16 %v5413
      %v5490 = vunpack.c.l.b16 %v5414
      %v5491 = vunpack.c.l.b16 %v5415
      %v5492 = vunpack.c.l.b16 %v5416
      %v5493 = vunpack.c.l.b16 %v5417
      %v5494 = vunpack.c.l.b16 %v5418
      %v5495 = vunpack.c.l.b16 %v5419
      %v5496 = vunpack.c.l.b16 %v5420
      %v5497 = vunpack.c.l.b16 %v5421
      %v5498 = vunpack.c.l.b16 %v5422
      %v5499 = vunpack.c.l.b16 %v5423
      %v5500 = vunpack.c.l.b16 %v5424
      %v5501 = vunpack.c.l.b16 %v5425
      %v5502 = vunpack.c.l.b16 %v5426
      %v5503 = vunpack.c.l.b16 %v5427
      %v5504 = vunpack.c.l.b16 %v5428
      %v5505 = vunpack.c.l.b16 %v5429
      %v5506 = vunpack.c.l.b16 %v5430
      %v5507 = vunpack.c.l.b16 %v5431
      %v5508 = vunpack.c.l.b16 %v5432
      %v5509 = vunpack.c.l.b16 %v5433
      %v5510 = vunpack.c.l.b16 %v5434
      %v5511 = vunpack.c.l.b16 %v5435
      %v5512 = vunpack.c.l.b16 %v5436
      %v5513 = vpack.c.b16 %v5478, %v5477
      %v5514 = vpack.c.b16 %v5480, %v5479
      %v5515 = vpack.c.b16 %v5482, %v5481
      %v5516 = vpack.c.b16 %v5484, %v5483
      %v5517 = vpack.c.b16 %v5486, %v5485
      %v5518 = vpack.c.b16 %v5488, %v5487
      %v5519 = vpack.c.b16 %v5490, %v5489
      %v5520 = vpack.c.b16 %v5492, %v5491
      %v5521 = vpack.c.b16 %v5494, %v5493
      %v5522 = vpack.c.b16 %v5496, %v5495
      %v5523 = vpack.c.b16 %v5498, %v5497
      %v5524 = vpack.c.b16 %v5500, %v5499
      %v5525 = vpack.c.b16 %v5502, %v5501
      %v5526 = vpack.c.b16 %v5504, %v5503
      %v5527 = vpack.c.b16 %v5506, %v5505
      %v5528 = vpack.c.b16 %v5508, %v5507
      %v5529 = vpack.c.b16 %v5510, %v5509
      %v5530 = vpack.c.b16 %v5512, %v5511
      %v5550 = vsel %vm336, %v5355, 0
      %v5553 = vsel %vm336, %v5358, 0
      %v5556 = vsel %vm336, %v5361, 0
      %v5559 = vsel %vm336, %v5364, 0
      %v5562 = vsel %vm336, %v5367, 0
      %v5565 = vsel %vm336, %v5370, 0
      %v5568 = vsel %vm336, %v5373, 0
      %v5571 = vsel %vm336, %v5376, 0
      %v5574 = vsel %vm336, %v5379, 0
      %v5577 = vsel %vm336, %v5382, 0
      %v5580 = vsel %vm336, %v5385, 0
      %v5583 = vsel %vm336, %v5388, 0
      %v5586 = vsel %vm336, %v5391, 0
      %v5589 = vsel %vm336, %v5394, 0
      %v5592 = vsel %vm336, %v5397, 0
      %v5595 = vsel %vm336, %v5400, 0
      %5597 = vmatpush.bf16.msra.mxu0 %v5520
      %5598 = vmatpush.bf16.msra.mxu0 %v5519
      %5599 = vmatpush.bf16.msra.mxu0 %v5518
      %5600 = vmatpush.bf16.msra.mxu0 %v5517
      %5601 = vmatpush.bf16.msra.mxu0 %v5516
      %5602 = vmatpush.bf16.msra.mxu0 %v5515
      %5603 = vmatpush.bf16.msra.mxu0 %v5514
      %5604 = vmatpush.bf16.msra.mxu0 %v5513
      %5605 = vmatmul.bf16.gmra.mxu0 %v5353
      %v5606 = vpop.f32.mrf.mxu0
      %v5607 = vadd.f32 %v5439, %v5606
      %v5608 = vpop.f32.mrf.mxu0
      %v5609 = vadd.f32 %v5439, %v5608
      %5610 = vmatmul.bf16.gmra.mxu0 %v5356
      %v5611 = vpop.f32.mrf.mxu0
      %v5612 = vadd.f32 %v5439, %v5611
      %v5613 = vpop.f32.mrf.mxu0
      %v5614 = vadd.f32 %v5439, %v5613
      %5615 = vmatmul.bf16.gmra.mxu0 %v5359
      %v5616 = vpop.f32.mrf.mxu0
      %v5617 = vadd.f32 %v5439, %v5616
      %v5618 = vpop.f32.mrf.mxu0
      %v5619 = vadd.f32 %v5439, %v5618
      %5620 = vmatmul.bf16.gmra.mxu0 %v5362
      %v5621 = vpop.f32.mrf.mxu0
      %v5622 = vadd.f32 %v5439, %v5621
      %v5623 = vpop.f32.mrf.mxu0
      %v5624 = vadd.f32 %v5439, %v5623
      %5625 = vmatmul.bf16.gmra.mxu0 %v5365
      %v5626 = vpop.f32.mrf.mxu0
      %v5627 = vadd.f32 %v5439, %v5626
      %v5628 = vpop.f32.mrf.mxu0
      %v5629 = vadd.f32 %v5439, %v5628
      %5630 = vmatmul.bf16.gmra.mxu0 %v5368
      %v5631 = vpop.f32.mrf.mxu0
      %v5632 = vadd.f32 %v5439, %v5631
      %v5633 = vpop.f32.mrf.mxu0
      %v5634 = vadd.f32 %v5439, %v5633
      %5635 = vmatmul.bf16.gmra.mxu0 %v5371
      %v5636 = vpop.f32.mrf.mxu0
      %v5637 = vadd.f32 %v5439, %v5636
      %v5638 = vpop.f32.mrf.mxu0
      %v5639 = vadd.f32 %v5439, %v5638
      %5640 = vmatmul.bf16.gmra.mxu0 %v5374
      %v5641 = vpop.f32.mrf.mxu0
      %v5642 = vadd.f32 %v5439, %v5641
      %v5643 = vpop.f32.mrf.mxu0
      %v5644 = vadd.f32 %v5439, %v5643
      %5645 = vmatmul.bf16.gmra.mxu0 %v5377
      %v5646 = vpop.f32.mrf.mxu0
      %v5647 = vadd.f32 %v5439, %v5646
      %v5648 = vpop.f32.mrf.mxu0
      %v5649 = vadd.f32 %v5439, %v5648
      %5650 = vmatmul.bf16.gmra.mxu0 %v5380
      %v5651 = vpop.f32.mrf.mxu0
      %v5652 = vadd.f32 %v5439, %v5651
      %v5653 = vpop.f32.mrf.mxu0
      %v5654 = vadd.f32 %v5439, %v5653
      %5655 = vmatmul.bf16.gmra.mxu0 %v5383
      %v5656 = vpop.f32.mrf.mxu0
      %v5657 = vadd.f32 %v5439, %v5656
      %v5658 = vpop.f32.mrf.mxu0
      %v5659 = vadd.f32 %v5439, %v5658
      %5660 = vmatmul.bf16.gmra.mxu0 %v5386
      %v5661 = vpop.f32.mrf.mxu0
      %v5662 = vadd.f32 %v5439, %v5661
      %v5663 = vpop.f32.mrf.mxu0
      %v5664 = vadd.f32 %v5439, %v5663
      %5665 = vmatmul.bf16.gmra.mxu0 %v5389
      %v5666 = vpop.f32.mrf.mxu0
      %v5667 = vadd.f32 %v5439, %v5666
      %v5668 = vpop.f32.mrf.mxu0
      %v5669 = vadd.f32 %v5439, %v5668
      %5670 = vmatmul.bf16.gmra.mxu0 %v5392
      %v5671 = vpop.f32.mrf.mxu0
      %v5672 = vadd.f32 %v5439, %v5671
      %v5673 = vpop.f32.mrf.mxu0
      %v5674 = vadd.f32 %v5439, %v5673
      %5675 = vmatmul.bf16.gmra.mxu0 %v5395
      %v5676 = vpop.f32.mrf.mxu0
      %v5677 = vadd.f32 %v5439, %v5676
      %v5678 = vpop.f32.mrf.mxu0
      %v5679 = vadd.f32 %v5439, %v5678
      %5680 = vmatmul.bf16.gmra.mxu0 %v5398
      %v5681 = vpop.f32.mrf.mxu0
      %v5682 = vadd.f32 %v5439, %v5681
      %v5683 = vpop.f32.mrf.mxu0
      %v5684 = vadd.f32 %v5439, %v5683
      %5685 = vdwg.mxu0
      %5686 = vmatpush.bf16.msra.mxu0 %v5528
      %5687 = vmatpush.bf16.msra.mxu0 %v5527
      %5688 = vmatpush.bf16.msra.mxu0 %v5526
      %5689 = vmatpush.bf16.msra.mxu0 %v5525
      %5690 = vmatpush.bf16.msra.mxu0 %v5524
      %5691 = vmatpush.bf16.msra.mxu0 %v5523
      %5692 = vmatpush.bf16.msra.mxu0 %v5522
      %5693 = vmatpush.bf16.msra.mxu0 %v5521
      %5694 = vmatmul.bf16.gmra.mxu0 %v5354
      %v5695 = vpop.f32.mrf.mxu0
      %v5696 = vadd.f32 %v5607, %v5695
      %v5697 = vpop.f32.mrf.mxu0
      %v5698 = vadd.f32 %v5609, %v5697
      %5699 = vmatmul.bf16.gmra.mxu0 %v5357
      %v5700 = vpop.f32.mrf.mxu0
      %v5701 = vadd.f32 %v5612, %v5700
      %v5702 = vpop.f32.mrf.mxu0
      %v5703 = vadd.f32 %v5614, %v5702
      %5704 = vmatmul.bf16.gmra.mxu0 %v5360
      %v5705 = vpop.f32.mrf.mxu0
      %v5706 = vadd.f32 %v5617, %v5705
      %v5707 = vpop.f32.mrf.mxu0
      %v5708 = vadd.f32 %v5619, %v5707
      %5709 = vmatmul.bf16.gmra.mxu0 %v5363
      %v5710 = vpop.f32.mrf.mxu0
      %v5711 = vadd.f32 %v5622, %v5710
      %v5712 = vpop.f32.mrf.mxu0
      %v5713 = vadd.f32 %v5624, %v5712
      %5714 = vmatmul.bf16.gmra.mxu0 %v5366
      %v5715 = vpop.f32.mrf.mxu0
      %v5716 = vadd.f32 %v5627, %v5715
      %v5717 = vpop.f32.mrf.mxu0
      %v5718 = vadd.f32 %v5629, %v5717
      %5719 = vmatmul.bf16.gmra.mxu0 %v5369
      %v5720 = vpop.f32.mrf.mxu0
      %v5721 = vadd.f32 %v5632, %v5720
      %v5722 = vpop.f32.mrf.mxu0
      %v5723 = vadd.f32 %v5634, %v5722
      %5724 = vmatmul.bf16.gmra.mxu0 %v5372
      %v5725 = vpop.f32.mrf.mxu0
      %v5726 = vadd.f32 %v5637, %v5725
      %v5727 = vpop.f32.mrf.mxu0
      %v5728 = vadd.f32 %v5639, %v5727
      %5729 = vmatmul.bf16.gmra.mxu0 %v5375
      %v5730 = vpop.f32.mrf.mxu0
      %v5731 = vadd.f32 %v5642, %v5730
      %v5732 = vpop.f32.mrf.mxu0
      %v5733 = vadd.f32 %v5644, %v5732
      %5734 = vmatmul.bf16.gmra.mxu0 %v5378
      %v5735 = vpop.f32.mrf.mxu0
      %v5736 = vadd.f32 %v5647, %v5735
      %v5737 = vpop.f32.mrf.mxu0
      %v5738 = vadd.f32 %v5649, %v5737
      %5739 = vmatmul.bf16.gmra.mxu0 %v5381
      %v5740 = vpop.f32.mrf.mxu0
      %v5741 = vadd.f32 %v5652, %v5740
      %v5742 = vpop.f32.mrf.mxu0
      %v5743 = vadd.f32 %v5654, %v5742
      %5744 = vmatmul.bf16.gmra.mxu0 %v5384
      %v5745 = vpop.f32.mrf.mxu0
      %v5746 = vadd.f32 %v5657, %v5745
      %v5747 = vpop.f32.mrf.mxu0
      %v5748 = vadd.f32 %v5659, %v5747
      %5749 = vmatmul.bf16.gmra.mxu0 %v5387
      %v5750 = vpop.f32.mrf.mxu0
      %v5751 = vadd.f32 %v5662, %v5750
      %v5752 = vpop.f32.mrf.mxu0
      %v5753 = vadd.f32 %v5664, %v5752
      %5754 = vmatmul.bf16.gmra.mxu0 %v5390
      %v5755 = vpop.f32.mrf.mxu0
      %v5756 = vadd.f32 %v5667, %v5755
      %v5757 = vpop.f32.mrf.mxu0
      %v5758 = vadd.f32 %v5669, %v5757
      %5759 = vmatmul.bf16.gmra.mxu0 %v5393
      %v5760 = vpop.f32.mrf.mxu0
      %v5761 = vadd.f32 %v5672, %v5760
      %v5762 = vpop.f32.mrf.mxu0
      %v5763 = vadd.f32 %v5674, %v5762
      %5764 = vmatmul.bf16.gmra.mxu0 %v5396
      %v5765 = vpop.f32.mrf.mxu0
      %v5766 = vadd.f32 %v5677, %v5765
      %v5767 = vpop.f32.mrf.mxu0
      %v5768 = vadd.f32 %v5679, %v5767
      %5769 = vmatmul.bf16.gmra.mxu0 %v5399
      %v5770 = vpop.f32.mrf.mxu0
      %v5771 = vadd.f32 %v5682, %v5770
      %v5772 = vpop.f32.mrf.mxu0
      %v5773 = vadd.f32 %v5684, %v5772
      %5774 = vdwg.mxu0
      %5775 = vmatpush.bf16.msra.mxu0 0
      %5776 = vmatpush.bf16.msra.mxu0 0
      %5777 = vmatpush.bf16.msra.mxu0 0
      %5778 = vmatpush.bf16.msra.mxu0 0
      %5779 = vmatpush.bf16.msra.mxu0 0
      %5780 = vmatpush.bf16.msra.mxu0 0
      %5781 = vmatpush.bf16.msra.mxu0 %v5530
      %5782 = vmatpush.bf16.msra.mxu0 %v5529
      %5783 = vmatmul.bf16.gmra.mxu0 %v5550
      %v5784 = vpop.f32.mrf.mxu0
      %v5785 = vadd.f32 %v5696, %v5784
      %v5786 = vpop.f32.mrf.mxu0
      %v5787 = vadd.f32 %v5698, %v5786
      %5788 = vmatmul.bf16.gmra.mxu0 %v5553
      %v5789 = vpop.f32.mrf.mxu0
      %v5790 = vadd.f32 %v5701, %v5789
      %v5791 = vpop.f32.mrf.mxu0
      %v5792 = vadd.f32 %v5703, %v5791
      %5793 = vmatmul.bf16.gmra.mxu0 %v5556
      %v5794 = vpop.f32.mrf.mxu0
      %v5795 = vadd.f32 %v5706, %v5794
      %v5796 = vpop.f32.mrf.mxu0
      %v5797 = vadd.f32 %v5708, %v5796
      %5798 = vmatmul.bf16.gmra.mxu0 %v5559
      %v5799 = vpop.f32.mrf.mxu0
      %v5800 = vadd.f32 %v5711, %v5799
      %v5801 = vpop.f32.mrf.mxu0
      %v5802 = vadd.f32 %v5713, %v5801
      %5803 = vmatmul.bf16.gmra.mxu0 %v5562
      %v5804 = vpop.f32.mrf.mxu0
      %v5805 = vadd.f32 %v5716, %v5804
      %v5806 = vpop.f32.mrf.mxu0
      %v5807 = vadd.f32 %v5718, %v5806
      %5808 = vmatmul.bf16.gmra.mxu0 %v5565
      %v5809 = vpop.f32.mrf.mxu0
      %v5810 = vadd.f32 %v5721, %v5809
      %v5811 = vpop.f32.mrf.mxu0
      %v5812 = vadd.f32 %v5723, %v5811
      %5813 = vmatmul.bf16.gmra.mxu0 %v5568
      %v5814 = vpop.f32.mrf.mxu0
      %v5815 = vadd.f32 %v5726, %v5814
      %v5816 = vpop.f32.mrf.mxu0
      %v5817 = vadd.f32 %v5728, %v5816
      %5818 = vmatmul.bf16.gmra.mxu0 %v5571
      %v5819 = vpop.f32.mrf.mxu0
      %v5820 = vadd.f32 %v5731, %v5819
      %v5821 = vpop.f32.mrf.mxu0
      %v5822 = vadd.f32 %v5733, %v5821
      %5823 = vmatmul.bf16.gmra.mxu0 %v5574
      %v5824 = vpop.f32.mrf.mxu0
      %v5825 = vadd.f32 %v5736, %v5824
      %v5826 = vpop.f32.mrf.mxu0
      %v5827 = vadd.f32 %v5738, %v5826
      %5828 = vmatmul.bf16.gmra.mxu0 %v5577
      %v5829 = vpop.f32.mrf.mxu0
      %v5830 = vadd.f32 %v5741, %v5829
      %v5831 = vpop.f32.mrf.mxu0
      %v5832 = vadd.f32 %v5743, %v5831
      %5833 = vmatmul.bf16.gmra.mxu0 %v5580
      %v5834 = vpop.f32.mrf.mxu0
      %v5835 = vadd.f32 %v5746, %v5834
      %v5836 = vpop.f32.mrf.mxu0
      %v5837 = vadd.f32 %v5748, %v5836
      %5838 = vmatmul.bf16.gmra.mxu0 %v5583
      %v5839 = vpop.f32.mrf.mxu0
      %v5840 = vadd.f32 %v5751, %v5839
      %v5841 = vpop.f32.mrf.mxu0
      %v5842 = vadd.f32 %v5753, %v5841
      %5843 = vmatmul.bf16.gmra.mxu0 %v5586
      %v5844 = vpop.f32.mrf.mxu0
      %v5845 = vadd.f32 %v5756, %v5844
      %v5846 = vpop.f32.mrf.mxu0
      %v5847 = vadd.f32 %v5758, %v5846
      %5848 = vmatmul.bf16.gmra.mxu0 %v5589
      %v5849 = vpop.f32.mrf.mxu0
      %v5850 = vadd.f32 %v5761, %v5849
      %v5851 = vpop.f32.mrf.mxu0
      %v5852 = vadd.f32 %v5763, %v5851
      %5853 = vmatmul.bf16.gmra.mxu0 %v5592
      %v5854 = vpop.f32.mrf.mxu0
      %v5855 = vadd.f32 %v5766, %v5854
      %v5856 = vpop.f32.mrf.mxu0
      %v5857 = vadd.f32 %v5768, %v5856
      %5858 = vmatmul.bf16.gmra.mxu0 %v5595
      %v5859 = vpop.f32.mrf.mxu0
      %v5860 = vadd.f32 %v5771, %v5859
      %v5861 = vpop.f32.mrf.mxu0
      %v5862 = vadd.f32 %v5773, %v5861
      %5863 = vdwg.mxu0
      %v5864 = vld [vmem:[%s273] sm:$0xff]
      %v5865 = vld [vmem:[%s273 + $0x8] sm:$0xff]
      %v5866 = vld [vmem:[%s273 + $0x10] sm:$0xff]
      %v5867 = vld [vmem:[%s273 + $0x18] sm:$0xff]
      %v5868 = vld [vmem:[%s273 + $0x20] sm:$0xff]
      %v5869 = vld [vmem:[%s273 + $0x28] sm:$0xff]
      %v5870 = vld [vmem:[%s273 + $0x30] sm:$0xff]
      %v5871 = vld [vmem:[%s273 + $0x38] sm:$0xff]
      %v5872 = vld [vmem:[%s273 + $0x40] sm:$0xff]
      %v5873 = vld [vmem:[%s273 + $0x48] sm:$0xff]
      %v5874 = vld [vmem:[%s273 + $0x50] sm:$0xff]
      %v5875 = vld [vmem:[%s273 + $0x58] sm:$0xff]
      %v5876 = vld [vmem:[%s273 + $0x60] sm:$0xff]
      %v5877 = vld [vmem:[%s273 + $0x68] sm:$0xff]
      %v5878 = vld [vmem:[%s273 + $0x70] sm:$0xff]
      %v5879 = vld [vmem:[%s273 + $0x78] sm:$0xff]
      %v5880 = vld [vmem:[%s273 + $0x80] sm:$0xff]
      %v5881 = vld [vmem:[%s273 + $0x88] sm:$0xff]
      %v5882 = vld [vmem:[%s273 + $0x90] sm:$0xff]
      %v5883 = vld [vmem:[%s273 + $0x98] sm:$0xff]
      %v5884 = vld [vmem:[%s273 + $0xa0] sm:$0xff]
      %v5885 = vld [vmem:[%s273 + $0xa8] sm:$0xff]
      %v5886 = vld [vmem:[%s273 + $0xb0] sm:$0xff]
      %v5887 = vld [vmem:[%s273 + $0xb8] sm:$0xff]
      %v5888 = vld [vmem:[%s273 + $0xc0] sm:$0xff]
      %v5889 = vld [vmem:[%s273 + $0xc8] sm:$0xff]
      %v5890 = vld [vmem:[%s273 + $0xd0] sm:$0xff]
      %v5891 = vld [vmem:[%s273 + $0xd8] sm:$0xff]
      %v5892 = vld [vmem:[%s273 + $0xe0] sm:$0xff]
      %v5893 = vld [vmem:[%s273 + $0xe8] sm:$0xff]
      %v5894 = vld [vmem:[%s273 + $0xf0] sm:$0xff]
      %v5895 = vld [vmem:[%s273 + $0xf8] sm:$0xff]
      %v5896 = vsub.f32 %v5864, %v5785
      %v5897 = vsub.f32 %v5865, %v5787
      %v5898 = vsub.f32 %v5866, %v5790
      %v5899 = vsub.f32 %v5867, %v5792
      %v5900 = vsub.f32 %v5868, %v5795
      %v5901 = vsub.f32 %v5869, %v5797
      %v5902 = vsub.f32 %v5870, %v5800
      %v5903 = vsub.f32 %v5871, %v5802
      %v5904 = vsub.f32 %v5872, %v5805
      %v5905 = vsub.f32 %v5873, %v5807
      %v5906 = vsub.f32 %v5874, %v5810
      %v5907 = vsub.f32 %v5875, %v5812
      %v5908 = vsub.f32 %v5876, %v5815
      %v5909 = vsub.f32 %v5877, %v5817
      %v5910 = vsub.f32 %v5878, %v5820
      %v5911 = vsub.f32 %v5879, %v5822
      %v5912 = vsub.f32 %v5880, %v5825
      %v5913 = vsub.f32 %v5881, %v5827
      %v5914 = vsub.f32 %v5882, %v5830
      %v5915 = vsub.f32 %v5883, %v5832
      %v5916 = vsub.f32 %v5884, %v5835
      %v5917 = vsub.f32 %v5885, %v5837
      %v5918 = vsub.f32 %v5886, %v5840
      %v5919 = vsub.f32 %v5887, %v5842
      %v5920 = vsub.f32 %v5888, %v5845
      %v5921 = vsub.f32 %v5889, %v5847
      %v5922 = vsub.f32 %v5890, %v5850
      %v5923 = vsub.f32 %v5891, %v5852
      %v5924 = vsub.f32 %v5892, %v5855
      %v5925 = vsub.f32 %v5893, %v5857
      %v5926 = vsub.f32 %v5894, %v5860
      %v5927 = vsub.f32 %v5895, %v5862
      %5928 = vxpose.xlu0.b32.start [1/16] %v5896, 128
      %5929 = vxpose.xlu0.b32.cont [2/16] %v5897, 128
      %5930 = vxpose.xlu0.b32.cont [3/16] %v5898, 128
      %5931 = vxpose.xlu0.b32.cont [4/16] %v5899, 128
      %5932 = vxpose.xlu0.b32.cont [5/16] %v5900, 128
      %5933 = vxpose.xlu0.b32.cont [6/16] %v5901, 128
      %5934 = vxpose.xlu0.b32.cont [7/16] %v5902, 128
      %5935 = vxpose.xlu0.b32.cont [8/16] %v5903, 128
      %5936 = vxpose.xlu0.b32.cont [9/16] %v5904, 128
      %5937 = vxpose.xlu0.b32.cont [10/16] %v5905, 128
      %5938 = vxpose.xlu0.b32.cont [11/16] %v5906, 128
      %5939 = vxpose.xlu0.b32.cont [12/16] %v5907, 128
      %5940 = vxpose.xlu0.b32.cont [13/16] %v5908, 128
      %5941 = vxpose.xlu0.b32.cont [14/16] %v5909, 128
      %5942 = vxpose.xlu0.b32.cont [15/16] %v5910, 128
      %5943 = vxpose.xlu0.b32.end [16/16] %v5911, 128
      %v5944 = vpop.trf.xlu0
      %v5945 = vpop.trf.xlu0
      %v5946 = vpop.trf.xlu0
      %v5947 = vpop.trf.xlu0
      %v5948 = vpop.trf.xlu0
      %v5949 = vpop.trf.xlu0
      %v5950 = vpop.trf.xlu0
      %v5951 = vpop.trf.xlu0
      %v5952 = vpop.trf.xlu0
      %v5953 = vpop.trf.xlu0
      %v5954 = vpop.trf.xlu0
      %v5955 = vpop.trf.xlu0
      %v5956 = vpop.trf.xlu0
      %v5957 = vpop.trf.xlu0
      %v5958 = vpop.trf.xlu0
      %v5959 = vpop.trf.xlu0
      %5960 = vxpose.xlu0.b32.start [1/16] %v5912, 128
      %5961 = vxpose.xlu0.b32.cont [2/16] %v5913, 128
      %5962 = vxpose.xlu0.b32.cont [3/16] %v5914, 128
      %5963 = vxpose.xlu0.b32.cont [4/16] %v5915, 128
      %5964 = vxpose.xlu0.b32.cont [5/16] %v5916, 128
      %5965 = vxpose.xlu0.b32.cont [6/16] %v5917, 128
      %5966 = vxpose.xlu0.b32.cont [7/16] %v5918, 128
      %5967 = vxpose.xlu0.b32.cont [8/16] %v5919, 128
      %5968 = vxpose.xlu0.b32.cont [9/16] %v5920, 128
      %5969 = vxpose.xlu0.b32.cont [10/16] %v5921, 128
      %5970 = vxpose.xlu0.b32.cont [11/16] %v5922, 128
      %5971 = vxpose.xlu0.b32.cont [12/16] %v5923, 128
      %5972 = vxpose.xlu0.b32.cont [13/16] %v5924, 128
      %5973 = vxpose.xlu0.b32.cont [14/16] %v5925, 128
      %5974 = vxpose.xlu0.b32.cont [15/16] %v5926, 128
      %5975 = vxpose.xlu0.b32.end [16/16] %v5927, 128
      %v5976 = vpop.trf.xlu0
      %v5977 = vpop.trf.xlu0
      %v5978 = vpop.trf.xlu0
      %v5979 = vpop.trf.xlu0
      %v5980 = vpop.trf.xlu0
      %v5981 = vpop.trf.xlu0
      %v5982 = vpop.trf.xlu0
      %v5983 = vpop.trf.xlu0
      %v5984 = vpop.trf.xlu0
      %v5985 = vpop.trf.xlu0
      %v5986 = vpop.trf.xlu0
      %v5987 = vpop.trf.xlu0
      %v5988 = vpop.trf.xlu0
      %v5989 = vpop.trf.xlu0
      %v5990 = vpop.trf.xlu0
      %v5991 = vpop.trf.xlu0
      %v5994 = vrot.slane %v5976, 4
      %vm5995 = vcmask 1043456
      %v5996 = vsel %vm5995, %v5944, %v5994
      %5998 = vst [vmem:[%s278] sm:$0xff] %v5996
      %p5999 = scmp.lt.s32.totalorder %s18, 1
      %s6000 = scalar_select %p5999, %s18, 1
      %s6001 = smul.addr %s6000, 2
      %s6002 = smul.addr %s6001, 4
      %s6003 = scalar_lea.vmem %s7, %s6002
      // Predicated region
      $region49: #{denoising_network.1} parent=47 // pred_check
        %p6004 = pneg %p188
      $region50: #{denoising_network.1} parent=47 // pred_check_branch
        %6006 = sbr.rel (%p6004) target = $region52
      $region51: #{denoising_network.1} parent=47 // pred_region
        _
      $region52: #{denoising_network.1} parent=47 // pred_fallthru
        _
    $region48: #{denoising_network.1} parent=5 // pred_fallthru
      _
    %p6007 = scmp.le.s32.totalorder 2, %s13
    // Predicated region
    $region53: #{denoising_network.1} parent=5 // pred_check
      %p6008 = pneg %p6007
    $region54: #{denoising_network.1} parent=5 // pred_check_branch
      %6010 = sbr.rel (%p6008) target = $region56
    $region55: #{denoising_network.1} parent=5 // pred_region
      %s6011 = ssub.s32 %s13, 2
      // Predicated region
      $region57: #{denoising_network.1} parent=55 // pred_check
        %p6012 = pneg %p194
      $region58: #{denoising_network.1} parent=55 // pred_check_branch
        %6014 = sbr.rel (%p6012) target = $region60
      $region59: #{denoising_network.1} parent=55 // pred_region
        %p6015 = scmp.lt.s32.totalorder %s19, 1
        %s6016 = scalar_select %p6015, %s19, 1
        %s6017 = smul.addr %s6016, 2
        %s6018 = smul.addr %s6017, 4
        %s6019 = scalar_lea.vmem %s7, %s6018
      $region60: #{denoising_network.1} parent=55 // pred_fallthru
        _
    $region56: #{denoising_network.1} parent=5 // pred_fallthru
      _
  $region6: #{denoising_network.1} parent=0 // loop_footer
    %s17 = sadd.s32 1, %s13
  $region7: #{denoising_network.1} parent=0 // loop_footer_branch
    %12 = sbr.rel target = $region3
  $region8: #{denoising_network.1} parent=0 // loop_exit
    _

</llo_original>
